<compile_context>
chip_gen: v7x
topology: tpu7x:2x2x1
jax: 0.10.0
libtpu: 0.0.40
codegen_flags: <defaults>
</compile_context>

<pallas_src>
import functools

import jax
import jax.numpy as jnp
from jax.experimental import pallas as pl
from jax.experimental.pallas import tpu as pltpu


# ----------------------------------------------------------------------------
# Fused kernel: 2 GRU layers + linear head, single grid step, VMEM-resident.
# ----------------------------------------------------------------------------
def gru_fused_kernel(
    x_ref,                            # (T*B, D)  time-major flattened input
    w1_ih_ref, w1_hh_ref, b1_ref,     # layer 1: (3,D,H), (3,H,H), (4,1,H)
    w2_ih_ref, w2_hh_ref, b2_ref,     # layer 2: (3,H,H), (3,H,H), (4,1,H)
    wlin_ref, blin_ref,               # (H, Lpad), (1, Lpad)   (zero-padded)
    out_ref,                          # (T*B, Lpad)  lane-dense logits output
    hid_ref,                          # (2, B, H)    final hidden per layer
    gir_ref, giz_ref, gin_ref,        # scratch (T*B, H): hoisted input proj.
    seq1_ref, seq2_ref,               # scratch (T*B, H): per-layer sequences
    *, T, B):
    f32 = jnp.float32

    def run_layer(x_in, w_ih_ref, w_hh_ref, b_ref, seq_ref):
        H = w_hh_ref.shape[-1]

        # ---- Hoisted input projection for ALL timesteps (one big matmul per
        # gate, M = T*B rows) -- this is outside the serial time loop. --------
        gir_ref[...] = jnp.dot(x_in, w_ih_ref[0], preferred_element_type=f32) + b_ref[0]
        giz_ref[...] = jnp.dot(x_in, w_ih_ref[1], preferred_element_type=f32) + b_ref[1]
        gin_ref[...] = jnp.dot(x_in, w_ih_ref[2], preferred_element_type=f32) + b_ref[2]

        # Loop-invariant recurrent weights / bias (held in vregs across steps).
        w_hr = w_hh_ref[0]
        w_hz = w_hh_ref[1]
        w_hn = w_hh_ref[2]
        b_hn = b_ref[3]

        def step(t, h_prev):
            row = t * B
            gi_r = gir_ref[pl.ds(row, B), :]
            gi_z = giz_ref[pl.ds(row, B), :]
            gi_n = gin_ref[pl.ds(row, B), :]
            gh_r = jnp.dot(h_prev, w_hr, preferred_element_type=f32)
            gh_z = jnp.dot(h_prev, w_hz, preferred_element_type=f32)
            gh_n = jnp.dot(h_prev, w_hn, preferred_element_type=f32) + b_hn
            r = jax.nn.sigmoid(gi_r + gh_r)
            z = jax.nn.sigmoid(gi_z + gh_z)
            n = jnp.tanh(gi_n + r * gh_n)
            h_new = (1.0 - z) * n + z * h_prev
            seq_ref[pl.ds(row, B), :] = h_new
            return h_new

        h0 = jnp.zeros((B, H), f32)
        # Short, fixed trip count -> fully unroll for LLO scheduler visibility.
        return jax.lax.fori_loop(0, T, step, h0, unroll=True)

    h1 = run_layer(x_ref[...], w1_ih_ref, w1_hh_ref, b1_ref, seq1_ref)
    h2 = run_layer(seq1_ref[...], w2_ih_ref, w2_hh_ref, b2_ref, seq2_ref)

    # Final hidden states (num_layers, B, H) -- tiny one-time store.
    hid_ref[0] = h1
    hid_ref[1] = h2

    # Linear head applied to the VMEM-resident layer-2 sequence; Lpad is a
    # multiple of 128 so the store is a single unmasked lane-dense slab.
    out_ref[...] = (jnp.dot(seq2_ref[...], wlin_ref[...], preferred_element_type=f32)
                    + blin_ref[...])


def _pack_layer(w_ih, w_hh, b_ih, b_hh, H):
    """PyTorch-layout (in,3H)/(H,3H)/(1,3H) -> per-gate stacked arrays."""
    w_ih_g = jnp.stack([w_ih[:, :H], w_ih[:, H:2 * H], w_ih[:, 2 * H:]], axis=0)
    w_hh_g = jnp.stack([w_hh[:, :H], w_hh[:, H:2 * H], w_hh[:, 2 * H:]], axis=0)
    # r/z biases can be merged (added pre-activation); n-gate biases must stay
    # separate because b_hn is multiplied by r.
    b = jnp.stack([b_ih[:, :H] + b_hh[:, :H],
                   b_ih[:, H:2 * H] + b_hh[:, H:2 * H],
                   b_ih[:, 2 * H:],
                   b_hh[:, 2 * H:]], axis=0)            # (4, 1, H)
    return w_ih_g, w_hh_g, b


# ----------------------------------------------------------------------------
# Full module forward: out = Linear(Dropout(GRU(x))), returns (out, hidden).
# ----------------------------------------------------------------------------
@jax.jit
def gru_model_forward(x_btd, gru_params, w_lin, b_lin):
    B, T, D = x_btd.shape
    H = gru_params[0][1].shape[0]            # w_hh is (H, 3H)
    L = w_lin.shape[1]
    Lpad = ((L + 127) // 128) * 128          # lane-dense output width

    (w1_ih, w1_hh, b1_ih, b1_hh), (w2_ih, w2_hh, b2_ih, b2_hh) = gru_params
    w1_ih_g, w1_hh_g, b1 = _pack_layer(w1_ih, w1_hh, b1_ih, b1_hh, H)
    w2_ih_g, w2_hh_g, b2 = _pack_layer(w2_ih, w2_hh, b2_ih, b2_hh, H)

    w_lin_p = jnp.zeros((H, Lpad), jnp.float32).at[:, :L].set(w_lin)
    b_lin_p = jnp.zeros((1, Lpad), jnp.float32).at[:, :L].set(b_lin)

    # Time-major flatten (row t*B + b). TODO(synk): this tiny (B,T,D) transpose
    # stays in the XLA wrapper since the fused kernel has no per-timestep grid
    # whose index_map could absorb it.
    x_flat = jnp.transpose(x_btd, (1, 0, 2)).reshape(T * B, D)

    kernel = functools.partial(gru_fused_kernel, T=T, B=B)

    out_p, hidden = pl.pallas_call(
        kernel,
        out_shape=(jax.ShapeDtypeStruct((T * B, Lpad), jnp.float32),
                   jax.ShapeDtypeStruct((2, B, H), jnp.float32)),
        grid_spec=pltpu.PrefetchScalarGridSpec(
            num_scalar_prefetch=0,
            grid=(1,),
            in_specs=[
                pl.BlockSpec((T * B, D), lambda i: (0, 0)),
                pl.BlockSpec((3, D, H), lambda i: (0, 0, 0)),
                pl.BlockSpec((3, H, H), lambda i: (0, 0, 0)),
                pl.BlockSpec((4, 1, H), lambda i: (0, 0, 0)),
                pl.BlockSpec((3, H, H), lambda i: (0, 0, 0)),
                pl.BlockSpec((3, H, H), lambda i: (0, 0, 0)),
                pl.BlockSpec((4, 1, H), lambda i: (0, 0, 0)),
                pl.BlockSpec((H, Lpad), lambda i: (0, 0)),
                pl.BlockSpec((1, Lpad), lambda i: (0, 0)),
            ],
            out_specs=(pl.BlockSpec((T * B, Lpad), lambda i: (0, 0)),
                       pl.BlockSpec((2, B, H), lambda i: (0, 0, 0))),
            scratch_shapes=[pltpu.VMEM((T * B, H), jnp.float32)] * 5,
        ),
        compiler_params=pltpu.CompilerParams(
            dimension_semantics=("arbitrary",)),
    )(x_flat, w1_ih_g, w1_hh_g, b1, w2_ih_g, w2_hh_g, b2, w_lin_p, b_lin_p)

    # Drop lane padding, back to PyTorch batch_first layout.
    out = out_p[:, :L].reshape(T, B, L).transpose(1, 0, 2)    # (B, T, L)
    return out, hidden


# ----------------------------------------------------------------------------
# Pure-JAX reference (same math, no Pallas) for correctness checking.
# ----------------------------------------------------------------------------
def gru_model_ref(x_btd, gru_params, w_lin, b_lin):
    B, T, _ = x_btd.shape
    layer_in = x_btd
    hiddens = []
    for (w_ih, w_hh, b_ih, b_hh) in gru_params:
        H = w_hh.shape[0]
        h = jnp.zeros((B, H), jnp.float32)
        outs = []
        for t in range(T):
            x_t = layer_in[:, t, :]
            gi = x_t @ w_ih + b_ih
            gh = h @ w_hh + b_hh
            i_r, i_z, i_n = gi[:, :H], gi[:, H:2 * H], gi[:, 2 * H:]
            h_r, h_z, h_n = gh[:, :H], gh[:, H:2 * H], gh[:, 2 * H:]
            r = jax.nn.sigmoid(i_r + h_r)
            z = jax.nn.sigmoid(i_z + h_z)
            n = jnp.tanh(i_n + r * h_n)
            h = (1.0 - z) * n + z * h
            outs.append(h)
        layer_in = jnp.stack(outs, axis=1)           # (B, T, H)
        hiddens.append(h)
    hidden = jnp.stack(hiddens, axis=0)
    out = layer_in @ w_lin + b_lin
    return out, hidden


# ----------------------------------------------------------------------------
# Deterministic parameter init (PyTorch-style uniform(-1/sqrt(H), 1/sqrt(H))).
# ----------------------------------------------------------------------------
def init_params(key, vocab, hidden, num_layers, num_langs):
    k = 1.0 / jnp.sqrt(hidden)
    gru_params = []
    in_dim = vocab
    for _ in range(num_layers):
        key, k1, k2, k3, k4 = jax.random.split(key, 5)
        # stored pre-transposed: (in_features, 3H) / (H, 3H); gate order [r,z,n]
        w_ih = jax.random.uniform(k1, (in_dim, 3 * hidden), jnp.float32, -k, k)
        w_hh = jax.random.uniform(k2, (hidden, 3 * hidden), jnp.float32, -k, k)
        b_ih = jax.random.uniform(k3, (1, 3 * hidden), jnp.float32, -k, k)
        b_hh = jax.random.uniform(k4, (1, 3 * hidden), jnp.float32, -k, k)
        gru_params.append((w_ih, w_hh, b_ih, b_hh))
        in_dim = hidden
    key, k5, k6 = jax.random.split(key, 3)
    kl = 1.0 / jnp.sqrt(hidden)
    w_lin = jax.random.uniform(k5, (hidden, num_langs), jnp.float32, -kl, kl)
    b_lin = jax.random.uniform(k6, (1, num_langs), jnp.float32, -kl, kl)
    return gru_params, w_lin, b_lin


if __name__ == "__main__":
    B, T = 2, 8
    vocab = 16          # vocabulary_size == GRU input feature size
    hidden = 32         # gru_num_hidden (small for the example)
    num_layers = 2      # gru_num_layers
    num_langs = 5

    key = jax.random.PRNGKey(0)
    key, kx = jax.random.split(key)
    x = jax.random.normal(kx, (B, T, vocab), jnp.float32)

    gru_params, w_lin, b_lin = init_params(key, vocab, hidden, num_layers, num_langs)

    out, hid = gru_model_forward(x, gru_params, w_lin, b_lin)
    out = jax.block_until_ready(out)
    hid = jax.block_until_ready(hid)

    out_ref, hid_ref = gru_model_ref(x, gru_params, w_lin, b_lin)

    assert out.shape == (B, T, num_langs), out.shape
    assert hid.shape == (num_layers, B, hidden), hid.shape
    assert jnp.allclose(out, out_ref, atol=1e-4, rtol=1e-4)
    assert jnp.allclose(hid, hid_ref, atol=1e-4, rtol=1e-4)

    print("KERNEL_OK")
</pallas_src>

<mosaic_0001>
module attributes {stable_mosaic.version = 11 : i64} {
  func.func @gru_fused_kernel(%arg0: i32, %arg1: memref<16x16xf32, #tpu.memory_space<vmem>>, %arg2: memref<3x16x32xf32, #tpu.memory_space<vmem>>, %arg3: memref<3x32x32xf32, #tpu.memory_space<vmem>>, %arg4: memref<4x1x32xf32, #tpu.memory_space<vmem>>, %arg5: memref<3x32x32xf32, #tpu.memory_space<vmem>>, %arg6: memref<3x32x32xf32, #tpu.memory_space<vmem>>, %arg7: memref<4x1x32xf32, #tpu.memory_space<vmem>>, %arg8: memref<32x128xf32, #tpu.memory_space<vmem>>, %arg9: memref<1x128xf32, #tpu.memory_space<vmem>>, %arg10: memref<16x128xf32, #tpu.memory_space<vmem>>, %arg11: memref<2x2x32xf32, #tpu.memory_space<vmem>>, %arg12: memref<16x32xf32, #tpu.memory_space<vmem>>, %arg13: memref<16x32xf32, #tpu.memory_space<vmem>>, %arg14: memref<16x32xf32, #tpu.memory_space<vmem>>, %arg15: memref<16x32xf32, #tpu.memory_space<vmem>>, %arg16: memref<16x32xf32, #tpu.memory_space<vmem>>) attributes {dimension_semantics = [#tpu.dimension_semantics<arbitrary>], iteration_bounds = array<i64: 1>, scalar_prefetch = 0 : i64, scratch_operands = 5 : i64, tpu.core_type = #tpu.core_type<tc>, window_params = [{pipeline_mode = #tpu.pipeline_mode<synchronous>, transform_indices = @transform_0, window_bounds = array<i64: 16, 16>}, {pipeline_mode = #tpu.pipeline_mode<synchronous>, transform_indices = @transform_1, window_bounds = array<i64: 3, 16, 32>}, {pipeline_mode = #tpu.pipeline_mode<synchronous>, transform_indices = @transform_2, window_bounds = array<i64: 3, 32, 32>}, {pipeline_mode = #tpu.pipeline_mode<synchronous>, transform_indices = @transform_3, window_bounds = array<i64: 4, 1, 32>}, {pipeline_mode = #tpu.pipeline_mode<synchronous>, transform_indices = @transform_4, window_bounds = array<i64: 3, 32, 32>}, {pipeline_mode = #tpu.pipeline_mode<synchronous>, transform_indices = @transform_5, window_bounds = array<i64: 3, 32, 32>}, {pipeline_mode = #tpu.pipeline_mode<synchronous>, transform_indices = @transform_6, window_bounds = array<i64: 4, 1, 32>}, {pipeline_mode = #tpu.pipeline_mode<synchronous>, transform_indices = @transform_7, window_bounds = array<i64: 32, 128>}, {pipeline_mode = #tpu.pipeline_mode<synchronous>, transform_indices = @transform_8, window_bounds = array<i64: 1, 128>}, {pipeline_mode = #tpu.pipeline_mode<synchronous>, transform_indices = @transform_9, window_bounds = array<i64: 16, 128>}, {pipeline_mode = #tpu.pipeline_mode<synchronous>, transform_indices = @transform_10, window_bounds = array<i64: 2, 2, 32>}]} {
    %c0 = arith.constant 0 : index
    %c0_0 = arith.constant 0 : index
    %0 = vector.load %arg1[%c0, %c0_0] : memref<16x16xf32, #tpu.memory_space<vmem>>, vector<16x16xf32>
    %c0_1 = arith.constant 0 : index
    %c0_2 = arith.constant 0 : index
    %c0_3 = arith.constant 0 : index
    %1 = vector.load %arg2[%c0_1, %c0_2, %c0_3] : memref<3x16x32xf32, #tpu.memory_space<vmem>>, vector<1x16x32xf32>
    %2 = vector.shape_cast %1 : vector<1x16x32xf32> to vector<16x32xf32>
    %cst = arith.constant dense<0.000000e+00> : vector<16x32xf32>
    %3 = tpu.matmul %0, %2, %cst {dimension_numbers = #tpu.dot_dimension_numbers<[1], [0], [0], [1], [0, 0, 1, 1], [], []>} : vector<16x16xf32>, vector<16x32xf32>, vector<16x32xf32> -> vector<16x32xf32>
    %c0_4 = arith.constant 0 : index
    %c0_5 = arith.constant 0 : index
    %c0_6 = arith.constant 0 : index
    %4 = vector.load %arg4[%c0_4, %c0_5, %c0_6] : memref<4x1x32xf32, #tpu.memory_space<vmem>>, vector<1x1x32xf32>
    %5 = vector.shape_cast %4 : vector<1x1x32xf32> to vector<1x32xf32>
    %6 = vector.broadcast %5 : vector<1x32xf32> to vector<16x32xf32>
    %7 = arith.addf %3, %6 : vector<16x32xf32>
    %c0_7 = arith.constant 0 : index
    %c0_8 = arith.constant 0 : index
    %8 = vector.load %arg12[%c0_7, %c0_8] : memref<16x32xf32, #tpu.memory_space<vmem>>, vector<16x32xf32>
    tpu.vector_store %arg12[%c0_7, %c0_8], %7 {strides = array<i32>} : memref<16x32xf32, #tpu.memory_space<vmem>>, vector<16x32xf32>,
    %c1 = arith.constant 1 : index
    %c0_9 = arith.constant 0 : index
    %c0_10 = arith.constant 0 : index
    %9 = vector.load %arg2[%c1, %c0_9, %c0_10] : memref<3x16x32xf32, #tpu.memory_space<vmem>>, vector<1x16x32xf32>
    %10 = vector.shape_cast %9 : vector<1x16x32xf32> to vector<16x32xf32>
    %cst_11 = arith.constant dense<0.000000e+00> : vector<16x32xf32>
    %11 = tpu.matmul %0, %10, %cst_11 {dimension_numbers = #tpu.dot_dimension_numbers<[1], [0], [0], [1], [0, 0, 1, 1], [], []>} : vector<16x16xf32>, vector<16x32xf32>, vector<16x32xf32> -> vector<16x32xf32>
    %c1_12 = arith.constant 1 : index
    %c0_13 = arith.constant 0 : index
    %c0_14 = arith.constant 0 : index
    %12 = vector.load %arg4[%c1_12, %c0_13, %c0_14] : memref<4x1x32xf32, #tpu.memory_space<vmem>>, vector<1x1x32xf32>
    %13 = vector.shape_cast %12 : vector<1x1x32xf32> to vector<1x32xf32>
    %14 = vector.broadcast %13 : vector<1x32xf32> to vector<16x32xf32>
    %15 = arith.addf %11, %14 : vector<16x32xf32>
    %c0_15 = arith.constant 0 : index
    %c0_16 = arith.constant 0 : index
    %16 = vector.load %arg13[%c0_15, %c0_16] : memref<16x32xf32, #tpu.memory_space<vmem>>, vector<16x32xf32>
    tpu.vector_store %arg13[%c0_15, %c0_16], %15 {strides = array<i32>} : memref<16x32xf32, #tpu.memory_space<vmem>>, vector<16x32xf32>,
    %c2 = arith.constant 2 : index
    %c0_17 = arith.constant 0 : index
    %c0_18 = arith.constant 0 : index
    %17 = vector.load %arg2[%c2, %c0_17, %c0_18] : memref<3x16x32xf32, #tpu.memory_space<vmem>>, vector<1x16x32xf32>
    %18 = vector.shape_cast %17 : vector<1x16x32xf32> to vector<16x32xf32>
    %cst_19 = arith.constant dense<0.000000e+00> : vector<16x32xf32>
    %19 = tpu.matmul %0, %18, %cst_19 {dimension_numbers = #tpu.dot_dimension_numbers<[1], [0], [0], [1], [0, 0, 1, 1], [], []>} : vector<16x16xf32>, vector<16x32xf32>, vector<16x32xf32> -> vector<16x32xf32>
    %c2_20 = arith.constant 2 : index
    %c0_21 = arith.constant 0 : index
    %c0_22 = arith.constant 0 : index
    %20 = vector.load %arg4[%c2_20, %c0_21, %c0_22] : memref<4x1x32xf32, #tpu.memory_space<vmem>>, vector<1x1x32xf32>
    %21 = vector.shape_cast %20 : vector<1x1x32xf32> to vector<1x32xf32>
    %22 = vector.broadcast %21 : vector<1x32xf32> to vector<16x32xf32>
    %23 = arith.addf %19, %22 : vector<16x32xf32>
    %c0_23 = arith.constant 0 : index
    %c0_24 = arith.constant 0 : index
    %24 = vector.load %arg14[%c0_23, %c0_24] : memref<16x32xf32, #tpu.memory_space<vmem>>, vector<16x32xf32>
    tpu.vector_store %arg14[%c0_23, %c0_24], %23 {strides = array<i32>} : memref<16x32xf32, #tpu.memory_space<vmem>>, vector<16x32xf32>,
    %c0_25 = arith.constant 0 : index
    %c0_26 = arith.constant 0 : index
    %c0_27 = arith.constant 0 : index
    %25 = vector.load %arg3[%c0_25, %c0_26, %c0_27] : memref<3x32x32xf32, #tpu.memory_space<vmem>>, vector<1x32x32xf32>
    %26 = vector.shape_cast %25 : vector<1x32x32xf32> to vector<32x32xf32>
    %c1_28 = arith.constant 1 : index
    %c0_29 = arith.constant 0 : index
    %c0_30 = arith.constant 0 : index
    %27 = vector.load %arg3[%c1_28, %c0_29, %c0_30] : memref<3x32x32xf32, #tpu.memory_space<vmem>>, vector<1x32x32xf32>
    %28 = vector.shape_cast %27 : vector<1x32x32xf32> to vector<32x32xf32>
    %c2_31 = arith.constant 2 : index
    %c0_32 = arith.constant 0 : index
    %c0_33 = arith.constant 0 : index
    %29 = vector.load %arg3[%c2_31, %c0_32, %c0_33] : memref<3x32x32xf32, #tpu.memory_space<vmem>>, vector<1x32x32xf32>
    %30 = vector.shape_cast %29 : vector<1x32x32xf32> to vector<32x32xf32>
    %c3 = arith.constant 3 : index
    %c0_34 = arith.constant 0 : index
    %c0_35 = arith.constant 0 : index
    %31 = vector.load %arg4[%c3, %c0_34, %c0_35] : memref<4x1x32xf32, #tpu.memory_space<vmem>>, vector<1x1x32xf32>
    %32 = vector.shape_cast %31 : vector<1x1x32xf32> to vector<1x32xf32>
    %cst_36 = arith.constant 0.000000e+00 : f32
    %33 = vector.broadcast %cst_36 : f32 to vector<2x32xf32>
    %c0_i32 = arith.constant 0 : i32
    %c2_i32 = arith.constant 2 : i32
    %34 = arith.muli %c0_i32, %c2_i32 : i32
    %35 = arith.index_cast %34 : i32 to index
    %c0_37 = arith.constant 0 : index
    %36 = vector.load %arg12[%35, %c0_37] : memref<16x32xf32, #tpu.memory_space<vmem>>, vector<2x32xf32>
    %37 = arith.index_cast %34 : i32 to index
    %c0_38 = arith.constant 0 : index
    %38 = vector.load %arg13[%37, %c0_38] : memref<16x32xf32, #tpu.memory_space<vmem>>, vector<2x32xf32>
    %39 = arith.index_cast %34 : i32 to index
    %c0_39 = arith.constant 0 : index
    %40 = vector.load %arg14[%39, %c0_39] : memref<16x32xf32, #tpu.memory_space<vmem>>, vector<2x32xf32>
    %cst_40 = arith.constant dense<0.000000e+00> : vector<2x32xf32>
    %41 = tpu.matmul %33, %26, %cst_40 {dimension_numbers = #tpu.dot_dimension_numbers<[1], [0], [0], [1], [0, 0, 1, 1], [], []>} : vector<2x32xf32>, vector<32x32xf32>, vector<2x32xf32> -> vector<2x32xf32>
    %cst_41 = arith.constant dense<0.000000e+00> : vector<2x32xf32>
    %42 = tpu.matmul %33, %28, %cst_41 {dimension_numbers = #tpu.dot_dimension_numbers<[1], [0], [0], [1], [0, 0, 1, 1], [], []>} : vector<2x32xf32>, vector<32x32xf32>, vector<2x32xf32> -> vector<2x32xf32>
    %cst_42 = arith.constant dense<0.000000e+00> : vector<2x32xf32>
    %43 = tpu.matmul %33, %30, %cst_42 {dimension_numbers = #tpu.dot_dimension_numbers<[1], [0], [0], [1], [0, 0, 1, 1], [], []>} : vector<2x32xf32>, vector<32x32xf32>, vector<2x32xf32> -> vector<2x32xf32>
    %44 = vector.broadcast %32 : vector<1x32xf32> to vector<2x32xf32>
    %45 = arith.addf %43, %44 : vector<2x32xf32>
    %46 = arith.addf %36, %41 : vector<2x32xf32>
    %47 = arith.negf %46 : vector<2x32xf32>
    %48 = math.exp %47 : vector<2x32xf32>
    %cst_43 = arith.constant 1.000000e+00 : f32
    %49 = vector.broadcast %cst_43 : f32 to vector<2x32xf32>
    %50 = arith.addf %49, %48 : vector<2x32xf32>
    %51 = arith.divf %49, %50 : vector<2x32xf32>
    %52 = arith.addf %38, %42 : vector<2x32xf32>
    %53 = arith.negf %52 : vector<2x32xf32>
    %54 = math.exp %53 : vector<2x32xf32>
    %cst_44 = arith.constant 1.000000e+00 : f32
    %55 = vector.broadcast %cst_44 : f32 to vector<2x32xf32>
    %56 = arith.addf %55, %54 : vector<2x32xf32>
    %57 = arith.divf %55, %56 : vector<2x32xf32>
    %58 = arith.mulf %51, %45 : vector<2x32xf32>
    %59 = arith.addf %40, %58 : vector<2x32xf32>
    %60 = math.tanh %59 : vector<2x32xf32>
    %cst_45 = arith.constant 1.000000e+00 : f32
    %61 = vector.broadcast %cst_45 : f32 to vector<2x32xf32>
    %62 = arith.subf %61, %57 : vector<2x32xf32>
    %63 = arith.mulf %62, %60 : vector<2x32xf32>
    %64 = arith.mulf %57, %33 : vector<2x32xf32>
    %65 = arith.addf %63, %64 : vector<2x32xf32>
    %66 = arith.index_cast %34 : i32 to index
    %c0_46 = arith.constant 0 : index
    %67 = vector.load %arg15[%66, %c0_46] : memref<16x32xf32, #tpu.memory_space<vmem>>, vector<2x32xf32>
    tpu.vector_store %arg15[%66, %c0_46], %65 {strides = array<i32>} : memref<16x32xf32, #tpu.memory_space<vmem>>, vector<2x32xf32>,
    %c1_i32 = arith.constant 1 : i32
    %c2_i32_47 = arith.constant 2 : i32
    %68 = arith.muli %c1_i32, %c2_i32_47 : i32
    %69 = arith.index_cast %68 : i32 to index
    %c0_48 = arith.constant 0 : index
    %70 = vector.load %arg12[%69, %c0_48] : memref<16x32xf32, #tpu.memory_space<vmem>>, vector<2x32xf32>
    %71 = arith.index_cast %68 : i32 to index
    %c0_49 = arith.constant 0 : index
    %72 = vector.load %arg13[%71, %c0_49] : memref<16x32xf32, #tpu.memory_space<vmem>>, vector<2x32xf32>
    %73 = arith.index_cast %68 : i32 to index
    %c0_50 = arith.constant 0 : index
    %74 = vector.load %arg14[%73, %c0_50] : memref<16x32xf32, #tpu.memory_space<vmem>>, vector<2x32xf32>
    %cst_51 = arith.constant dense<0.000000e+00> : vector<2x32xf32>
    %75 = tpu.matmul %65, %26, %cst_51 {dimension_numbers = #tpu.dot_dimension_numbers<[1], [0], [0], [1], [0, 0, 1, 1], [], []>} : vector<2x32xf32>, vector<32x32xf32>, vector<2x32xf32> -> vector<2x32xf32>
    %cst_52 = arith.constant dense<0.000000e+00> : vector<2x32xf32>
    %76 = tpu.matmul %65, %28, %cst_52 {dimension_numbers = #tpu.dot_dimension_numbers<[1], [0], [0], [1], [0, 0, 1, 1], [], []>} : vector<2x32xf32>, vector<32x32xf32>, vector<2x32xf32> -> vector<2x32xf32>
    %cst_53 = arith.constant dense<0.000000e+00> : vector<2x32xf32>
    %77 = tpu.matmul %65, %30, %cst_53 {dimension_numbers = #tpu.dot_dimension_numbers<[1], [0], [0], [1], [0, 0, 1, 1], [], []>} : vector<2x32xf32>, vector<32x32xf32>, vector<2x32xf32> -> vector<2x32xf32>
    %78 = vector.broadcast %32 : vector<1x32xf32> to vector<2x32xf32>
    %79 = arith.addf %77, %78 : vector<2x32xf32>
    %80 = arith.addf %70, %75 : vector<2x32xf32>
    %81 = arith.negf %80 : vector<2x32xf32>
    %82 = math.exp %81 : vector<2x32xf32>
    %cst_54 = arith.constant 1.000000e+00 : f32
    %83 = vector.broadcast %cst_54 : f32 to vector<2x32xf32>
    %84 = arith.addf %83, %82 : vector<2x32xf32>
    %85 = arith.divf %83, %84 : vector<2x32xf32>
    %86 = arith.addf %72, %76 : vector<2x32xf32>
    %87 = arith.negf %86 : vector<2x32xf32>
    %88 = math.exp %87 : vector<2x32xf32>
    %cst_55 = arith.constant 1.000000e+00 : f32
    %89 = vector.broadcast %cst_55 : f32 to vector<2x32xf32>
    %90 = arith.addf %89, %88 : vector<2x32xf32>
    %91 = arith.divf %89, %90 : vector<2x32xf32>
    %92 = arith.mulf %85, %79 : vector<2x32xf32>
    %93 = arith.addf %74, %92 : vector<2x32xf32>
    %94 = math.tanh %93 : vector<2x32xf32>
    %cst_56 = arith.constant 1.000000e+00 : f32
    %95 = vector.broadcast %cst_56 : f32 to vector<2x32xf32>
    %96 = arith.subf %95, %91 : vector<2x32xf32>
    %97 = arith.mulf %96, %94 : vector<2x32xf32>
    %98 = arith.mulf %91, %65 : vector<2x32xf32>
    %99 = arith.addf %97, %98 : vector<2x32xf32>
    %100 = arith.index_cast %68 : i32 to index
    %c0_57 = arith.constant 0 : index
    %101 = vector.load %arg15[%100, %c0_57] : memref<16x32xf32, #tpu.memory_space<vmem>>, vector<2x32xf32>
    tpu.vector_store %arg15[%100, %c0_57], %99 {strides = array<i32>} : memref<16x32xf32, #tpu.memory_space<vmem>>, vector<2x32xf32>,
    %c2_i32_58 = arith.constant 2 : i32
    %c2_i32_59 = arith.constant 2 : i32
    %102 = arith.muli %c2_i32_58, %c2_i32_59 : i32
    %103 = arith.index_cast %102 : i32 to index
    %c0_60 = arith.constant 0 : index
    %104 = vector.load %arg12[%103, %c0_60] : memref<16x32xf32, #tpu.memory_space<vmem>>, vector<2x32xf32>
    %105 = arith.index_cast %102 : i32 to index
    %c0_61 = arith.constant 0 : index
    %106 = vector.load %arg13[%105, %c0_61] : memref<16x32xf32, #tpu.memory_space<vmem>>, vector<2x32xf32>
    %107 = arith.index_cast %102 : i32 to index
    %c0_62 = arith.constant 0 : index
    %108 = vector.load %arg14[%107, %c0_62] : memref<16x32xf32, #tpu.memory_space<vmem>>, vector<2x32xf32>
    %cst_63 = arith.constant dense<0.000000e+00> : vector<2x32xf32>
    %109 = tpu.matmul %99, %26, %cst_63 {dimension_numbers = #tpu.dot_dimension_numbers<[1], [0], [0], [1], [0, 0, 1, 1], [], []>} : vector<2x32xf32>, vector<32x32xf32>, vector<2x32xf32> -> vector<2x32xf32>
    %cst_64 = arith.constant dense<0.000000e+00> : vector<2x32xf32>
    %110 = tpu.matmul %99, %28, %cst_64 {dimension_numbers = #tpu.dot_dimension_numbers<[1], [0], [0], [1], [0, 0, 1, 1], [], []>} : vector<2x32xf32>, vector<32x32xf32>, vector<2x32xf32> -> vector<2x32xf32>
    %cst_65 = arith.constant dense<0.000000e+00> : vector<2x32xf32>
    %111 = tpu.matmul %99, %30, %cst_65 {dimension_numbers = #tpu.dot_dimension_numbers<[1], [0], [0], [1], [0, 0, 1, 1], [], []>} : vector<2x32xf32>, vector<32x32xf32>, vector<2x32xf32> -> vector<2x32xf32>
    %112 = vector.broadcast %32 : vector<1x32xf32> to vector<2x32xf32>
    %113 = arith.addf %111, %112 : vector<2x32xf32>
    %114 = arith.addf %104, %109 : vector<2x32xf32>
    %115 = arith.negf %114 : vector<2x32xf32>
    %116 = math.exp %115 : vector<2x32xf32>
    %cst_66 = arith.constant 1.000000e+00 : f32
    %117 = vector.broadcast %cst_66 : f32 to vector<2x32xf32>
    %118 = arith.addf %117, %116 : vector<2x32xf32>
    %119 = arith.divf %117, %118 : vector<2x32xf32>
    %120 = arith.addf %106, %110 : vector<2x32xf32>
    %121 = arith.negf %120 : vector<2x32xf32>
    %122 = math.exp %121 : vector<2x32xf32>
    %cst_67 = arith.constant 1.000000e+00 : f32
    %123 = vector.broadcast %cst_67 : f32 to vector<2x32xf32>
    %124 = arith.addf %123, %122 : vector<2x32xf32>
    %125 = arith.divf %123, %124 : vector<2x32xf32>
    %126 = arith.mulf %119, %113 : vector<2x32xf32>
    %127 = arith.addf %108, %126 : vector<2x32xf32>
    %128 = math.tanh %127 : vector<2x32xf32>
    %cst_68 = arith.constant 1.000000e+00 : f32
    %129 = vector.broadcast %cst_68 : f32 to vector<2x32xf32>
    %130 = arith.subf %129, %125 : vector<2x32xf32>
    %131 = arith.mulf %130, %128 : vector<2x32xf32>
    %132 = arith.mulf %125, %99 : vector<2x32xf32>
    %133 = arith.addf %131, %132 : vector<2x32xf32>
    %134 = arith.index_cast %102 : i32 to index
    %c0_69 = arith.constant 0 : index
    %135 = vector.load %arg15[%134, %c0_69] : memref<16x32xf32, #tpu.memory_space<vmem>>, vector<2x32xf32>
    tpu.vector_store %arg15[%134, %c0_69], %133 {strides = array<i32>} : memref<16x32xf32, #tpu.memory_space<vmem>>, vector<2x32xf32>,
    %c3_i32 = arith.constant 3 : i32
    %c2_i32_70 = arith.constant 2 : i32
    %136 = arith.muli %c3_i32, %c2_i32_70 : i32
    %137 = arith.index_cast %136 : i32 to index
    %c0_71 = arith.constant 0 : index
    %138 = vector.load %arg12[%137, %c0_71] : memref<16x32xf32, #tpu.memory_space<vmem>>, vector<2x32xf32>
    %139 = arith.index_cast %136 : i32 to index
    %c0_72 = arith.constant 0 : index
    %140 = vector.load %arg13[%139, %c0_72] : memref<16x32xf32, #tpu.memory_space<vmem>>, vector<2x32xf32>
    %141 = arith.index_cast %136 : i32 to index
    %c0_73 = arith.constant 0 : index
    %142 = vector.load %arg14[%141, %c0_73] : memref<16x32xf32, #tpu.memory_space<vmem>>, vector<2x32xf32>
    %cst_74 = arith.constant dense<0.000000e+00> : vector<2x32xf32>
    %143 = tpu.matmul %133, %26, %cst_74 {dimension_numbers = #tpu.dot_dimension_numbers<[1], [0], [0], [1], [0, 0, 1, 1], [], []>} : vector<2x32xf32>, vector<32x32xf32>, vector<2x32xf32> -> vector<2x32xf32>
    %cst_75 = arith.constant dense<0.000000e+00> : vector<2x32xf32>
    %144 = tpu.matmul %133, %28, %cst_75 {dimension_numbers = #tpu.dot_dimension_numbers<[1], [0], [0], [1], [0, 0, 1, 1], [], []>} : vector<2x32xf32>, vector<32x32xf32>, vector<2x32xf32> -> vector<2x32xf32>
    %cst_76 = arith.constant dense<0.000000e+00> : vector<2x32xf32>
    %145 = tpu.matmul %133, %30, %cst_76 {dimension_numbers = #tpu.dot_dimension_numbers<[1], [0], [0], [1], [0, 0, 1, 1], [], []>} : vector<2x32xf32>, vector<32x32xf32>, vector<2x32xf32> -> vector<2x32xf32>
    %146 = vector.broadcast %32 : vector<1x32xf32> to vector<2x32xf32>
    %147 = arith.addf %145, %146 : vector<2x32xf32>
    %148 = arith.addf %138, %143 : vector<2x32xf32>
    %149 = arith.negf %148 : vector<2x32xf32>
    %150 = math.exp %149 : vector<2x32xf32>
    %cst_77 = arith.constant 1.000000e+00 : f32
    %151 = vector.broadcast %cst_77 : f32 to vector<2x32xf32>
    %152 = arith.addf %151, %150 : vector<2x32xf32>
    %153 = arith.divf %151, %152 : vector<2x32xf32>
    %154 = arith.addf %140, %144 : vector<2x32xf32>
    %155 = arith.negf %154 : vector<2x32xf32>
    %156 = math.exp %155 : vector<2x32xf32>
    %cst_78 = arith.constant 1.000000e+00 : f32
    %157 = vector.broadcast %cst_78 : f32 to vector<2x32xf32>
    %158 = arith.addf %157, %156 : vector<2x32xf32>
    %159 = arith.divf %157, %158 : vector<2x32xf32>
    %160 = arith.mulf %153, %147 : vector<2x32xf32>
    %161 = arith.addf %142, %160 : vector<2x32xf32>
    %162 = math.tanh %161 : vector<2x32xf32>
    %cst_79 = arith.constant 1.000000e+00 : f32
    %163 = vector.broadcast %cst_79 : f32 to vector<2x32xf32>
    %164 = arith.subf %163, %159 : vector<2x32xf32>
    %165 = arith.mulf %164, %162 : vector<2x32xf32>
    %166 = arith.mulf %159, %133 : vector<2x32xf32>
    %167 = arith.addf %165, %166 : vector<2x32xf32>
    %168 = arith.index_cast %136 : i32 to index
    %c0_80 = arith.constant 0 : index
    %169 = vector.load %arg15[%168, %c0_80] : memref<16x32xf32, #tpu.memory_space<vmem>>, vector<2x32xf32>
    tpu.vector_store %arg15[%168, %c0_80], %167 {strides = array<i32>} : memref<16x32xf32, #tpu.memory_space<vmem>>, vector<2x32xf32>,
    %c4_i32 = arith.constant 4 : i32
    %c2_i32_81 = arith.constant 2 : i32
    %170 = arith.muli %c4_i32, %c2_i32_81 : i32
    %171 = arith.index_cast %170 : i32 to index
    %c0_82 = arith.constant 0 : index
    %172 = vector.load %arg12[%171, %c0_82] : memref<16x32xf32, #tpu.memory_space<vmem>>, vector<2x32xf32>
    %173 = arith.index_cast %170 : i32 to index
    %c0_83 = arith.constant 0 : index
    %174 = vector.load %arg13[%173, %c0_83] : memref<16x32xf32, #tpu.memory_space<vmem>>, vector<2x32xf32>
    %175 = arith.index_cast %170 : i32 to index
    %c0_84 = arith.constant 0 : index
    %176 = vector.load %arg14[%175, %c0_84] : memref<16x32xf32, #tpu.memory_space<vmem>>, vector<2x32xf32>
    %cst_85 = arith.constant dense<0.000000e+00> : vector<2x32xf32>
    %177 = tpu.matmul %167, %26, %cst_85 {dimension_numbers = #tpu.dot_dimension_numbers<[1], [0], [0], [1], [0, 0, 1, 1], [], []>} : vector<2x32xf32>, vector<32x32xf32>, vector<2x32xf32> -> vector<2x32xf32>
    %cst_86 = arith.constant dense<0.000000e+00> : vector<2x32xf32>
    %178 = tpu.matmul %167, %28, %cst_86 {dimension_numbers = #tpu.dot_dimension_numbers<[1], [0], [0], [1], [0, 0, 1, 1], [], []>} : vector<2x32xf32>, vector<32x32xf32>, vector<2x32xf32> -> vector<2x32xf32>
    %cst_87 = arith.constant dense<0.000000e+00> : vector<2x32xf32>
    %179 = tpu.matmul %167, %30, %cst_87 {dimension_numbers = #tpu.dot_dimension_numbers<[1], [0], [0], [1], [0, 0, 1, 1], [], []>} : vector<2x32xf32>, vector<32x32xf32>, vector<2x32xf32> -> vector<2x32xf32>
    %180 = vector.broadcast %32 : vector<1x32xf32> to vector<2x32xf32>
    %181 = arith.addf %179, %180 : vector<2x32xf32>
    %182 = arith.addf %172, %177 : vector<2x32xf32>
    %183 = arith.negf %182 : vector<2x32xf32>
    %184 = math.exp %183 : vector<2x32xf32>
    %cst_88 = arith.constant 1.000000e+00 : f32
    %185 = vector.broadcast %cst_88 : f32 to vector<2x32xf32>
    %186 = arith.addf %185, %184 : vector<2x32xf32>
    %187 = arith.divf %185, %186 : vector<2x32xf32>
    %188 = arith.addf %174, %178 : vector<2x32xf32>
    %189 = arith.negf %188 : vector<2x32xf32>
    %190 = math.exp %189 : vector<2x32xf32>
    %cst_89 = arith.constant 1.000000e+00 : f32
    %191 = vector.broadcast %cst_89 : f32 to vector<2x32xf32>
    %192 = arith.addf %191, %190 : vector<2x32xf32>
    %193 = arith.divf %191, %192 : vector<2x32xf32>
    %194 = arith.mulf %187, %181 : vector<2x32xf32>
    %195 = arith.addf %176, %194 : vector<2x32xf32>
    %196 = math.tanh %195 : vector<2x32xf32>
    %cst_90 = arith.constant 1.000000e+00 : f32
    %197 = vector.broadcast %cst_90 : f32 to vector<2x32xf32>
    %198 = arith.subf %197, %193 : vector<2x32xf32>
    %199 = arith.mulf %198, %196 : vector<2x32xf32>
    %200 = arith.mulf %193, %167 : vector<2x32xf32>
    %201 = arith.addf %199, %200 : vector<2x32xf32>
    %202 = arith.index_cast %170 : i32 to index
    %c0_91 = arith.constant 0 : index
    %203 = vector.load %arg15[%202, %c0_91] : memref<16x32xf32, #tpu.memory_space<vmem>>, vector<2x32xf32>
    tpu.vector_store %arg15[%202, %c0_91], %201 {strides = array<i32>} : memref<16x32xf32, #tpu.memory_space<vmem>>, vector<2x32xf32>,
    %c5_i32 = arith.constant 5 : i32
    %c2_i32_92 = arith.constant 2 : i32
    %204 = arith.muli %c5_i32, %c2_i32_92 : i32
    %205 = arith.index_cast %204 : i32 to index
    %c0_93 = arith.constant 0 : index
    %206 = vector.load %arg12[%205, %c0_93] : memref<16x32xf32, #tpu.memory_space<vmem>>, vector<2x32xf32>
    %207 = arith.index_cast %204 : i32 to index
    %c0_94 = arith.constant 0 : index
    %208 = vector.load %arg13[%207, %c0_94] : memref<16x32xf32, #tpu.memory_space<vmem>>, vector<2x32xf32>
    %209 = arith.index_cast %204 : i32 to index
    %c0_95 = arith.constant 0 : index
    %210 = vector.load %arg14[%209, %c0_95] : memref<16x32xf32, #tpu.memory_space<vmem>>, vector<2x32xf32>
    %cst_96 = arith.constant dense<0.000000e+00> : vector<2x32xf32>
    %211 = tpu.matmul %201, %26, %cst_96 {dimension_numbers = #tpu.dot_dimension_numbers<[1], [0], [0], [1], [0, 0, 1, 1], [], []>} : vector<2x32xf32>, vector<32x32xf32>, vector<2x32xf32> -> vector<2x32xf32>
    %cst_97 = arith.constant dense<0.000000e+00> : vector<2x32xf32>
    %212 = tpu.matmul %201, %28, %cst_97 {dimension_numbers = #tpu.dot_dimension_numbers<[1], [0], [0], [1], [0, 0, 1, 1], [], []>} : vector<2x32xf32>, vector<32x32xf32>, vector<2x32xf32> -> vector<2x32xf32>
    %cst_98 = arith.constant dense<0.000000e+00> : vector<2x32xf32>
    %213 = tpu.matmul %201, %30, %cst_98 {dimension_numbers = #tpu.dot_dimension_numbers<[1], [0], [0], [1], [0, 0, 1, 1], [], []>} : vector<2x32xf32>, vector<32x32xf32>, vector<2x32xf32> -> vector<2x32xf32>
    %214 = vector.broadcast %32 : vector<1x32xf32> to vector<2x32xf32>
    %215 = arith.addf %213, %214 : vector<2x32xf32>
    %216 = arith.addf %206, %211 : vector<2x32xf32>
    %217 = arith.negf %216 : vector<2x32xf32>
    %218 = math.exp %217 : vector<2x32xf32>
    %cst_99 = arith.constant 1.000000e+00 : f32
    %219 = vector.broadcast %cst_99 : f32 to vector<2x32xf32>
    %220 = arith.addf %219, %218 : vector<2x32xf32>
    %221 = arith.divf %219, %220 : vector<2x32xf32>
    %222 = arith.addf %208, %212 : vector<2x32xf32>
    %223 = arith.negf %222 : vector<2x32xf32>
    %224 = math.exp %223 : vector<2x32xf32>
    %cst_100 = arith.constant 1.000000e+00 : f32
    %225 = vector.broadcast %cst_100 : f32 to vector<2x32xf32>
    %226 = arith.addf %225, %224 : vector<2x32xf32>
    %227 = arith.divf %225, %226 : vector<2x32xf32>
    %228 = arith.mulf %221, %215 : vector<2x32xf32>
    %229 = arith.addf %210, %228 : vector<2x32xf32>
    %230 = math.tanh %229 : vector<2x32xf32>
    %cst_101 = arith.constant 1.000000e+00 : f32
    %231 = vector.broadcast %cst_101 : f32 to vector<2x32xf32>
    %232 = arith.subf %231, %227 : vector<2x32xf32>
    %233 = arith.mulf %232, %230 : vector<2x32xf32>
    %234 = arith.mulf %227, %201 : vector<2x32xf32>
    %235 = arith.addf %233, %234 : vector<2x32xf32>
    %236 = arith.index_cast %204 : i32 to index
    %c0_102 = arith.constant 0 : index
    %237 = vector.load %arg15[%236, %c0_102] : memref<16x32xf32, #tpu.memory_space<vmem>>, vector<2x32xf32>
    tpu.vector_store %arg15[%236, %c0_102], %235 {strides = array<i32>} : memref<16x32xf32, #tpu.memory_space<vmem>>, vector<2x32xf32>,
    %c6_i32 = arith.constant 6 : i32
    %c2_i32_103 = arith.constant 2 : i32
    %238 = arith.muli %c6_i32, %c2_i32_103 : i32
    %239 = arith.index_cast %238 : i32 to index
    %c0_104 = arith.constant 0 : index
    %240 = vector.load %arg12[%239, %c0_104] : memref<16x32xf32, #tpu.memory_space<vmem>>, vector<2x32xf32>
    %241 = arith.index_cast %238 : i32 to index
    %c0_105 = arith.constant 0 : index
    %242 = vector.load %arg13[%241, %c0_105] : memref<16x32xf32, #tpu.memory_space<vmem>>, vector<2x32xf32>
    %243 = arith.index_cast %238 : i32 to index
    %c0_106 = arith.constant 0 : index
    %244 = vector.load %arg14[%243, %c0_106] : memref<16x32xf32, #tpu.memory_space<vmem>>, vector<2x32xf32>
    %cst_107 = arith.constant dense<0.000000e+00> : vector<2x32xf32>
    %245 = tpu.matmul %235, %26, %cst_107 {dimension_numbers = #tpu.dot_dimension_numbers<[1], [0], [0], [1], [0, 0, 1, 1], [], []>} : vector<2x32xf32>, vector<32x32xf32>, vector<2x32xf32> -> vector<2x32xf32>
    %cst_108 = arith.constant dense<0.000000e+00> : vector<2x32xf32>
    %246 = tpu.matmul %235, %28, %cst_108 {dimension_numbers = #tpu.dot_dimension_numbers<[1], [0], [0], [1], [0, 0, 1, 1], [], []>} : vector<2x32xf32>, vector<32x32xf32>, vector<2x32xf32> -> vector<2x32xf32>
    %cst_109 = arith.constant dense<0.000000e+00> : vector<2x32xf32>
    %247 = tpu.matmul %235, %30, %cst_109 {dimension_numbers = #tpu.dot_dimension_numbers<[1], [0], [0], [1], [0, 0, 1, 1], [], []>} : vector<2x32xf32>, vector<32x32xf32>, vector<2x32xf32> -> vector<2x32xf32>
    %248 = vector.broadcast %32 : vector<1x32xf32> to vector<2x32xf32>
    %249 = arith.addf %247, %248 : vector<2x32xf32>
    %250 = arith.addf %240, %245 : vector<2x32xf32>
    %251 = arith.negf %250 : vector<2x32xf32>
    %252 = math.exp %251 : vector<2x32xf32>
    %cst_110 = arith.constant 1.000000e+00 : f32
    %253 = vector.broadcast %cst_110 : f32 to vector<2x32xf32>
    %254 = arith.addf %253, %252 : vector<2x32xf32>
    %255 = arith.divf %253, %254 : vector<2x32xf32>
    %256 = arith.addf %242, %246 : vector<2x32xf32>
    %257 = arith.negf %256 : vector<2x32xf32>
    %258 = math.exp %257 : vector<2x32xf32>
    %cst_111 = arith.constant 1.000000e+00 : f32
    %259 = vector.broadcast %cst_111 : f32 to vector<2x32xf32>
    %260 = arith.addf %259, %258 : vector<2x32xf32>
    %261 = arith.divf %259, %260 : vector<2x32xf32>
    %262 = arith.mulf %255, %249 : vector<2x32xf32>
    %263 = arith.addf %244, %262 : vector<2x32xf32>
    %264 = math.tanh %263 : vector<2x32xf32>
    %cst_112 = arith.constant 1.000000e+00 : f32
    %265 = vector.broadcast %cst_112 : f32 to vector<2x32xf32>
    %266 = arith.subf %265, %261 : vector<2x32xf32>
    %267 = arith.mulf %266, %264 : vector<2x32xf32>
    %268 = arith.mulf %261, %235 : vector<2x32xf32>
    %269 = arith.addf %267, %268 : vector<2x32xf32>
    %270 = arith.index_cast %238 : i32 to index
    %c0_113 = arith.constant 0 : index
    %271 = vector.load %arg15[%270, %c0_113] : memref<16x32xf32, #tpu.memory_space<vmem>>, vector<2x32xf32>
    tpu.vector_store %arg15[%270, %c0_113], %269 {strides = array<i32>} : memref<16x32xf32, #tpu.memory_space<vmem>>, vector<2x32xf32>,
    %c7_i32 = arith.constant 7 : i32
    %c2_i32_114 = arith.constant 2 : i32
    %272 = arith.muli %c7_i32, %c2_i32_114 : i32
    %273 = arith.index_cast %272 : i32 to index
    %c0_115 = arith.constant 0 : index
    %274 = vector.load %arg12[%273, %c0_115] : memref<16x32xf32, #tpu.memory_space<vmem>>, vector<2x32xf32>
    %275 = arith.index_cast %272 : i32 to index
    %c0_116 = arith.constant 0 : index
    %276 = vector.load %arg13[%275, %c0_116] : memref<16x32xf32, #tpu.memory_space<vmem>>, vector<2x32xf32>
    %277 = arith.index_cast %272 : i32 to index
    %c0_117 = arith.constant 0 : index
    %278 = vector.load %arg14[%277, %c0_117] : memref<16x32xf32, #tpu.memory_space<vmem>>, vector<2x32xf32>
    %cst_118 = arith.constant dense<0.000000e+00> : vector<2x32xf32>
    %279 = tpu.matmul %269, %26, %cst_118 {dimension_numbers = #tpu.dot_dimension_numbers<[1], [0], [0], [1], [0, 0, 1, 1], [], []>} : vector<2x32xf32>, vector<32x32xf32>, vector<2x32xf32> -> vector<2x32xf32>
    %cst_119 = arith.constant dense<0.000000e+00> : vector<2x32xf32>
    %280 = tpu.matmul %269, %28, %cst_119 {dimension_numbers = #tpu.dot_dimension_numbers<[1], [0], [0], [1], [0, 0, 1, 1], [], []>} : vector<2x32xf32>, vector<32x32xf32>, vector<2x32xf32> -> vector<2x32xf32>
    %cst_120 = arith.constant dense<0.000000e+00> : vector<2x32xf32>
    %281 = tpu.matmul %269, %30, %cst_120 {dimension_numbers = #tpu.dot_dimension_numbers<[1], [0], [0], [1], [0, 0, 1, 1], [], []>} : vector<2x32xf32>, vector<32x32xf32>, vector<2x32xf32> -> vector<2x32xf32>
    %282 = vector.broadcast %32 : vector<1x32xf32> to vector<2x32xf32>
    %283 = arith.addf %281, %282 : vector<2x32xf32>
    %284 = arith.addf %274, %279 : vector<2x32xf32>
    %285 = arith.negf %284 : vector<2x32xf32>
    %286 = math.exp %285 : vector<2x32xf32>
    %cst_121 = arith.constant 1.000000e+00 : f32
    %287 = vector.broadcast %cst_121 : f32 to vector<2x32xf32>
    %288 = arith.addf %287, %286 : vector<2x32xf32>
    %289 = arith.divf %287, %288 : vector<2x32xf32>
    %290 = arith.addf %276, %280 : vector<2x32xf32>
    %291 = arith.negf %290 : vector<2x32xf32>
    %292 = math.exp %291 : vector<2x32xf32>
    %cst_122 = arith.constant 1.000000e+00 : f32
    %293 = vector.broadcast %cst_122 : f32 to vector<2x32xf32>
    %294 = arith.addf %293, %292 : vector<2x32xf32>
    %295 = arith.divf %293, %294 : vector<2x32xf32>
    %296 = arith.mulf %289, %283 : vector<2x32xf32>
    %297 = arith.addf %278, %296 : vector<2x32xf32>
    %298 = math.tanh %297 : vector<2x32xf32>
    %cst_123 = arith.constant 1.000000e+00 : f32
    %299 = vector.broadcast %cst_123 : f32 to vector<2x32xf32>
    %300 = arith.subf %299, %295 : vector<2x32xf32>
    %301 = arith.mulf %300, %298 : vector<2x32xf32>
    %302 = arith.mulf %295, %269 : vector<2x32xf32>
    %303 = arith.addf %301, %302 : vector<2x32xf32>
    %304 = arith.index_cast %272 : i32 to index
    %c0_124 = arith.constant 0 : index
    %305 = vector.load %arg15[%304, %c0_124] : memref<16x32xf32, #tpu.memory_space<vmem>>, vector<2x32xf32>
    tpu.vector_store %arg15[%304, %c0_124], %303 {strides = array<i32>} : memref<16x32xf32, #tpu.memory_space<vmem>>, vector<2x32xf32>,
    %c8_i32 = arith.constant 8 : i32
    %c0_125 = arith.constant 0 : index
    %c0_126 = arith.constant 0 : index
    %306 = vector.load %arg15[%c0_125, %c0_126] : memref<16x32xf32, #tpu.memory_space<vmem>>, vector<16x32xf32>
    %c0_127 = arith.constant 0 : index
    %c0_128 = arith.constant 0 : index
    %c0_129 = arith.constant 0 : index
    %307 = vector.load %arg5[%c0_127, %c0_128, %c0_129] : memref<3x32x32xf32, #tpu.memory_space<vmem>>, vector<1x32x32xf32>
    %308 = vector.shape_cast %307 : vector<1x32x32xf32> to vector<32x32xf32>
    %cst_130 = arith.constant dense<0.000000e+00> : vector<16x32xf32>
    %309 = tpu.matmul %306, %308, %cst_130 {dimension_numbers = #tpu.dot_dimension_numbers<[1], [0], [0], [1], [0, 0, 1, 1], [], []>} : vector<16x32xf32>, vector<32x32xf32>, vector<16x32xf32> -> vector<16x32xf32>
    %c0_131 = arith.constant 0 : index
    %c0_132 = arith.constant 0 : index
    %c0_133 = arith.constant 0 : index
    %310 = vector.load %arg7[%c0_131, %c0_132, %c0_133] : memref<4x1x32xf32, #tpu.memory_space<vmem>>, vector<1x1x32xf32>
    %311 = vector.shape_cast %310 : vector<1x1x32xf32> to vector<1x32xf32>
    %312 = vector.broadcast %311 : vector<1x32xf32> to vector<16x32xf32>
    %313 = arith.addf %309, %312 : vector<16x32xf32>
    %c0_134 = arith.constant 0 : index
    %c0_135 = arith.constant 0 : index
    %314 = vector.load %arg12[%c0_134, %c0_135] : memref<16x32xf32, #tpu.memory_space<vmem>>, vector<16x32xf32>
    tpu.vector_store %arg12[%c0_134, %c0_135], %313 {strides = array<i32>} : memref<16x32xf32, #tpu.memory_space<vmem>>, vector<16x32xf32>,
    %c1_136 = arith.constant 1 : index
    %c0_137 = arith.constant 0 : index
    %c0_138 = arith.constant 0 : index
    %315 = vector.load %arg5[%c1_136, %c0_137, %c0_138] : memref<3x32x32xf32, #tpu.memory_space<vmem>>, vector<1x32x32xf32>
    %316 = vector.shape_cast %315 : vector<1x32x32xf32> to vector<32x32xf32>
    %cst_139 = arith.constant dense<0.000000e+00> : vector<16x32xf32>
    %317 = tpu.matmul %306, %316, %cst_139 {dimension_numbers = #tpu.dot_dimension_numbers<[1], [0], [0], [1], [0, 0, 1, 1], [], []>} : vector<16x32xf32>, vector<32x32xf32>, vector<16x32xf32> -> vector<16x32xf32>
    %c1_140 = arith.constant 1 : index
    %c0_141 = arith.constant 0 : index
    %c0_142 = arith.constant 0 : index
    %318 = vector.load %arg7[%c1_140, %c0_141, %c0_142] : memref<4x1x32xf32, #tpu.memory_space<vmem>>, vector<1x1x32xf32>
    %319 = vector.shape_cast %318 : vector<1x1x32xf32> to vector<1x32xf32>
    %320 = vector.broadcast %319 : vector<1x32xf32> to vector<16x32xf32>
    %321 = arith.addf %317, %320 : vector<16x32xf32>
    %c0_143 = arith.constant 0 : index
    %c0_144 = arith.constant 0 : index
    %322 = vector.load %arg13[%c0_143, %c0_144] : memref<16x32xf32, #tpu.memory_space<vmem>>, vector<16x32xf32>
    tpu.vector_store %arg13[%c0_143, %c0_144], %321 {strides = array<i32>} : memref<16x32xf32, #tpu.memory_space<vmem>>, vector<16x32xf32>,
    %c2_145 = arith.constant 2 : index
    %c0_146 = arith.constant 0 : index
    %c0_147 = arith.constant 0 : index
    %323 = vector.load %arg5[%c2_145, %c0_146, %c0_147] : memref<3x32x32xf32, #tpu.memory_space<vmem>>, vector<1x32x32xf32>
    %324 = vector.shape_cast %323 : vector<1x32x32xf32> to vector<32x32xf32>
    %cst_148 = arith.constant dense<0.000000e+00> : vector<16x32xf32>
    %325 = tpu.matmul %306, %324, %cst_148 {dimension_numbers = #tpu.dot_dimension_numbers<[1], [0], [0], [1], [0, 0, 1, 1], [], []>} : vector<16x32xf32>, vector<32x32xf32>, vector<16x32xf32> -> vector<16x32xf32>
    %c2_149 = arith.constant 2 : index
    %c0_150 = arith.constant 0 : index
    %c0_151 = arith.constant 0 : index
    %326 = vector.load %arg7[%c2_149, %c0_150, %c0_151] : memref<4x1x32xf32, #tpu.memory_space<vmem>>, vector<1x1x32xf32>
    %327 = vector.shape_cast %326 : vector<1x1x32xf32> to vector<1x32xf32>
    %328 = vector.broadcast %327 : vector<1x32xf32> to vector<16x32xf32>
    %329 = arith.addf %325, %328 : vector<16x32xf32>
    %c0_152 = arith.constant 0 : index
    %c0_153 = arith.constant 0 : index
    %330 = vector.load %arg14[%c0_152, %c0_153] : memref<16x32xf32, #tpu.memory_space<vmem>>, vector<16x32xf32>
    tpu.vector_store %arg14[%c0_152, %c0_153], %329 {strides = array<i32>} : memref<16x32xf32, #tpu.memory_space<vmem>>, vector<16x32xf32>,
    %c0_154 = arith.constant 0 : index
    %c0_155 = arith.constant 0 : index
    %c0_156 = arith.constant 0 : index
    %331 = vector.load %arg6[%c0_154, %c0_155, %c0_156] : memref<3x32x32xf32, #tpu.memory_space<vmem>>, vector<1x32x32xf32>
    %332 = vector.shape_cast %331 : vector<1x32x32xf32> to vector<32x32xf32>
    %c1_157 = arith.constant 1 : index
    %c0_158 = arith.constant 0 : index
    %c0_159 = arith.constant 0 : index
    %333 = vector.load %arg6[%c1_157, %c0_158, %c0_159] : memref<3x32x32xf32, #tpu.memory_space<vmem>>, vector<1x32x32xf32>
    %334 = vector.shape_cast %333 : vector<1x32x32xf32> to vector<32x32xf32>
    %c2_160 = arith.constant 2 : index
    %c0_161 = arith.constant 0 : index
    %c0_162 = arith.constant 0 : index
    %335 = vector.load %arg6[%c2_160, %c0_161, %c0_162] : memref<3x32x32xf32, #tpu.memory_space<vmem>>, vector<1x32x32xf32>
    %336 = vector.shape_cast %335 : vector<1x32x32xf32> to vector<32x32xf32>
    %c3_163 = arith.constant 3 : index
    %c0_164 = arith.constant 0 : index
    %c0_165 = arith.constant 0 : index
    %337 = vector.load %arg7[%c3_163, %c0_164, %c0_165] : memref<4x1x32xf32, #tpu.memory_space<vmem>>, vector<1x1x32xf32>
    %338 = vector.shape_cast %337 : vector<1x1x32xf32> to vector<1x32xf32>
    %cst_166 = arith.constant 0.000000e+00 : f32
    %339 = vector.broadcast %cst_166 : f32 to vector<2x32xf32>
    %c0_i32_167 = arith.constant 0 : i32
    %c2_i32_168 = arith.constant 2 : i32
    %340 = arith.muli %c0_i32_167, %c2_i32_168 : i32
    %341 = arith.index_cast %340 : i32 to index
    %c0_169 = arith.constant 0 : index
    %342 = vector.load %arg12[%341, %c0_169] : memref<16x32xf32, #tpu.memory_space<vmem>>, vector<2x32xf32>
    %343 = arith.index_cast %340 : i32 to index
    %c0_170 = arith.constant 0 : index
    %344 = vector.load %arg13[%343, %c0_170] : memref<16x32xf32, #tpu.memory_space<vmem>>, vector<2x32xf32>
    %345 = arith.index_cast %340 : i32 to index
    %c0_171 = arith.constant 0 : index
    %346 = vector.load %arg14[%345, %c0_171] : memref<16x32xf32, #tpu.memory_space<vmem>>, vector<2x32xf32>
    %cst_172 = arith.constant dense<0.000000e+00> : vector<2x32xf32>
    %347 = tpu.matmul %339, %332, %cst_172 {dimension_numbers = #tpu.dot_dimension_numbers<[1], [0], [0], [1], [0, 0, 1, 1], [], []>} : vector<2x32xf32>, vector<32x32xf32>, vector<2x32xf32> -> vector<2x32xf32>
    %cst_173 = arith.constant dense<0.000000e+00> : vector<2x32xf32>
    %348 = tpu.matmul %339, %334, %cst_173 {dimension_numbers = #tpu.dot_dimension_numbers<[1], [0], [0], [1], [0, 0, 1, 1], [], []>} : vector<2x32xf32>, vector<32x32xf32>, vector<2x32xf32> -> vector<2x32xf32>
    %cst_174 = arith.constant dense<0.000000e+00> : vector<2x32xf32>
    %349 = tpu.matmul %339, %336, %cst_174 {dimension_numbers = #tpu.dot_dimension_numbers<[1], [0], [0], [1], [0, 0, 1, 1], [], []>} : vector<2x32xf32>, vector<32x32xf32>, vector<2x32xf32> -> vector<2x32xf32>
    %350 = vector.broadcast %338 : vector<1x32xf32> to vector<2x32xf32>
    %351 = arith.addf %349, %350 : vector<2x32xf32>
    %352 = arith.addf %342, %347 : vector<2x32xf32>
    %353 = arith.negf %352 : vector<2x32xf32>
    %354 = math.exp %353 : vector<2x32xf32>
    %cst_175 = arith.constant 1.000000e+00 : f32
    %355 = vector.broadcast %cst_175 : f32 to vector<2x32xf32>
    %356 = arith.addf %355, %354 : vector<2x32xf32>
    %357 = arith.divf %355, %356 : vector<2x32xf32>
    %358 = arith.addf %344, %348 : vector<2x32xf32>
    %359 = arith.negf %358 : vector<2x32xf32>
    %360 = math.exp %359 : vector<2x32xf32>
    %cst_176 = arith.constant 1.000000e+00 : f32
    %361 = vector.broadcast %cst_176 : f32 to vector<2x32xf32>
    %362 = arith.addf %361, %360 : vector<2x32xf32>
    %363 = arith.divf %361, %362 : vector<2x32xf32>
    %364 = arith.mulf %357, %351 : vector<2x32xf32>
    %365 = arith.addf %346, %364 : vector<2x32xf32>
    %366 = math.tanh %365 : vector<2x32xf32>
    %cst_177 = arith.constant 1.000000e+00 : f32
    %367 = vector.broadcast %cst_177 : f32 to vector<2x32xf32>
    %368 = arith.subf %367, %363 : vector<2x32xf32>
    %369 = arith.mulf %368, %366 : vector<2x32xf32>
    %370 = arith.mulf %363, %339 : vector<2x32xf32>
    %371 = arith.addf %369, %370 : vector<2x32xf32>
    %372 = arith.index_cast %340 : i32 to index
    %c0_178 = arith.constant 0 : index
    %373 = vector.load %arg16[%372, %c0_178] : memref<16x32xf32, #tpu.memory_space<vmem>>, vector<2x32xf32>
    tpu.vector_store %arg16[%372, %c0_178], %371 {strides = array<i32>} : memref<16x32xf32, #tpu.memory_space<vmem>>, vector<2x32xf32>,
    %c1_i32_179 = arith.constant 1 : i32
    %c2_i32_180 = arith.constant 2 : i32
    %374 = arith.muli %c1_i32_179, %c2_i32_180 : i32
    %375 = arith.index_cast %374 : i32 to index
    %c0_181 = arith.constant 0 : index
    %376 = vector.load %arg12[%375, %c0_181] : memref<16x32xf32, #tpu.memory_space<vmem>>, vector<2x32xf32>
    %377 = arith.index_cast %374 : i32 to index
    %c0_182 = arith.constant 0 : index
    %378 = vector.load %arg13[%377, %c0_182] : memref<16x32xf32, #tpu.memory_space<vmem>>, vector<2x32xf32>
    %379 = arith.index_cast %374 : i32 to index
    %c0_183 = arith.constant 0 : index
    %380 = vector.load %arg14[%379, %c0_183] : memref<16x32xf32, #tpu.memory_space<vmem>>, vector<2x32xf32>
    %cst_184 = arith.constant dense<0.000000e+00> : vector<2x32xf32>
    %381 = tpu.matmul %371, %332, %cst_184 {dimension_numbers = #tpu.dot_dimension_numbers<[1], [0], [0], [1], [0, 0, 1, 1], [], []>} : vector<2x32xf32>, vector<32x32xf32>, vector<2x32xf32> -> vector<2x32xf32>
    %cst_185 = arith.constant dense<0.000000e+00> : vector<2x32xf32>
    %382 = tpu.matmul %371, %334, %cst_185 {dimension_numbers = #tpu.dot_dimension_numbers<[1], [0], [0], [1], [0, 0, 1, 1], [], []>} : vector<2x32xf32>, vector<32x32xf32>, vector<2x32xf32> -> vector<2x32xf32>
    %cst_186 = arith.constant dense<0.000000e+00> : vector<2x32xf32>
    %383 = tpu.matmul %371, %336, %cst_186 {dimension_numbers = #tpu.dot_dimension_numbers<[1], [0], [0], [1], [0, 0, 1, 1], [], []>} : vector<2x32xf32>, vector<32x32xf32>, vector<2x32xf32> -> vector<2x32xf32>
    %384 = vector.broadcast %338 : vector<1x32xf32> to vector<2x32xf32>
    %385 = arith.addf %383, %384 : vector<2x32xf32>
    %386 = arith.addf %376, %381 : vector<2x32xf32>
    %387 = arith.negf %386 : vector<2x32xf32>
    %388 = math.exp %387 : vector<2x32xf32>
    %cst_187 = arith.constant 1.000000e+00 : f32
    %389 = vector.broadcast %cst_187 : f32 to vector<2x32xf32>
    %390 = arith.addf %389, %388 : vector<2x32xf32>
    %391 = arith.divf %389, %390 : vector<2x32xf32>
    %392 = arith.addf %378, %382 : vector<2x32xf32>
    %393 = arith.negf %392 : vector<2x32xf32>
    %394 = math.exp %393 : vector<2x32xf32>
    %cst_188 = arith.constant 1.000000e+00 : f32
    %395 = vector.broadcast %cst_188 : f32 to vector<2x32xf32>
    %396 = arith.addf %395, %394 : vector<2x32xf32>
    %397 = arith.divf %395, %396 : vector<2x32xf32>
    %398 = arith.mulf %391, %385 : vector<2x32xf32>
    %399 = arith.addf %380, %398 : vector<2x32xf32>
    %400 = math.tanh %399 : vector<2x32xf32>
    %cst_189 = arith.constant 1.000000e+00 : f32
    %401 = vector.broadcast %cst_189 : f32 to vector<2x32xf32>
    %402 = arith.subf %401, %397 : vector<2x32xf32>
    %403 = arith.mulf %402, %400 : vector<2x32xf32>
    %404 = arith.mulf %397, %371 : vector<2x32xf32>
    %405 = arith.addf %403, %404 : vector<2x32xf32>
    %406 = arith.index_cast %374 : i32 to index
    %c0_190 = arith.constant 0 : index
    %407 = vector.load %arg16[%406, %c0_190] : memref<16x32xf32, #tpu.memory_space<vmem>>, vector<2x32xf32>
    tpu.vector_store %arg16[%406, %c0_190], %405 {strides = array<i32>} : memref<16x32xf32, #tpu.memory_space<vmem>>, vector<2x32xf32>,
    %c2_i32_191 = arith.constant 2 : i32
    %c2_i32_192 = arith.constant 2 : i32
    %408 = arith.muli %c2_i32_191, %c2_i32_192 : i32
    %409 = arith.index_cast %408 : i32 to index
    %c0_193 = arith.constant 0 : index
    %410 = vector.load %arg12[%409, %c0_193] : memref<16x32xf32, #tpu.memory_space<vmem>>, vector<2x32xf32>
    %411 = arith.index_cast %408 : i32 to index
    %c0_194 = arith.constant 0 : index
    %412 = vector.load %arg13[%411, %c0_194] : memref<16x32xf32, #tpu.memory_space<vmem>>, vector<2x32xf32>
    %413 = arith.index_cast %408 : i32 to index
    %c0_195 = arith.constant 0 : index
    %414 = vector.load %arg14[%413, %c0_195] : memref<16x32xf32, #tpu.memory_space<vmem>>, vector<2x32xf32>
    %cst_196 = arith.constant dense<0.000000e+00> : vector<2x32xf32>
    %415 = tpu.matmul %405, %332, %cst_196 {dimension_numbers = #tpu.dot_dimension_numbers<[1], [0], [0], [1], [0, 0, 1, 1], [], []>} : vector<2x32xf32>, vector<32x32xf32>, vector<2x32xf32> -> vector<2x32xf32>
    %cst_197 = arith.constant dense<0.000000e+00> : vector<2x32xf32>
    %416 = tpu.matmul %405, %334, %cst_197 {dimension_numbers = #tpu.dot_dimension_numbers<[1], [0], [0], [1], [0, 0, 1, 1], [], []>} : vector<2x32xf32>, vector<32x32xf32>, vector<2x32xf32> -> vector<2x32xf32>
    %cst_198 = arith.constant dense<0.000000e+00> : vector<2x32xf32>
    %417 = tpu.matmul %405, %336, %cst_198 {dimension_numbers = #tpu.dot_dimension_numbers<[1], [0], [0], [1], [0, 0, 1, 1], [], []>} : vector<2x32xf32>, vector<32x32xf32>, vector<2x32xf32> -> vector<2x32xf32>
    %418 = vector.broadcast %338 : vector<1x32xf32> to vector<2x32xf32>
    %419 = arith.addf %417, %418 : vector<2x32xf32>
    %420 = arith.addf %410, %415 : vector<2x32xf32>
    %421 = arith.negf %420 : vector<2x32xf32>
    %422 = math.exp %421 : vector<2x32xf32>
    %cst_199 = arith.constant 1.000000e+00 : f32
    %423 = vector.broadcast %cst_199 : f32 to vector<2x32xf32>
    %424 = arith.addf %423, %422 : vector<2x32xf32>
    %425 = arith.divf %423, %424 : vector<2x32xf32>
    %426 = arith.addf %412, %416 : vector<2x32xf32>
    %427 = arith.negf %426 : vector<2x32xf32>
    %428 = math.exp %427 : vector<2x32xf32>
    %cst_200 = arith.constant 1.000000e+00 : f32
    %429 = vector.broadcast %cst_200 : f32 to vector<2x32xf32>
    %430 = arith.addf %429, %428 : vector<2x32xf32>
    %431 = arith.divf %429, %430 : vector<2x32xf32>
    %432 = arith.mulf %425, %419 : vector<2x32xf32>
    %433 = arith.addf %414, %432 : vector<2x32xf32>
    %434 = math.tanh %433 : vector<2x32xf32>
    %cst_201 = arith.constant 1.000000e+00 : f32
    %435 = vector.broadcast %cst_201 : f32 to vector<2x32xf32>
    %436 = arith.subf %435, %431 : vector<2x32xf32>
    %437 = arith.mulf %436, %434 : vector<2x32xf32>
    %438 = arith.mulf %431, %405 : vector<2x32xf32>
    %439 = arith.addf %437, %438 : vector<2x32xf32>
    %440 = arith.index_cast %408 : i32 to index
    %c0_202 = arith.constant 0 : index
    %441 = vector.load %arg16[%440, %c0_202] : memref<16x32xf32, #tpu.memory_space<vmem>>, vector<2x32xf32>
    tpu.vector_store %arg16[%440, %c0_202], %439 {strides = array<i32>} : memref<16x32xf32, #tpu.memory_space<vmem>>, vector<2x32xf32>,
    %c3_i32_203 = arith.constant 3 : i32
    %c2_i32_204 = arith.constant 2 : i32
    %442 = arith.muli %c3_i32_203, %c2_i32_204 : i32
    %443 = arith.index_cast %442 : i32 to index
    %c0_205 = arith.constant 0 : index
    %444 = vector.load %arg12[%443, %c0_205] : memref<16x32xf32, #tpu.memory_space<vmem>>, vector<2x32xf32>
    %445 = arith.index_cast %442 : i32 to index
    %c0_206 = arith.constant 0 : index
    %446 = vector.load %arg13[%445, %c0_206] : memref<16x32xf32, #tpu.memory_space<vmem>>, vector<2x32xf32>
    %447 = arith.index_cast %442 : i32 to index
    %c0_207 = arith.constant 0 : index
    %448 = vector.load %arg14[%447, %c0_207] : memref<16x32xf32, #tpu.memory_space<vmem>>, vector<2x32xf32>
    %cst_208 = arith.constant dense<0.000000e+00> : vector<2x32xf32>
    %449 = tpu.matmul %439, %332, %cst_208 {dimension_numbers = #tpu.dot_dimension_numbers<[1], [0], [0], [1], [0, 0, 1, 1], [], []>} : vector<2x32xf32>, vector<32x32xf32>, vector<2x32xf32> -> vector<2x32xf32>
    %cst_209 = arith.constant dense<0.000000e+00> : vector<2x32xf32>
    %450 = tpu.matmul %439, %334, %cst_209 {dimension_numbers = #tpu.dot_dimension_numbers<[1], [0], [0], [1], [0, 0, 1, 1], [], []>} : vector<2x32xf32>, vector<32x32xf32>, vector<2x32xf32> -> vector<2x32xf32>
    %cst_210 = arith.constant dense<0.000000e+00> : vector<2x32xf32>
    %451 = tpu.matmul %439, %336, %cst_210 {dimension_numbers = #tpu.dot_dimension_numbers<[1], [0], [0], [1], [0, 0, 1, 1], [], []>} : vector<2x32xf32>, vector<32x32xf32>, vector<2x32xf32> -> vector<2x32xf32>
    %452 = vector.broadcast %338 : vector<1x32xf32> to vector<2x32xf32>
    %453 = arith.addf %451, %452 : vector<2x32xf32>
    %454 = arith.addf %444, %449 : vector<2x32xf32>
    %455 = arith.negf %454 : vector<2x32xf32>
    %456 = math.exp %455 : vector<2x32xf32>
    %cst_211 = arith.constant 1.000000e+00 : f32
    %457 = vector.broadcast %cst_211 : f32 to vector<2x32xf32>
    %458 = arith.addf %457, %456 : vector<2x32xf32>
    %459 = arith.divf %457, %458 : vector<2x32xf32>
    %460 = arith.addf %446, %450 : vector<2x32xf32>
    %461 = arith.negf %460 : vector<2x32xf32>
    %462 = math.exp %461 : vector<2x32xf32>
    %cst_212 = arith.constant 1.000000e+00 : f32
    %463 = vector.broadcast %cst_212 : f32 to vector<2x32xf32>
    %464 = arith.addf %463, %462 : vector<2x32xf32>
    %465 = arith.divf %463, %464 : vector<2x32xf32>
    %466 = arith.mulf %459, %453 : vector<2x32xf32>
    %467 = arith.addf %448, %466 : vector<2x32xf32>
    %468 = math.tanh %467 : vector<2x32xf32>
    %cst_213 = arith.constant 1.000000e+00 : f32
    %469 = vector.broadcast %cst_213 : f32 to vector<2x32xf32>
    %470 = arith.subf %469, %465 : vector<2x32xf32>
    %471 = arith.mulf %470, %468 : vector<2x32xf32>
    %472 = arith.mulf %465, %439 : vector<2x32xf32>
    %473 = arith.addf %471, %472 : vector<2x32xf32>
    %474 = arith.index_cast %442 : i32 to index
    %c0_214 = arith.constant 0 : index
    %475 = vector.load %arg16[%474, %c0_214] : memref<16x32xf32, #tpu.memory_space<vmem>>, vector<2x32xf32>
    tpu.vector_store %arg16[%474, %c0_214], %473 {strides = array<i32>} : memref<16x32xf32, #tpu.memory_space<vmem>>, vector<2x32xf32>,
    %c4_i32_215 = arith.constant 4 : i32
    %c2_i32_216 = arith.constant 2 : i32
    %476 = arith.muli %c4_i32_215, %c2_i32_216 : i32
    %477 = arith.index_cast %476 : i32 to index
    %c0_217 = arith.constant 0 : index
    %478 = vector.load %arg12[%477, %c0_217] : memref<16x32xf32, #tpu.memory_space<vmem>>, vector<2x32xf32>
    %479 = arith.index_cast %476 : i32 to index
    %c0_218 = arith.constant 0 : index
    %480 = vector.load %arg13[%479, %c0_218] : memref<16x32xf32, #tpu.memory_space<vmem>>, vector<2x32xf32>
    %481 = arith.index_cast %476 : i32 to index
    %c0_219 = arith.constant 0 : index
    %482 = vector.load %arg14[%481, %c0_219] : memref<16x32xf32, #tpu.memory_space<vmem>>, vector<2x32xf32>
    %cst_220 = arith.constant dense<0.000000e+00> : vector<2x32xf32>
    %483 = tpu.matmul %473, %332, %cst_220 {dimension_numbers = #tpu.dot_dimension_numbers<[1], [0], [0], [1], [0, 0, 1, 1], [], []>} : vector<2x32xf32>, vector<32x32xf32>, vector<2x32xf32> -> vector<2x32xf32>
    %cst_221 = arith.constant dense<0.000000e+00> : vector<2x32xf32>
    %484 = tpu.matmul %473, %334, %cst_221 {dimension_numbers = #tpu.dot_dimension_numbers<[1], [0], [0], [1], [0, 0, 1, 1], [], []>} : vector<2x32xf32>, vector<32x32xf32>, vector<2x32xf32> -> vector<2x32xf32>
    %cst_222 = arith.constant dense<0.000000e+00> : vector<2x32xf32>
    %485 = tpu.matmul %473, %336, %cst_222 {dimension_numbers = #tpu.dot_dimension_numbers<[1], [0], [0], [1], [0, 0, 1, 1], [], []>} : vector<2x32xf32>, vector<32x32xf32>, vector<2x32xf32> -> vector<2x32xf32>
    %486 = vector.broadcast %338 : vector<1x32xf32> to vector<2x32xf32>
    %487 = arith.addf %485, %486 : vector<2x32xf32>
    %488 = arith.addf %478, %483 : vector<2x32xf32>
    %489 = arith.negf %488 : vector<2x32xf32>
    %490 = math.exp %489 : vector<2x32xf32>
    %cst_223 = arith.constant 1.000000e+00 : f32
    %491 = vector.broadcast %cst_223 : f32 to vector<2x32xf32>
    %492 = arith.addf %491, %490 : vector<2x32xf32>
    %493 = arith.divf %491, %492 : vector<2x32xf32>
    %494 = arith.addf %480, %484 : vector<2x32xf32>
    %495 = arith.negf %494 : vector<2x32xf32>
    %496 = math.exp %495 : vector<2x32xf32>
    %cst_224 = arith.constant 1.000000e+00 : f32
    %497 = vector.broadcast %cst_224 : f32 to vector<2x32xf32>
    %498 = arith.addf %497, %496 : vector<2x32xf32>
    %499 = arith.divf %497, %498 : vector<2x32xf32>
    %500 = arith.mulf %493, %487 : vector<2x32xf32>
    %501 = arith.addf %482, %500 : vector<2x32xf32>
    %502 = math.tanh %501 : vector<2x32xf32>
    %cst_225 = arith.constant 1.000000e+00 : f32
    %503 = vector.broadcast %cst_225 : f32 to vector<2x32xf32>
    %504 = arith.subf %503, %499 : vector<2x32xf32>
    %505 = arith.mulf %504, %502 : vector<2x32xf32>
    %506 = arith.mulf %499, %473 : vector<2x32xf32>
    %507 = arith.addf %505, %506 : vector<2x32xf32>
    %508 = arith.index_cast %476 : i32 to index
    %c0_226 = arith.constant 0 : index
    %509 = vector.load %arg16[%508, %c0_226] : memref<16x32xf32, #tpu.memory_space<vmem>>, vector<2x32xf32>
    tpu.vector_store %arg16[%508, %c0_226], %507 {strides = array<i32>} : memref<16x32xf32, #tpu.memory_space<vmem>>, vector<2x32xf32>,
    %c5_i32_227 = arith.constant 5 : i32
    %c2_i32_228 = arith.constant 2 : i32
    %510 = arith.muli %c5_i32_227, %c2_i32_228 : i32
    %511 = arith.index_cast %510 : i32 to index
    %c0_229 = arith.constant 0 : index
    %512 = vector.load %arg12[%511, %c0_229] : memref<16x32xf32, #tpu.memory_space<vmem>>, vector<2x32xf32>
    %513 = arith.index_cast %510 : i32 to index
    %c0_230 = arith.constant 0 : index
    %514 = vector.load %arg13[%513, %c0_230] : memref<16x32xf32, #tpu.memory_space<vmem>>, vector<2x32xf32>
    %515 = arith.index_cast %510 : i32 to index
    %c0_231 = arith.constant 0 : index
    %516 = vector.load %arg14[%515, %c0_231] : memref<16x32xf32, #tpu.memory_space<vmem>>, vector<2x32xf32>
    %cst_232 = arith.constant dense<0.000000e+00> : vector<2x32xf32>
    %517 = tpu.matmul %507, %332, %cst_232 {dimension_numbers = #tpu.dot_dimension_numbers<[1], [0], [0], [1], [0, 0, 1, 1], [], []>} : vector<2x32xf32>, vector<32x32xf32>, vector<2x32xf32> -> vector<2x32xf32>
    %cst_233 = arith.constant dense<0.000000e+00> : vector<2x32xf32>
    %518 = tpu.matmul %507, %334, %cst_233 {dimension_numbers = #tpu.dot_dimension_numbers<[1], [0], [0], [1], [0, 0, 1, 1], [], []>} : vector<2x32xf32>, vector<32x32xf32>, vector<2x32xf32> -> vector<2x32xf32>
    %cst_234 = arith.constant dense<0.000000e+00> : vector<2x32xf32>
    %519 = tpu.matmul %507, %336, %cst_234 {dimension_numbers = #tpu.dot_dimension_numbers<[1], [0], [0], [1], [0, 0, 1, 1], [], []>} : vector<2x32xf32>, vector<32x32xf32>, vector<2x32xf32> -> vector<2x32xf32>
    %520 = vector.broadcast %338 : vector<1x32xf32> to vector<2x32xf32>
    %521 = arith.addf %519, %520 : vector<2x32xf32>
    %522 = arith.addf %512, %517 : vector<2x32xf32>
    %523 = arith.negf %522 : vector<2x32xf32>
    %524 = math.exp %523 : vector<2x32xf32>
    %cst_235 = arith.constant 1.000000e+00 : f32
    %525 = vector.broadcast %cst_235 : f32 to vector<2x32xf32>
    %526 = arith.addf %525, %524 : vector<2x32xf32>
    %527 = arith.divf %525, %526 : vector<2x32xf32>
    %528 = arith.addf %514, %518 : vector<2x32xf32>
    %529 = arith.negf %528 : vector<2x32xf32>
    %530 = math.exp %529 : vector<2x32xf32>
    %cst_236 = arith.constant 1.000000e+00 : f32
    %531 = vector.broadcast %cst_236 : f32 to vector<2x32xf32>
    %532 = arith.addf %531, %530 : vector<2x32xf32>
    %533 = arith.divf %531, %532 : vector<2x32xf32>
    %534 = arith.mulf %527, %521 : vector<2x32xf32>
    %535 = arith.addf %516, %534 : vector<2x32xf32>
    %536 = math.tanh %535 : vector<2x32xf32>
    %cst_237 = arith.constant 1.000000e+00 : f32
    %537 = vector.broadcast %cst_237 : f32 to vector<2x32xf32>
    %538 = arith.subf %537, %533 : vector<2x32xf32>
    %539 = arith.mulf %538, %536 : vector<2x32xf32>
    %540 = arith.mulf %533, %507 : vector<2x32xf32>
    %541 = arith.addf %539, %540 : vector<2x32xf32>
    %542 = arith.index_cast %510 : i32 to index
    %c0_238 = arith.constant 0 : index
    %543 = vector.load %arg16[%542, %c0_238] : memref<16x32xf32, #tpu.memory_space<vmem>>, vector<2x32xf32>
    tpu.vector_store %arg16[%542, %c0_238], %541 {strides = array<i32>} : memref<16x32xf32, #tpu.memory_space<vmem>>, vector<2x32xf32>,
    %c6_i32_239 = arith.constant 6 : i32
    %c2_i32_240 = arith.constant 2 : i32
    %544 = arith.muli %c6_i32_239, %c2_i32_240 : i32
    %545 = arith.index_cast %544 : i32 to index
    %c0_241 = arith.constant 0 : index
    %546 = vector.load %arg12[%545, %c0_241] : memref<16x32xf32, #tpu.memory_space<vmem>>, vector<2x32xf32>
    %547 = arith.index_cast %544 : i32 to index
    %c0_242 = arith.constant 0 : index
    %548 = vector.load %arg13[%547, %c0_242] : memref<16x32xf32, #tpu.memory_space<vmem>>, vector<2x32xf32>
    %549 = arith.index_cast %544 : i32 to index
    %c0_243 = arith.constant 0 : index
    %550 = vector.load %arg14[%549, %c0_243] : memref<16x32xf32, #tpu.memory_space<vmem>>, vector<2x32xf32>
    %cst_244 = arith.constant dense<0.000000e+00> : vector<2x32xf32>
    %551 = tpu.matmul %541, %332, %cst_244 {dimension_numbers = #tpu.dot_dimension_numbers<[1], [0], [0], [1], [0, 0, 1, 1], [], []>} : vector<2x32xf32>, vector<32x32xf32>, vector<2x32xf32> -> vector<2x32xf32>
    %cst_245 = arith.constant dense<0.000000e+00> : vector<2x32xf32>
    %552 = tpu.matmul %541, %334, %cst_245 {dimension_numbers = #tpu.dot_dimension_numbers<[1], [0], [0], [1], [0, 0, 1, 1], [], []>} : vector<2x32xf32>, vector<32x32xf32>, vector<2x32xf32> -> vector<2x32xf32>
    %cst_246 = arith.constant dense<0.000000e+00> : vector<2x32xf32>
    %553 = tpu.matmul %541, %336, %cst_246 {dimension_numbers = #tpu.dot_dimension_numbers<[1], [0], [0], [1], [0, 0, 1, 1], [], []>} : vector<2x32xf32>, vector<32x32xf32>, vector<2x32xf32> -> vector<2x32xf32>
    %554 = vector.broadcast %338 : vector<1x32xf32> to vector<2x32xf32>
    %555 = arith.addf %553, %554 : vector<2x32xf32>
    %556 = arith.addf %546, %551 : vector<2x32xf32>
    %557 = arith.negf %556 : vector<2x32xf32>
    %558 = math.exp %557 : vector<2x32xf32>
    %cst_247 = arith.constant 1.000000e+00 : f32
    %559 = vector.broadcast %cst_247 : f32 to vector<2x32xf32>
    %560 = arith.addf %559, %558 : vector<2x32xf32>
    %561 = arith.divf %559, %560 : vector<2x32xf32>
    %562 = arith.addf %548, %552 : vector<2x32xf32>
    %563 = arith.negf %562 : vector<2x32xf32>
    %564 = math.exp %563 : vector<2x32xf32>
    %cst_248 = arith.constant 1.000000e+00 : f32
    %565 = vector.broadcast %cst_248 : f32 to vector<2x32xf32>
    %566 = arith.addf %565, %564 : vector<2x32xf32>
    %567 = arith.divf %565, %566 : vector<2x32xf32>
    %568 = arith.mulf %561, %555 : vector<2x32xf32>
    %569 = arith.addf %550, %568 : vector<2x32xf32>
    %570 = math.tanh %569 : vector<2x32xf32>
    %cst_249 = arith.constant 1.000000e+00 : f32
    %571 = vector.broadcast %cst_249 : f32 to vector<2x32xf32>
    %572 = arith.subf %571, %567 : vector<2x32xf32>
    %573 = arith.mulf %572, %570 : vector<2x32xf32>
    %574 = arith.mulf %567, %541 : vector<2x32xf32>
    %575 = arith.addf %573, %574 : vector<2x32xf32>
    %576 = arith.index_cast %544 : i32 to index
    %c0_250 = arith.constant 0 : index
    %577 = vector.load %arg16[%576, %c0_250] : memref<16x32xf32, #tpu.memory_space<vmem>>, vector<2x32xf32>
    tpu.vector_store %arg16[%576, %c0_250], %575 {strides = array<i32>} : memref<16x32xf32, #tpu.memory_space<vmem>>, vector<2x32xf32>,
    %c7_i32_251 = arith.constant 7 : i32
    %c2_i32_252 = arith.constant 2 : i32
    %578 = arith.muli %c7_i32_251, %c2_i32_252 : i32
    %579 = arith.index_cast %578 : i32 to index
    %c0_253 = arith.constant 0 : index
    %580 = vector.load %arg12[%579, %c0_253] : memref<16x32xf32, #tpu.memory_space<vmem>>, vector<2x32xf32>
    %581 = arith.index_cast %578 : i32 to index
    %c0_254 = arith.constant 0 : index
    %582 = vector.load %arg13[%581, %c0_254] : memref<16x32xf32, #tpu.memory_space<vmem>>, vector<2x32xf32>
    %583 = arith.index_cast %578 : i32 to index
    %c0_255 = arith.constant 0 : index
    %584 = vector.load %arg14[%583, %c0_255] : memref<16x32xf32, #tpu.memory_space<vmem>>, vector<2x32xf32>
    %cst_256 = arith.constant dense<0.000000e+00> : vector<2x32xf32>
    %585 = tpu.matmul %575, %332, %cst_256 {dimension_numbers = #tpu.dot_dimension_numbers<[1], [0], [0], [1], [0, 0, 1, 1], [], []>} : vector<2x32xf32>, vector<32x32xf32>, vector<2x32xf32> -> vector<2x32xf32>
    %cst_257 = arith.constant dense<0.000000e+00> : vector<2x32xf32>
    %586 = tpu.matmul %575, %334, %cst_257 {dimension_numbers = #tpu.dot_dimension_numbers<[1], [0], [0], [1], [0, 0, 1, 1], [], []>} : vector<2x32xf32>, vector<32x32xf32>, vector<2x32xf32> -> vector<2x32xf32>
    %cst_258 = arith.constant dense<0.000000e+00> : vector<2x32xf32>
    %587 = tpu.matmul %575, %336, %cst_258 {dimension_numbers = #tpu.dot_dimension_numbers<[1], [0], [0], [1], [0, 0, 1, 1], [], []>} : vector<2x32xf32>, vector<32x32xf32>, vector<2x32xf32> -> vector<2x32xf32>
    %588 = vector.broadcast %338 : vector<1x32xf32> to vector<2x32xf32>
    %589 = arith.addf %587, %588 : vector<2x32xf32>
    %590 = arith.addf %580, %585 : vector<2x32xf32>
    %591 = arith.negf %590 : vector<2x32xf32>
    %592 = math.exp %591 : vector<2x32xf32>
    %cst_259 = arith.constant 1.000000e+00 : f32
    %593 = vector.broadcast %cst_259 : f32 to vector<2x32xf32>
    %594 = arith.addf %593, %592 : vector<2x32xf32>
    %595 = arith.divf %593, %594 : vector<2x32xf32>
    %596 = arith.addf %582, %586 : vector<2x32xf32>
    %597 = arith.negf %596 : vector<2x32xf32>
    %598 = math.exp %597 : vector<2x32xf32>
    %cst_260 = arith.constant 1.000000e+00 : f32
    %599 = vector.broadcast %cst_260 : f32 to vector<2x32xf32>
    %600 = arith.addf %599, %598 : vector<2x32xf32>
    %601 = arith.divf %599, %600 : vector<2x32xf32>
    %602 = arith.mulf %595, %589 : vector<2x32xf32>
    %603 = arith.addf %584, %602 : vector<2x32xf32>
    %604 = math.tanh %603 : vector<2x32xf32>
    %cst_261 = arith.constant 1.000000e+00 : f32
    %605 = vector.broadcast %cst_261 : f32 to vector<2x32xf32>
    %606 = arith.subf %605, %601 : vector<2x32xf32>
    %607 = arith.mulf %606, %604 : vector<2x32xf32>
    %608 = arith.mulf %601, %575 : vector<2x32xf32>
    %609 = arith.addf %607, %608 : vector<2x32xf32>
    %610 = arith.index_cast %578 : i32 to index
    %c0_262 = arith.constant 0 : index
    %611 = vector.load %arg16[%610, %c0_262] : memref<16x32xf32, #tpu.memory_space<vmem>>, vector<2x32xf32>
    tpu.vector_store %arg16[%610, %c0_262], %609 {strides = array<i32>} : memref<16x32xf32, #tpu.memory_space<vmem>>, vector<2x32xf32>,
    %c8_i32_263 = arith.constant 8 : i32
    %c0_264 = arith.constant 0 : index
    %c0_265 = arith.constant 0 : index
    %c0_266 = arith.constant 0 : index
    %612 = vector.load %arg11[%c0_264, %c0_265, %c0_266] : memref<2x2x32xf32, #tpu.memory_space<vmem>>, vector<1x2x32xf32>
    %613 = vector.shape_cast %612 : vector<1x2x32xf32> to vector<2x32xf32>
    %614 = vector.shape_cast %303 : vector<2x32xf32> to vector<1x2x32xf32>
    tpu.vector_store %arg11[%c0_264, %c0_265, %c0_266], %614 {strides = array<i32>} : memref<2x2x32xf32, #tpu.memory_space<vmem>>, vector<1x2x32xf32>,
    %c1_267 = arith.constant 1 : index
    %c0_268 = arith.constant 0 : index
    %c0_269 = arith.constant 0 : index
    %615 = vector.load %arg11[%c1_267, %c0_268, %c0_269] : memref<2x2x32xf32, #tpu.memory_space<vmem>>, vector<1x2x32xf32>
    %616 = vector.shape_cast %615 : vector<1x2x32xf32> to vector<2x32xf32>
    %617 = vector.shape_cast %609 : vector<2x32xf32> to vector<1x2x32xf32>
    tpu.vector_store %arg11[%c1_267, %c0_268, %c0_269], %617 {strides = array<i32>} : memref<2x2x32xf32, #tpu.memory_space<vmem>>, vector<1x2x32xf32>,
    %c0_270 = arith.constant 0 : index
    %c0_271 = arith.constant 0 : index
    %618 = vector.load %arg16[%c0_270, %c0_271] : memref<16x32xf32, #tpu.memory_space<vmem>>, vector<16x32xf32>
    %c0_272 = arith.constant 0 : index
    %c0_273 = arith.constant 0 : index
    %619 = vector.load %arg8[%c0_272, %c0_273] : memref<32x128xf32, #tpu.memory_space<vmem>>, vector<32x128xf32>
    %cst_274 = arith.constant dense<0.000000e+00> : vector<16x128xf32>
    %620 = tpu.matmul %618, %619, %cst_274 {dimension_numbers = #tpu.dot_dimension_numbers<[1], [0], [0], [1], [0, 0, 1, 1], [], []>} : vector<16x32xf32>, vector<32x128xf32>, vector<16x128xf32> -> vector<16x128xf32>
    %c0_275 = arith.constant 0 : index
    %c0_276 = arith.constant 0 : index
    %621 = vector.load %arg9[%c0_275, %c0_276] : memref<1x128xf32, #tpu.memory_space<vmem>>, vector<1x128xf32>
    %622 = vector.broadcast %621 : vector<1x128xf32> to vector<16x128xf32>
    %623 = arith.addf %620, %622 : vector<16x128xf32>
    %c0_277 = arith.constant 0 : index
    %c0_278 = arith.constant 0 : index
    %624 = vector.load %arg10[%c0_277, %c0_278] : memref<16x128xf32, #tpu.memory_space<vmem>>, vector<16x128xf32>
    tpu.vector_store %arg10[%c0_277, %c0_278], %623 {strides = array<i32>} : memref<16x128xf32, #tpu.memory_space<vmem>>, vector<16x128xf32>,
    return
  }
  func.func @transform_0(%arg0: i32) -> (i32, i32) {
    %c0_i32 = arith.constant 0 : i32
    %c0_i32_0 = arith.constant 0 : i32
    %c0_i32_1 = arith.constant 0 : i32
    return %c0_i32, %c0_i32_0 : i32, i32
  }
  func.func @transform_1(%arg0: i32) -> (i32, i32, i32) {
    %c0_i32 = arith.constant 0 : i32
    %c0_i32_0 = arith.constant 0 : i32
    %c0_i32_1 = arith.constant 0 : i32
    %c0_i32_2 = arith.constant 0 : i32
    return %c0_i32, %c0_i32_0, %c0_i32_1 : i32, i32, i32
  }
  func.func @transform_2(%arg0: i32) -> (i32, i32, i32) {
    %c0_i32 = arith.constant 0 : i32
    %c0_i32_0 = arith.constant 0 : i32
    %c0_i32_1 = arith.constant 0 : i32
    %c0_i32_2 = arith.constant 0 : i32
    return %c0_i32, %c0_i32_0, %c0_i32_1 : i32, i32, i32
  }
  func.func @transform_3(%arg0: i32) -> (i32, i32, i32) {
    %c0_i32 = arith.constant 0 : i32
    %c0_i32_0 = arith.constant 0 : i32
    %c0_i32_1 = arith.constant 0 : i32
    %c0_i32_2 = arith.constant 0 : i32
    return %c0_i32, %c0_i32_0, %c0_i32_1 : i32, i32, i32
  }
  func.func @transform_4(%arg0: i32) -> (i32, i32, i32) {
    %c0_i32 = arith.constant 0 : i32
    %c0_i32_0 = arith.constant 0 : i32
    %c0_i32_1 = arith.constant 0 : i32
    %c0_i32_2 = arith.constant 0 : i32
    return %c0_i32, %c0_i32_0, %c0_i32_1 : i32, i32, i32
  }
  func.func @transform_5(%arg0: i32) -> (i32, i32, i32) {
    %c0_i32 = arith.constant 0 : i32
    %c0_i32_0 = arith.constant 0 : i32
    %c0_i32_1 = arith.constant 0 : i32
    %c0_i32_2 = arith.constant 0 : i32
    return %c0_i32, %c0_i32_0, %c0_i32_1 : i32, i32, i32
  }
  func.func @transform_6(%arg0: i32) -> (i32, i32, i32) {
    %c0_i32 = arith.constant 0 : i32
    %c0_i32_0 = arith.constant 0 : i32
    %c0_i32_1 = arith.constant 0 : i32
    %c0_i32_2 = arith.constant 0 : i32
    return %c0_i32, %c0_i32_0, %c0_i32_1 : i32, i32, i32
  }
  func.func @transform_7(%arg0: i32) -> (i32, i32) {
    %c0_i32 = arith.constant 0 : i32
    %c0_i32_0 = arith.constant 0 : i32
    %c0_i32_1 = arith.constant 0 : i32
    return %c0_i32, %c0_i32_0 : i32, i32
  }
  func.func @transform_8(%arg0: i32) -> (i32, i32) {
    %c0_i32 = arith.constant 0 : i32
    %c0_i32_0 = arith.constant 0 : i32
    %c0_i32_1 = arith.constant 0 : i32
    return %c0_i32, %c0_i32_0 : i32, i32
  }
  func.func @transform_9(%arg0: i32) -> (i32, i32) {
    %c0_i32 = arith.constant 0 : i32
    %c0_i32_0 = arith.constant 0 : i32
    %c0_i32_1 = arith.constant 0 : i32
    return %c0_i32, %c0_i32_0 : i32, i32
  }
  func.func @transform_10(%arg0: i32) -> (i32, i32, i32) {
    %c0_i32 = arith.constant 0 : i32
    %c0_i32_0 = arith.constant 0 : i32
    %c0_i32_1 = arith.constant 0 : i32
    %c0_i32_2 = arith.constant 0 : i32
    return %c0_i32, %c0_i32_0, %c0_i32_1 : i32, i32, i32
  }
}

</mosaic_0001>

<llo_original>
// kernel: gru_model_forward.1
$region0: #{gru_model_forward.1}
  #allocation0 [shape = 'u32[]', space=smem, size = 0x4, offset = 0x4, fixed_abs, tag = 'smem constant byte address 0x4 - core index']
  #allocation1 [shape = 'u32[144,128]{1,0:T(1,128)}', space=vmem, size = 0x12000, scoped, tag = 'internal scratch']
  #allocation2 [shape = 'f32[16,32]{1,0:T(8,128)}', space=vmem, size = 0x2000, scoped, tag = 'scratch operand']
  #allocation3 [shape = 'f32[16,32]{1,0:T(8,128)}', space=vmem, size = 0x2000, scoped, tag = 'scratch operand']
  #allocation4 [shape = 'f32[16,32]{1,0:T(8,128)}', space=vmem, size = 0x2000, scoped, tag = 'scratch operand']
  #allocation5 [shape = 'f32[16,32]{1,0:T(8,128)}', space=vmem, size = 0x2000, scoped, tag = 'scratch operand']
  #allocation6 [shape = 'f32[16,32]{1,0:T(8,128)}', space=vmem, size = 0x2000, scoped, tag = 'scratch operand']
  %s0 = inlined_call_operand.vmem [shape: f32[16,16], index: 0, kind: input, shape index: {}]
  %s1 = inlined_call_operand.vmem [shape: f32[3,16,32], index: 1, kind: input, shape index: {}]
  %s2 = inlined_call_operand.vmem [shape: f32[3,32,32], index: 2, kind: input, shape index: {}]
  %s3 = inlined_call_operand.vmem [shape: f32[4,1,32], index: 3, kind: input, shape index: {}]
  %s4 = inlined_call_operand.vmem [shape: f32[3,32,32], index: 4, kind: input, shape index: {}]
  %s5 = inlined_call_operand.vmem [shape: f32[3,32,32], index: 5, kind: input, shape index: {}]
  %s6 = inlined_call_operand.vmem [shape: f32[4,1,32], index: 6, kind: input, shape index: {}]
  %s7 = inlined_call_operand.vmem [shape: f32[32,128], index: 7, kind: input, shape index: {}]
  %s8 = inlined_call_operand.vmem [shape: f32[1,128], index: 8, kind: input, shape index: {}]
  %s9 = inlined_call_operand.vmem [shape: f32[16,128], index: 9, kind: output, shape index: {0}]
  %s10 = inlined_call_operand.hbm [shape: f32[2,2,32], index: 10, kind: output, shape index: {1}]
  %11 = xla_tuple %s9, %s10
  %s12 = sld [smem:[#allocation0]]
  $region54: #{gru_model_forward.1} parent=0
    _
  %s14 = ssub.s32 1, %s12
  %s15 = scalar_select 0, %s14, %s12
  $region1: #{gru_model_forward.1} parent=0
    #allocation7 [shape = 'u8[2048]{0}', space=vmem, size = 0x800, scoped, tag = 'output window, operand 1, single buffered']
    #allocation8 [shape = 's32[1]{0}', space=sflag, size = 0x4, scoped, tag = 'scoped memory for gru_model_forward.1']
    %16 = vsyncpa [#allocation8], 0
    // Predicated region
    $region2: #{gru_model_forward.1} parent=1 // pred_check
      _
    $region3: #{gru_model_forward.1} parent=1 // pred_check_branch
      %18 = sbr.rel (0) target = $region5
    $region4: #{gru_model_forward.1} parent=1 // pred_region
      _
    $region5: #{gru_model_forward.1} parent=1 // pred_fallthru
      _
    // Predicated region
    $region6: #{gru_model_forward.1} parent=1 // pred_check
      _
    $region7: #{gru_model_forward.1} parent=1 // pred_check_branch
      %20 = sbr.rel (0) target = $region9
    $region8: #{gru_model_forward.1} parent=1 // pred_region
      _
    $region9: #{gru_model_forward.1} parent=1 // pred_fallthru
      _
    // Predicated region
    $region10: #{gru_model_forward.1} parent=1 // pred_check
      _
    $region11: #{gru_model_forward.1} parent=1 // pred_check_branch
      %22 = sbr.rel (0) target = $region13
    $region12: #{gru_model_forward.1} parent=1 // pred_region
      _
    $region13: #{gru_model_forward.1} parent=1 // pred_fallthru
      _
    // Predicated region
    $region14: #{gru_model_forward.1} parent=1 // pred_check
      _
    $region15: #{gru_model_forward.1} parent=1 // pred_check_branch
      %24 = sbr.rel (0) target = $region17
    $region16: #{gru_model_forward.1} parent=1 // pred_region
      _
    $region17: #{gru_model_forward.1} parent=1 // pred_fallthru
      _
    // Predicated region
    $region18: #{gru_model_forward.1} parent=1 // pred_check
      _
    $region19: #{gru_model_forward.1} parent=1 // pred_check_branch
      %26 = sbr.rel (0) target = $region21
    $region20: #{gru_model_forward.1} parent=1 // pred_region
      _
    $region21: #{gru_model_forward.1} parent=1 // pred_fallthru
      _
    // Predicated region
    $region22: #{gru_model_forward.1} parent=1 // pred_check
      _
    $region23: #{gru_model_forward.1} parent=1 // pred_check_branch
      %28 = sbr.rel (0) target = $region25
    $region24: #{gru_model_forward.1} parent=1 // pred_region
      _
    $region25: #{gru_model_forward.1} parent=1 // pred_fallthru
      _
    // Predicated region
    $region26: #{gru_model_forward.1} parent=1 // pred_check
      _
    $region27: #{gru_model_forward.1} parent=1 // pred_check_branch
      %30 = sbr.rel (0) target = $region29
    $region28: #{gru_model_forward.1} parent=1 // pred_region
      _
    $region29: #{gru_model_forward.1} parent=1 // pred_fallthru
      _
    // Predicated region
    $region30: #{gru_model_forward.1} parent=1 // pred_check
      _
    $region31: #{gru_model_forward.1} parent=1 // pred_check_branch
      %32 = sbr.rel (0) target = $region33
    $region32: #{gru_model_forward.1} parent=1 // pred_region
      _
    $region33: #{gru_model_forward.1} parent=1 // pred_fallthru
      _
    // Predicated region
    $region34: #{gru_model_forward.1} parent=1 // pred_check
      _
    $region35: #{gru_model_forward.1} parent=1 // pred_check_branch
      %34 = sbr.rel (0) target = $region37
    $region36: #{gru_model_forward.1} parent=1 // pred_region
      _
    $region37: #{gru_model_forward.1} parent=1 // pred_fallthru
      _
    %v35 = vld [vmem:[%s0] sm:$0xff]
    %v36 = vld [vmem:[%s0 + $0x8] sm:$0xff]
    %v37 = vld [vmem:[%s1] sm:$0xff]
    %v38 = vld [vmem:[%s1 + $0x8] sm:$0xff]
    %v39 = vld [vmem:[%s3] sm:$0x1]
    %v41 = vlaneseq
    %v42 = vshrl.u32 %v41, 7
    %v43 = vsub.s32 0, %v42
    %v44 = vrot.slane %v39, %v43
    %vm46 = vcmask 130048
    %v48 = vsel %vm46, %v35, 0
    %v51 = vsel %vm46, %v36, 0
    %53 = vmatprep.subr.mxu0 0.0
    %54 = vmatpush1.msra.mxu0 %v37
    %55 = vmatprep.subr.mxu0 0.0
    %56 = vmatpush1.msra.mxu0 %v38
    %57 = vmatprep.subr.mxu0 0.0
    %58 = vmatpush1.msra.mxu0 0.0
    %59 = vmatprep.subr.mxu0 0.0
    %60 = vmatpush1.msra.mxu0 0.0
    %61 = vmatprep.subr.mxu0 0.0
    %62 = vmatpush1.msra.mxu0 0.0
    %63 = vmatprep.subr.mxu0 0.0
    %64 = vmatpush1.msra.mxu0 0.0
    %65 = vmatprep.subr.mxu0 0.0
    %66 = vmatpush1.msra.mxu0 0.0
    %67 = vmatprep.subr.mxu0 0.0
    %68 = vmatpush1.msra.mxu0 0.0
    %69 = vmatprep.subr.mxu0 0.0
    %70 = vmatpush1.msra.mxu0 0.0
    %71 = vmatprep.subr.mxu0 0.0
    %72 = vmatpush1.msra.mxu0 0.0
    %73 = vmatprep.subr.mxu0 0.0
    %74 = vmatpush1.msra.mxu0 0.0
    %75 = vmatprep.subr.mxu0 0.0
    %76 = vmatpush1.msra.mxu0 0.0
    %77 = vmatprep.subr.mxu0 0.0
    %78 = vmatpush1.msra.mxu0 0.0
    %79 = vmatprep.subr.mxu0 0.0
    %80 = vmatpush1.msra.mxu0 0.0
    %81 = vmatprep.subr.mxu0 0.0
    %82 = vmatpush1.msra.mxu0 0.0
    %83 = vmatprep.subr.mxu0 0.0
    %84 = vmatpush1.msra.mxu0 0.0
    %85 = vmatprep.subr.mxu0 0.0
    %86 = vmatpush1.msra.mxu0 0.0
    %87 = vmatprep.subr.mxu0 0.0
    %88 = vmatpush1.msra.mxu0 0.0
    %89 = vmatprep.subr.mxu0 0.0
    %90 = vmatpush1.msra.mxu0 0.0
    %91 = vmatprep.subr.mxu0 0.0
    %92 = vmatpush1.msra.mxu0 0.0
    %93 = vmatprep.subr.mxu0 0.0
    %94 = vmatpush1.msra.mxu0 0.0
    %95 = vmatprep.subr.mxu0 0.0
    %96 = vmatpush1.msra.mxu0 0.0
    %97 = vmatprep.subr.mxu0 0.0
    %98 = vmatpush1.msra.mxu0 0.0
    %99 = vmatprep.subr.mxu0 0.0
    %100 = vmatpush1.msra.mxu0 0.0
    %101 = vmatprep.subr.mxu0 0.0
    %102 = vmatpush1.msra.mxu0 0.0
    %103 = vmatprep.subr.mxu0 0.0
    %104 = vmatpush1.msra.mxu0 0.0
    %105 = vmatprep.subr.mxu0 0.0
    %106 = vmatpush1.msra.mxu0 0.0
    %107 = vmatprep.subr.mxu0 0.0
    %108 = vmatpush1.msra.mxu0 0.0
    %109 = vmatprep.subr.mxu0 0.0
    %110 = vmatpush1.msra.mxu0 0.0
    %111 = vmatprep.subr.mxu0 0.0
    %112 = vmatpush1.msra.mxu0 0.0
    %113 = vmatprep.subr.mxu0 0.0
    %114 = vmatpush1.msra.mxu0 0.0
    %115 = vmatprep.subr.mxu0 0.0
    %116 = vmatpush1.msra.mxu0 0.0
    %117 = vmatprep.mubr.f32.mxu0 0.0
    %118 = vmatmul.mubr.f32.gmra.mrb[0].mxu0 %v48
    %v119 = vpop.f32.mrb[0].mxu0
    %v120 = vadd.f32 %v44, %v119
    %v121 = vpop.f32.mrb[0].mxu0
    %122 = vmatprep.mubr.f32.mxu0 0.0
    %123 = vmatmul.mubr.f32.gmra.mrb[0].mxu0 %v51
    %v124 = vpop.f32.mrb[0].mxu0
    %v125 = vadd.f32 %v44, %v124
    %v126 = vpop.f32.mrb[0].mxu0
    %127 = vdwg.mxu0
    %vm128 = vcmask 261120
    %129 = vst.msk [vmem:[#allocation2] sm:$0xff] %vm128, %v120
    %130 = vst.msk [vmem:[#allocation2 + $0x8] sm:$0xff] %vm128, %v125
    %s131 = scalar_lea.vmem %s1, 16
    %v132 = vld [vmem:[%s131] sm:$0xff]
    %v133 = vld [vmem:[%s131 + $0x8] sm:$0xff]
    %s134 = scalar_lea.vmem %s3, 1
    %v135 = vld [vmem:[%s134] sm:$0x1]
    %v137 = vlaneseq
    %v138 = vshrl.u32 %v137, 7
    %v139 = vsub.s32 0, %v138
    %v140 = vrot.slane %v135, %v139
    %142 = vmatprep.subr.mxu0 0.0
    %143 = vmatpush1.msra.mxu0 %v132
    %144 = vmatprep.subr.mxu0 0.0
    %145 = vmatpush1.msra.mxu0 %v133
    %146 = vmatprep.subr.mxu0 0.0
    %147 = vmatpush1.msra.mxu0 0.0
    %148 = vmatprep.subr.mxu0 0.0
    %149 = vmatpush1.msra.mxu0 0.0
    %150 = vmatprep.subr.mxu0 0.0
    %151 = vmatpush1.msra.mxu0 0.0
    %152 = vmatprep.subr.mxu0 0.0
    %153 = vmatpush1.msra.mxu0 0.0
    %154 = vmatprep.subr.mxu0 0.0
    %155 = vmatpush1.msra.mxu0 0.0
    %156 = vmatprep.subr.mxu0 0.0
    %157 = vmatpush1.msra.mxu0 0.0
    %158 = vmatprep.subr.mxu0 0.0
    %159 = vmatpush1.msra.mxu0 0.0
    %160 = vmatprep.subr.mxu0 0.0
    %161 = vmatpush1.msra.mxu0 0.0
    %162 = vmatprep.subr.mxu0 0.0
    %163 = vmatpush1.msra.mxu0 0.0
    %164 = vmatprep.subr.mxu0 0.0
    %165 = vmatpush1.msra.mxu0 0.0
    %166 = vmatprep.subr.mxu0 0.0
    %167 = vmatpush1.msra.mxu0 0.0
    %168 = vmatprep.subr.mxu0 0.0
    %169 = vmatpush1.msra.mxu0 0.0
    %170 = vmatprep.subr.mxu0 0.0
    %171 = vmatpush1.msra.mxu0 0.0
    %172 = vmatprep.subr.mxu0 0.0
    %173 = vmatpush1.msra.mxu0 0.0
    %174 = vmatprep.subr.mxu0 0.0
    %175 = vmatpush1.msra.mxu0 0.0
    %176 = vmatprep.subr.mxu0 0.0
    %177 = vmatpush1.msra.mxu0 0.0
    %178 = vmatprep.subr.mxu0 0.0
    %179 = vmatpush1.msra.mxu0 0.0
    %180 = vmatprep.subr.mxu0 0.0
    %181 = vmatpush1.msra.mxu0 0.0
    %182 = vmatprep.subr.mxu0 0.0
    %183 = vmatpush1.msra.mxu0 0.0
    %184 = vmatprep.subr.mxu0 0.0
    %185 = vmatpush1.msra.mxu0 0.0
    %186 = vmatprep.subr.mxu0 0.0
    %187 = vmatpush1.msra.mxu0 0.0
    %188 = vmatprep.subr.mxu0 0.0
    %189 = vmatpush1.msra.mxu0 0.0
    %190 = vmatprep.subr.mxu0 0.0
    %191 = vmatpush1.msra.mxu0 0.0
    %192 = vmatprep.subr.mxu0 0.0
    %193 = vmatpush1.msra.mxu0 0.0
    %194 = vmatprep.subr.mxu0 0.0
    %195 = vmatpush1.msra.mxu0 0.0
    %196 = vmatprep.subr.mxu0 0.0
    %197 = vmatpush1.msra.mxu0 0.0
    %198 = vmatprep.subr.mxu0 0.0
    %199 = vmatpush1.msra.mxu0 0.0
    %200 = vmatprep.subr.mxu0 0.0
    %201 = vmatpush1.msra.mxu0 0.0
    %202 = vmatprep.subr.mxu0 0.0
    %203 = vmatpush1.msra.mxu0 0.0
    %204 = vmatprep.subr.mxu0 0.0
    %205 = vmatpush1.msra.mxu0 0.0
    %206 = vmatprep.mubr.f32.mxu0 0.0
    %207 = vmatmul.mubr.f32.gmra.mrb[0].mxu0 %v48
    %v208 = vpop.f32.mrb[0].mxu0
    %v209 = vadd.f32 %v140, %v208
    %v210 = vpop.f32.mrb[0].mxu0
    %211 = vmatprep.mubr.f32.mxu0 0.0
    %212 = vmatmul.mubr.f32.gmra.mrb[0].mxu0 %v51
    %v213 = vpop.f32.mrb[0].mxu0
    %v214 = vadd.f32 %v140, %v213
    %v215 = vpop.f32.mrb[0].mxu0
    %216 = vdwg.mxu0
    %217 = vst.msk [vmem:[#allocation3] sm:$0xff] %vm128, %v209
    %218 = vst.msk [vmem:[#allocation3 + $0x8] sm:$0xff] %vm128, %v214
    %s219 = scalar_lea.vmem %s1, 32
    %v220 = vld [vmem:[%s219] sm:$0xff]
    %v221 = vld [vmem:[%s219 + $0x8] sm:$0xff]
    %s222 = scalar_lea.vmem %s3, 2
    %v223 = vld [vmem:[%s222] sm:$0x1]
    %v225 = vlaneseq
    %v226 = vshrl.u32 %v225, 7
    %v227 = vsub.s32 0, %v226
    %v228 = vrot.slane %v223, %v227
    %230 = vmatprep.subr.mxu0 0.0
    %231 = vmatpush1.msra.mxu0 %v220
    %232 = vmatprep.subr.mxu0 0.0
    %233 = vmatpush1.msra.mxu0 %v221
    %234 = vmatprep.subr.mxu0 0.0
    %235 = vmatpush1.msra.mxu0 0.0
    %236 = vmatprep.subr.mxu0 0.0
    %237 = vmatpush1.msra.mxu0 0.0
    %238 = vmatprep.subr.mxu0 0.0
    %239 = vmatpush1.msra.mxu0 0.0
    %240 = vmatprep.subr.mxu0 0.0
    %241 = vmatpush1.msra.mxu0 0.0
    %242 = vmatprep.subr.mxu0 0.0
    %243 = vmatpush1.msra.mxu0 0.0
    %244 = vmatprep.subr.mxu0 0.0
    %245 = vmatpush1.msra.mxu0 0.0
    %246 = vmatprep.subr.mxu0 0.0
    %247 = vmatpush1.msra.mxu0 0.0
    %248 = vmatprep.subr.mxu0 0.0
    %249 = vmatpush1.msra.mxu0 0.0
    %250 = vmatprep.subr.mxu0 0.0
    %251 = vmatpush1.msra.mxu0 0.0
    %252 = vmatprep.subr.mxu0 0.0
    %253 = vmatpush1.msra.mxu0 0.0
    %254 = vmatprep.subr.mxu0 0.0
    %255 = vmatpush1.msra.mxu0 0.0
    %256 = vmatprep.subr.mxu0 0.0
    %257 = vmatpush1.msra.mxu0 0.0
    %258 = vmatprep.subr.mxu0 0.0
    %259 = vmatpush1.msra.mxu0 0.0
    %260 = vmatprep.subr.mxu0 0.0
    %261 = vmatpush1.msra.mxu0 0.0
    %262 = vmatprep.subr.mxu0 0.0
    %263 = vmatpush1.msra.mxu0 0.0
    %264 = vmatprep.subr.mxu0 0.0
    %265 = vmatpush1.msra.mxu0 0.0
    %266 = vmatprep.subr.mxu0 0.0
    %267 = vmatpush1.msra.mxu0 0.0
    %268 = vmatprep.subr.mxu0 0.0
    %269 = vmatpush1.msra.mxu0 0.0
    %270 = vmatprep.subr.mxu0 0.0
    %271 = vmatpush1.msra.mxu0 0.0
    %272 = vmatprep.subr.mxu0 0.0
    %273 = vmatpush1.msra.mxu0 0.0
    %274 = vmatprep.subr.mxu0 0.0
    %275 = vmatpush1.msra.mxu0 0.0
    %276 = vmatprep.subr.mxu0 0.0
    %277 = vmatpush1.msra.mxu0 0.0
    %278 = vmatprep.subr.mxu0 0.0
    %279 = vmatpush1.msra.mxu0 0.0
    %280 = vmatprep.subr.mxu0 0.0
    %281 = vmatpush1.msra.mxu0 0.0
    %282 = vmatprep.subr.mxu0 0.0
    %283 = vmatpush1.msra.mxu0 0.0
    %284 = vmatprep.subr.mxu0 0.0
    %285 = vmatpush1.msra.mxu0 0.0
    %286 = vmatprep.subr.mxu0 0.0
    %287 = vmatpush1.msra.mxu0 0.0
    %288 = vmatprep.subr.mxu0 0.0
    %289 = vmatpush1.msra.mxu0 0.0
    %290 = vmatprep.subr.mxu0 0.0
    %291 = vmatpush1.msra.mxu0 0.0
    %292 = vmatprep.subr.mxu0 0.0
    %293 = vmatpush1.msra.mxu0 0.0
    %294 = vmatprep.mubr.f32.mxu0 0.0
    %295 = vmatmul.mubr.f32.gmra.mrb[0].mxu0 %v48
    %v296 = vpop.f32.mrb[0].mxu0
    %v297 = vadd.f32 %v228, %v296
    %v298 = vpop.f32.mrb[0].mxu0
    %299 = vmatprep.mubr.f32.mxu0 0.0
    %300 = vmatmul.mubr.f32.gmra.mrb[0].mxu0 %v51
    %v301 = vpop.f32.mrb[0].mxu0
    %v302 = vadd.f32 %v228, %v301
    %v303 = vpop.f32.mrb[0].mxu0
    %304 = vdwg.mxu0
    %305 = vst.msk [vmem:[#allocation4] sm:$0xff] %vm128, %v297
    %306 = vst.msk [vmem:[#allocation4 + $0x8] sm:$0xff] %vm128, %v302
    %v307 = vld [vmem:[%s2] sm:$0xff]
    %v308 = vld [vmem:[%s2 + $0x8] sm:$0xff]
    %v309 = vld [vmem:[%s2 + $0x10] sm:$0xff]
    %v310 = vld [vmem:[%s2 + $0x18] sm:$0xff]
    %s311 = scalar_lea.vmem %s2, 32
    %v312 = vld [vmem:[%s311] sm:$0xff]
    %v313 = vld [vmem:[%s311 + $0x8] sm:$0xff]
    %v314 = vld [vmem:[%s311 + $0x10] sm:$0xff]
    %v315 = vld [vmem:[%s311 + $0x18] sm:$0xff]
    %s316 = scalar_lea.vmem %s2, 64
    %v317 = vld [vmem:[%s316] sm:$0xff]
    %v318 = vld [vmem:[%s316 + $0x8] sm:$0xff]
    %v319 = vld [vmem:[%s316 + $0x10] sm:$0xff]
    %v320 = vld [vmem:[%s316 + $0x18] sm:$0xff]
    %s321 = scalar_lea.vmem %s3, 3
    %v322 = vld [vmem:[%s321] sm:$0x1]
    %v323 = vld [vmem:[#allocation2] sm:$0x3]
    %v324 = vld [vmem:[#allocation3] sm:$0x3]
    %v325 = vld [vmem:[#allocation4] sm:$0x3]
    %v327 = vsel %vm128, 0.0, 0
    %329 = vmatprep.subr.mxu0 0.0
    %330 = vmatpush1.msra.mxu0 %v307
    %331 = vmatprep.subr.mxu0 0.0
    %332 = vmatpush1.msra.mxu0 %v308
    %333 = vmatprep.subr.mxu0 0.0
    %334 = vmatpush1.msra.mxu0 %v309
    %335 = vmatprep.subr.mxu0 0.0
    %336 = vmatpush1.msra.mxu0 %v310
    %337 = vmatprep.subr.mxu0 0.0
    %338 = vmatpush1.msra.mxu0 0.0
    %339 = vmatprep.subr.mxu0 0.0
    %340 = vmatpush1.msra.mxu0 0.0
    %341 = vmatprep.subr.mxu0 0.0
    %342 = vmatpush1.msra.mxu0 0.0
    %343 = vmatprep.subr.mxu0 0.0
    %344 = vmatpush1.msra.mxu0 0.0
    %345 = vmatprep.subr.mxu0 0.0
    %346 = vmatpush1.msra.mxu0 0.0
    %347 = vmatprep.subr.mxu0 0.0
    %348 = vmatpush1.msra.mxu0 0.0
    %349 = vmatprep.subr.mxu0 0.0
    %350 = vmatpush1.msra.mxu0 0.0
    %351 = vmatprep.subr.mxu0 0.0
    %352 = vmatpush1.msra.mxu0 0.0
    %353 = vmatprep.subr.mxu0 0.0
    %354 = vmatpush1.msra.mxu0 0.0
    %355 = vmatprep.subr.mxu0 0.0
    %356 = vmatpush1.msra.mxu0 0.0
    %357 = vmatprep.subr.mxu0 0.0
    %358 = vmatpush1.msra.mxu0 0.0
    %359 = vmatprep.subr.mxu0 0.0
    %360 = vmatpush1.msra.mxu0 0.0
    %361 = vmatprep.subr.mxu0 0.0
    %362 = vmatpush1.msra.mxu0 0.0
    %363 = vmatprep.subr.mxu0 0.0
    %364 = vmatpush1.msra.mxu0 0.0
    %365 = vmatprep.subr.mxu0 0.0
    %366 = vmatpush1.msra.mxu0 0.0
    %367 = vmatprep.subr.mxu0 0.0
    %368 = vmatpush1.msra.mxu0 0.0
    %369 = vmatprep.subr.mxu0 0.0
    %370 = vmatpush1.msra.mxu0 0.0
    %371 = vmatprep.subr.mxu0 0.0
    %372 = vmatpush1.msra.mxu0 0.0
    %373 = vmatprep.subr.mxu0 0.0
    %374 = vmatpush1.msra.mxu0 0.0
    %375 = vmatprep.subr.mxu0 0.0
    %376 = vmatpush1.msra.mxu0 0.0
    %377 = vmatprep.subr.mxu0 0.0
    %378 = vmatpush1.msra.mxu0 0.0
    %379 = vmatprep.subr.mxu0 0.0
    %380 = vmatpush1.msra.mxu0 0.0
    %381 = vmatprep.subr.mxu0 0.0
    %382 = vmatpush1.msra.mxu0 0.0
    %383 = vmatprep.subr.mxu0 0.0
    %384 = vmatpush1.msra.mxu0 0.0
    %385 = vmatprep.subr.mxu0 0.0
    %386 = vmatpush1.msra.mxu0 0.0
    %387 = vmatprep.subr.mxu0 0.0
    %388 = vmatpush1.msra.mxu0 0.0
    %389 = vmatprep.subr.mxu0 0.0
    %390 = vmatpush1.msra.mxu0 0.0
    %391 = vmatprep.subr.mxu0 0.0
    %392 = vmatpush1.msra.mxu0 0.0
    %393 = vmatprep.mubr.f32.mxu0 0.0
    %394 = vmatmul.mubr.f32.gmra.mrb[0].mxu0 %v327
    %v395 = vpop.f32.mrb[0].mxu0
    %v396 = vadd.f32 0.0, %v395
    %v397 = vpop.f32.mrb[0].mxu0
    %398 = vdwg.mxu0
    %399 = vmatprep.subr.mxu0 0.0
    %400 = vmatpush1.msra.mxu0 %v312
    %401 = vmatprep.subr.mxu0 0.0
    %402 = vmatpush1.msra.mxu0 %v313
    %403 = vmatprep.subr.mxu0 0.0
    %404 = vmatpush1.msra.mxu0 %v314
    %405 = vmatprep.subr.mxu0 0.0
    %406 = vmatpush1.msra.mxu0 %v315
    %407 = vmatprep.subr.mxu0 0.0
    %408 = vmatpush1.msra.mxu0 0.0
    %409 = vmatprep.subr.mxu0 0.0
    %410 = vmatpush1.msra.mxu0 0.0
    %411 = vmatprep.subr.mxu0 0.0
    %412 = vmatpush1.msra.mxu0 0.0
    %413 = vmatprep.subr.mxu0 0.0
    %414 = vmatpush1.msra.mxu0 0.0
    %415 = vmatprep.subr.mxu0 0.0
    %416 = vmatpush1.msra.mxu0 0.0
    %417 = vmatprep.subr.mxu0 0.0
    %418 = vmatpush1.msra.mxu0 0.0
    %419 = vmatprep.subr.mxu0 0.0
    %420 = vmatpush1.msra.mxu0 0.0
    %421 = vmatprep.subr.mxu0 0.0
    %422 = vmatpush1.msra.mxu0 0.0
    %423 = vmatprep.subr.mxu0 0.0
    %424 = vmatpush1.msra.mxu0 0.0
    %425 = vmatprep.subr.mxu0 0.0
    %426 = vmatpush1.msra.mxu0 0.0
    %427 = vmatprep.subr.mxu0 0.0
    %428 = vmatpush1.msra.mxu0 0.0
    %429 = vmatprep.subr.mxu0 0.0
    %430 = vmatpush1.msra.mxu0 0.0
    %431 = vmatprep.subr.mxu0 0.0
    %432 = vmatpush1.msra.mxu0 0.0
    %433 = vmatprep.subr.mxu0 0.0
    %434 = vmatpush1.msra.mxu0 0.0
    %435 = vmatprep.subr.mxu0 0.0
    %436 = vmatpush1.msra.mxu0 0.0
    %437 = vmatprep.subr.mxu0 0.0
    %438 = vmatpush1.msra.mxu0 0.0
    %439 = vmatprep.subr.mxu0 0.0
    %440 = vmatpush1.msra.mxu0 0.0
    %441 = vmatprep.subr.mxu0 0.0
    %442 = vmatpush1.msra.mxu0 0.0
    %443 = vmatprep.subr.mxu0 0.0
    %444 = vmatpush1.msra.mxu0 0.0
    %445 = vmatprep.subr.mxu0 0.0
    %446 = vmatpush1.msra.mxu0 0.0
    %447 = vmatprep.subr.mxu0 0.0
    %448 = vmatpush1.msra.mxu0 0.0
    %449 = vmatprep.subr.mxu0 0.0
    %450 = vmatpush1.msra.mxu0 0.0
    %451 = vmatprep.subr.mxu0 0.0
    %452 = vmatpush1.msra.mxu0 0.0
    %453 = vmatprep.subr.mxu0 0.0
    %454 = vmatpush1.msra.mxu0 0.0
    %455 = vmatprep.subr.mxu0 0.0
    %456 = vmatpush1.msra.mxu0 0.0
    %457 = vmatprep.subr.mxu0 0.0
    %458 = vmatpush1.msra.mxu0 0.0
    %459 = vmatprep.subr.mxu0 0.0
    %460 = vmatpush1.msra.mxu0 0.0
    %461 = vmatprep.subr.mxu0 0.0
    %462 = vmatpush1.msra.mxu0 0.0
    %463 = vmatprep.mubr.f32.mxu0 0.0
    %464 = vmatmul.mubr.f32.gmra.mrb[0].mxu0 %v327
    %v465 = vpop.f32.mrb[0].mxu0
    %v466 = vadd.f32 0.0, %v465
    %v467 = vpop.f32.mrb[0].mxu0
    %468 = vdwg.mxu0
    %v470 = vlaneseq
    %v471 = vshrl.u32 %v470, 7
    %v472 = vsub.s32 0, %v471
    %v473 = vrot.slane %v322, %v472
    %475 = vmatprep.subr.mxu0 0.0
    %476 = vmatpush1.msra.mxu0 %v317
    %477 = vmatprep.subr.mxu0 0.0
    %478 = vmatpush1.msra.mxu0 %v318
    %479 = vmatprep.subr.mxu0 0.0
    %480 = vmatpush1.msra.mxu0 %v319
    %481 = vmatprep.subr.mxu0 0.0
    %482 = vmatpush1.msra.mxu0 %v320
    %483 = vmatprep.subr.mxu0 0.0
    %484 = vmatpush1.msra.mxu0 0.0
    %485 = vmatprep.subr.mxu0 0.0
    %486 = vmatpush1.msra.mxu0 0.0
    %487 = vmatprep.subr.mxu0 0.0
    %488 = vmatpush1.msra.mxu0 0.0
    %489 = vmatprep.subr.mxu0 0.0
    %490 = vmatpush1.msra.mxu0 0.0
    %491 = vmatprep.subr.mxu0 0.0
    %492 = vmatpush1.msra.mxu0 0.0
    %493 = vmatprep.subr.mxu0 0.0
    %494 = vmatpush1.msra.mxu0 0.0
    %495 = vmatprep.subr.mxu0 0.0
    %496 = vmatpush1.msra.mxu0 0.0
    %497 = vmatprep.subr.mxu0 0.0
    %498 = vmatpush1.msra.mxu0 0.0
    %499 = vmatprep.subr.mxu0 0.0
    %500 = vmatpush1.msra.mxu0 0.0
    %501 = vmatprep.subr.mxu0 0.0
    %502 = vmatpush1.msra.mxu0 0.0
    %503 = vmatprep.subr.mxu0 0.0
    %504 = vmatpush1.msra.mxu0 0.0
    %505 = vmatprep.subr.mxu0 0.0
    %506 = vmatpush1.msra.mxu0 0.0
    %507 = vmatprep.subr.mxu0 0.0
    %508 = vmatpush1.msra.mxu0 0.0
    %509 = vmatprep.subr.mxu0 0.0
    %510 = vmatpush1.msra.mxu0 0.0
    %511 = vmatprep.subr.mxu0 0.0
    %512 = vmatpush1.msra.mxu0 0.0
    %513 = vmatprep.subr.mxu0 0.0
    %514 = vmatpush1.msra.mxu0 0.0
    %515 = vmatprep.subr.mxu0 0.0
    %516 = vmatpush1.msra.mxu0 0.0
    %517 = vmatprep.subr.mxu0 0.0
    %518 = vmatpush1.msra.mxu0 0.0
    %519 = vmatprep.subr.mxu0 0.0
    %520 = vmatpush1.msra.mxu0 0.0
    %521 = vmatprep.subr.mxu0 0.0
    %522 = vmatpush1.msra.mxu0 0.0
    %523 = vmatprep.subr.mxu0 0.0
    %524 = vmatpush1.msra.mxu0 0.0
    %525 = vmatprep.subr.mxu0 0.0
    %526 = vmatpush1.msra.mxu0 0.0
    %527 = vmatprep.subr.mxu0 0.0
    %528 = vmatpush1.msra.mxu0 0.0
    %529 = vmatprep.subr.mxu0 0.0
    %530 = vmatpush1.msra.mxu0 0.0
    %531 = vmatprep.subr.mxu0 0.0
    %532 = vmatpush1.msra.mxu0 0.0
    %533 = vmatprep.subr.mxu0 0.0
    %534 = vmatpush1.msra.mxu0 0.0
    %535 = vmatprep.subr.mxu0 0.0
    %536 = vmatpush1.msra.mxu0 0.0
    %537 = vmatprep.subr.mxu0 0.0
    %538 = vmatpush1.msra.mxu0 0.0
    %539 = vmatprep.mubr.f32.mxu0 0.0
    %540 = vmatmul.mubr.f32.gmra.mrb[0].mxu0 %v327
    %v541 = vpop.f32.mrb[0].mxu0
    %v542 = vadd.f32 %v473, %v541
    %v543 = vpop.f32.mrb[0].mxu0
    %544 = vdwg.mxu0
    %v545 = vadd.f32 %v323, %v396
    %v546 = vxor.u32 %v545, 2147483648
    %v547 = vmul.f32 %v546, 1.442695
    %v548 = vpow.pop %v547
    %v549 = vadd.f32 %v548, 1.0
    %v550 = vrcp.pop %v549
    %v551 = vmul.f32 1.0, %v550
    %v552 = vadd.f32 %v324, %v466
    %v553 = vxor.u32 %v552, 2147483648
    %v554 = vmul.f32 %v553, 1.442695
    %v555 = vpow.pop %v554
    %v556 = vadd.f32 %v555, 1.0
    %v557 = vrcp.pop %v556
    %v558 = vmul.f32 1.0, %v557
    %v559 = vmul.f32 %v551, %v542
    %v560 = vadd.f32 %v325, %v559
    %v561 = vtanh.pop %v560
    %v562 = vsub.f32 1.0, %v558
    %v563 = vmul.f32 %v562, %v561
    %v564 = vmul.f32 %v558, 0.0
    %v565 = vadd.f32 %v563, %v564
    %vm566 = vcmask 254976
    %567 = vst.msk [vmem:[#allocation5] sm:$0x3] %vm566, %v565
    %v568 = vld [vmem:[#allocation2 + $0x2] sm:$0x3]
    %v569 = vld [vmem:[#allocation3 + $0x2] sm:$0x3]
    %v570 = vld [vmem:[#allocation4 + $0x2] sm:$0x3]
    %v572 = vsel %vm128, %v565, 0
    %574 = vmatprep.subr.mxu0 0.0
    %575 = vmatpush1.msra.mxu0 %v307
    %576 = vmatprep.subr.mxu0 0.0
    %577 = vmatpush1.msra.mxu0 %v308
    %578 = vmatprep.subr.mxu0 0.0
    %579 = vmatpush1.msra.mxu0 %v309
    %580 = vmatprep.subr.mxu0 0.0
    %581 = vmatpush1.msra.mxu0 %v310
    %582 = vmatprep.subr.mxu0 0.0
    %583 = vmatpush1.msra.mxu0 0.0
    %584 = vmatprep.subr.mxu0 0.0
    %585 = vmatpush1.msra.mxu0 0.0
    %586 = vmatprep.subr.mxu0 0.0
    %587 = vmatpush1.msra.mxu0 0.0
    %588 = vmatprep.subr.mxu0 0.0
    %589 = vmatpush1.msra.mxu0 0.0
    %590 = vmatprep.subr.mxu0 0.0
    %591 = vmatpush1.msra.mxu0 0.0
    %592 = vmatprep.subr.mxu0 0.0
    %593 = vmatpush1.msra.mxu0 0.0
    %594 = vmatprep.subr.mxu0 0.0
    %595 = vmatpush1.msra.mxu0 0.0
    %596 = vmatprep.subr.mxu0 0.0
    %597 = vmatpush1.msra.mxu0 0.0
    %598 = vmatprep.subr.mxu0 0.0
    %599 = vmatpush1.msra.mxu0 0.0
    %600 = vmatprep.subr.mxu0 0.0
    %601 = vmatpush1.msra.mxu0 0.0
    %602 = vmatprep.subr.mxu0 0.0
    %603 = vmatpush1.msra.mxu0 0.0
    %604 = vmatprep.subr.mxu0 0.0
    %605 = vmatpush1.msra.mxu0 0.0
    %606 = vmatprep.subr.mxu0 0.0
    %607 = vmatpush1.msra.mxu0 0.0
    %608 = vmatprep.subr.mxu0 0.0
    %609 = vmatpush1.msra.mxu0 0.0
    %610 = vmatprep.subr.mxu0 0.0
    %611 = vmatpush1.msra.mxu0 0.0
    %612 = vmatprep.subr.mxu0 0.0
    %613 = vmatpush1.msra.mxu0 0.0
    %614 = vmatprep.subr.mxu0 0.0
    %615 = vmatpush1.msra.mxu0 0.0
    %616 = vmatprep.subr.mxu0 0.0
    %617 = vmatpush1.msra.mxu0 0.0
    %618 = vmatprep.subr.mxu0 0.0
    %619 = vmatpush1.msra.mxu0 0.0
    %620 = vmatprep.subr.mxu0 0.0
    %621 = vmatpush1.msra.mxu0 0.0
    %622 = vmatprep.subr.mxu0 0.0
    %623 = vmatpush1.msra.mxu0 0.0
    %624 = vmatprep.subr.mxu0 0.0
    %625 = vmatpush1.msra.mxu0 0.0
    %626 = vmatprep.subr.mxu0 0.0
    %627 = vmatpush1.msra.mxu0 0.0
    %628 = vmatprep.subr.mxu0 0.0
    %629 = vmatpush1.msra.mxu0 0.0
    %630 = vmatprep.subr.mxu0 0.0
    %631 = vmatpush1.msra.mxu0 0.0
    %632 = vmatprep.subr.mxu0 0.0
    %633 = vmatpush1.msra.mxu0 0.0
    %634 = vmatprep.subr.mxu0 0.0
    %635 = vmatpush1.msra.mxu0 0.0
    %636 = vmatprep.subr.mxu0 0.0
    %637 = vmatpush1.msra.mxu0 0.0
    %638 = vmatprep.mubr.f32.mxu0 0.0
    %639 = vmatmul.mubr.f32.gmra.mrb[0].mxu0 %v572
    %v640 = vpop.f32.mrb[0].mxu0
    %v641 = vadd.f32 0.0, %v640
    %v642 = vpop.f32.mrb[0].mxu0
    %643 = vdwg.mxu0
    %644 = vmatprep.subr.mxu0 0.0
    %645 = vmatpush1.msra.mxu0 %v312
    %646 = vmatprep.subr.mxu0 0.0
    %647 = vmatpush1.msra.mxu0 %v313
    %648 = vmatprep.subr.mxu0 0.0
    %649 = vmatpush1.msra.mxu0 %v314
    %650 = vmatprep.subr.mxu0 0.0
    %651 = vmatpush1.msra.mxu0 %v315
    %652 = vmatprep.subr.mxu0 0.0
    %653 = vmatpush1.msra.mxu0 0.0
    %654 = vmatprep.subr.mxu0 0.0
    %655 = vmatpush1.msra.mxu0 0.0
    %656 = vmatprep.subr.mxu0 0.0
    %657 = vmatpush1.msra.mxu0 0.0
    %658 = vmatprep.subr.mxu0 0.0
    %659 = vmatpush1.msra.mxu0 0.0
    %660 = vmatprep.subr.mxu0 0.0
    %661 = vmatpush1.msra.mxu0 0.0
    %662 = vmatprep.subr.mxu0 0.0
    %663 = vmatpush1.msra.mxu0 0.0
    %664 = vmatprep.subr.mxu0 0.0
    %665 = vmatpush1.msra.mxu0 0.0
    %666 = vmatprep.subr.mxu0 0.0
    %667 = vmatpush1.msra.mxu0 0.0
    %668 = vmatprep.subr.mxu0 0.0
    %669 = vmatpush1.msra.mxu0 0.0
    %670 = vmatprep.subr.mxu0 0.0
    %671 = vmatpush1.msra.mxu0 0.0
    %672 = vmatprep.subr.mxu0 0.0
    %673 = vmatpush1.msra.mxu0 0.0
    %674 = vmatprep.subr.mxu0 0.0
    %675 = vmatpush1.msra.mxu0 0.0
    %676 = vmatprep.subr.mxu0 0.0
    %677 = vmatpush1.msra.mxu0 0.0
    %678 = vmatprep.subr.mxu0 0.0
    %679 = vmatpush1.msra.mxu0 0.0
    %680 = vmatprep.subr.mxu0 0.0
    %681 = vmatpush1.msra.mxu0 0.0
    %682 = vmatprep.subr.mxu0 0.0
    %683 = vmatpush1.msra.mxu0 0.0
    %684 = vmatprep.subr.mxu0 0.0
    %685 = vmatpush1.msra.mxu0 0.0
    %686 = vmatprep.subr.mxu0 0.0
    %687 = vmatpush1.msra.mxu0 0.0
    %688 = vmatprep.subr.mxu0 0.0
    %689 = vmatpush1.msra.mxu0 0.0
    %690 = vmatprep.subr.mxu0 0.0
    %691 = vmatpush1.msra.mxu0 0.0
    %692 = vmatprep.subr.mxu0 0.0
    %693 = vmatpush1.msra.mxu0 0.0
    %694 = vmatprep.subr.mxu0 0.0
    %695 = vmatpush1.msra.mxu0 0.0
    %696 = vmatprep.subr.mxu0 0.0
    %697 = vmatpush1.msra.mxu0 0.0
    %698 = vmatprep.subr.mxu0 0.0
    %699 = vmatpush1.msra.mxu0 0.0
    %700 = vmatprep.subr.mxu0 0.0
    %701 = vmatpush1.msra.mxu0 0.0
    %702 = vmatprep.subr.mxu0 0.0
    %703 = vmatpush1.msra.mxu0 0.0
    %704 = vmatprep.subr.mxu0 0.0
    %705 = vmatpush1.msra.mxu0 0.0
    %706 = vmatprep.subr.mxu0 0.0
    %707 = vmatpush1.msra.mxu0 0.0
    %708 = vmatprep.mubr.f32.mxu0 0.0
    %709 = vmatmul.mubr.f32.gmra.mrb[0].mxu0 %v572
    %v710 = vpop.f32.mrb[0].mxu0
    %v711 = vadd.f32 0.0, %v710
    %v712 = vpop.f32.mrb[0].mxu0
    %713 = vdwg.mxu0
    %714 = vmatprep.subr.mxu0 0.0
    %715 = vmatpush1.msra.mxu0 %v317
    %716 = vmatprep.subr.mxu0 0.0
    %717 = vmatpush1.msra.mxu0 %v318
    %718 = vmatprep.subr.mxu0 0.0
    %719 = vmatpush1.msra.mxu0 %v319
    %720 = vmatprep.subr.mxu0 0.0
    %721 = vmatpush1.msra.mxu0 %v320
    %722 = vmatprep.subr.mxu0 0.0
    %723 = vmatpush1.msra.mxu0 0.0
    %724 = vmatprep.subr.mxu0 0.0
    %725 = vmatpush1.msra.mxu0 0.0
    %726 = vmatprep.subr.mxu0 0.0
    %727 = vmatpush1.msra.mxu0 0.0
    %728 = vmatprep.subr.mxu0 0.0
    %729 = vmatpush1.msra.mxu0 0.0
    %730 = vmatprep.subr.mxu0 0.0
    %731 = vmatpush1.msra.mxu0 0.0
    %732 = vmatprep.subr.mxu0 0.0
    %733 = vmatpush1.msra.mxu0 0.0
    %734 = vmatprep.subr.mxu0 0.0
    %735 = vmatpush1.msra.mxu0 0.0
    %736 = vmatprep.subr.mxu0 0.0
    %737 = vmatpush1.msra.mxu0 0.0
    %738 = vmatprep.subr.mxu0 0.0
    %739 = vmatpush1.msra.mxu0 0.0
    %740 = vmatprep.subr.mxu0 0.0
    %741 = vmatpush1.msra.mxu0 0.0
    %742 = vmatprep.subr.mxu0 0.0
    %743 = vmatpush1.msra.mxu0 0.0
    %744 = vmatprep.subr.mxu0 0.0
    %745 = vmatpush1.msra.mxu0 0.0
    %746 = vmatprep.subr.mxu0 0.0
    %747 = vmatpush1.msra.mxu0 0.0
    %748 = vmatprep.subr.mxu0 0.0
    %749 = vmatpush1.msra.mxu0 0.0
    %750 = vmatprep.subr.mxu0 0.0
    %751 = vmatpush1.msra.mxu0 0.0
    %752 = vmatprep.subr.mxu0 0.0
    %753 = vmatpush1.msra.mxu0 0.0
    %754 = vmatprep.subr.mxu0 0.0
    %755 = vmatpush1.msra.mxu0 0.0
    %756 = vmatprep.subr.mxu0 0.0
    %757 = vmatpush1.msra.mxu0 0.0
    %758 = vmatprep.subr.mxu0 0.0
    %759 = vmatpush1.msra.mxu0 0.0
    %760 = vmatprep.subr.mxu0 0.0
    %761 = vmatpush1.msra.mxu0 0.0
    %762 = vmatprep.subr.mxu0 0.0
    %763 = vmatpush1.msra.mxu0 0.0
    %764 = vmatprep.subr.mxu0 0.0
    %765 = vmatpush1.msra.mxu0 0.0
    %766 = vmatprep.subr.mxu0 0.0
    %767 = vmatpush1.msra.mxu0 0.0
    %768 = vmatprep.subr.mxu0 0.0
    %769 = vmatpush1.msra.mxu0 0.0
    %770 = vmatprep.subr.mxu0 0.0
    %771 = vmatpush1.msra.mxu0 0.0
    %772 = vmatprep.subr.mxu0 0.0
    %773 = vmatpush1.msra.mxu0 0.0
    %774 = vmatprep.subr.mxu0 0.0
    %775 = vmatpush1.msra.mxu0 0.0
    %776 = vmatprep.subr.mxu0 0.0
    %777 = vmatpush1.msra.mxu0 0.0
    %778 = vmatprep.mubr.f32.mxu0 0.0
    %779 = vmatmul.mubr.f32.gmra.mrb[0].mxu0 %v572
    %v780 = vpop.f32.mrb[0].mxu0
    %v781 = vadd.f32 %v473, %v780
    %v782 = vpop.f32.mrb[0].mxu0
    %783 = vdwg.mxu0
    %v784 = vadd.f32 %v568, %v641
    %v785 = vxor.u32 %v784, 2147483648
    %v786 = vmul.f32 %v785, 1.442695
    %v787 = vpow.pop %v786
    %v788 = vadd.f32 %v787, 1.0
    %v789 = vrcp.pop %v788
    %v790 = vmul.f32 1.0, %v789
    %v791 = vadd.f32 %v569, %v711
    %v792 = vxor.u32 %v791, 2147483648
    %v793 = vmul.f32 %v792, 1.442695
    %v794 = vpow.pop %v793
    %v795 = vadd.f32 %v794, 1.0
    %v796 = vrcp.pop %v795
    %v797 = vmul.f32 1.0, %v796
    %v798 = vmul.f32 %v790, %v781
    %v799 = vadd.f32 %v570, %v798
    %v800 = vtanh.pop %v799
    %v801 = vsub.f32 1.0, %v797
    %v802 = vmul.f32 %v801, %v800
    %v803 = vmul.f32 %v797, %v565
    %v804 = vadd.f32 %v802, %v803
    %805 = vst.msk [vmem:[#allocation5 + $0x2] sm:$0x3] %vm566, %v804
    %v806 = vld [vmem:[#allocation2 + $0x4] sm:$0x3]
    %v807 = vld [vmem:[#allocation3 + $0x4] sm:$0x3]
    %v808 = vld [vmem:[#allocation4 + $0x4] sm:$0x3]
    %v810 = vsel %vm128, %v804, 0
    %812 = vmatprep.subr.mxu0 0.0
    %813 = vmatpush1.msra.mxu0 %v307
    %814 = vmatprep.subr.mxu0 0.0
    %815 = vmatpush1.msra.mxu0 %v308
    %816 = vmatprep.subr.mxu0 0.0
    %817 = vmatpush1.msra.mxu0 %v309
    %818 = vmatprep.subr.mxu0 0.0
    %819 = vmatpush1.msra.mxu0 %v310
    %820 = vmatprep.subr.mxu0 0.0
    %821 = vmatpush1.msra.mxu0 0.0
    %822 = vmatprep.subr.mxu0 0.0
    %823 = vmatpush1.msra.mxu0 0.0
    %824 = vmatprep.subr.mxu0 0.0
    %825 = vmatpush1.msra.mxu0 0.0
    %826 = vmatprep.subr.mxu0 0.0
    %827 = vmatpush1.msra.mxu0 0.0
    %828 = vmatprep.subr.mxu0 0.0
    %829 = vmatpush1.msra.mxu0 0.0
    %830 = vmatprep.subr.mxu0 0.0
    %831 = vmatpush1.msra.mxu0 0.0
    %832 = vmatprep.subr.mxu0 0.0
    %833 = vmatpush1.msra.mxu0 0.0
    %834 = vmatprep.subr.mxu0 0.0
    %835 = vmatpush1.msra.mxu0 0.0
    %836 = vmatprep.subr.mxu0 0.0
    %837 = vmatpush1.msra.mxu0 0.0
    %838 = vmatprep.subr.mxu0 0.0
    %839 = vmatpush1.msra.mxu0 0.0
    %840 = vmatprep.subr.mxu0 0.0
    %841 = vmatpush1.msra.mxu0 0.0
    %842 = vmatprep.subr.mxu0 0.0
    %843 = vmatpush1.msra.mxu0 0.0
    %844 = vmatprep.subr.mxu0 0.0
    %845 = vmatpush1.msra.mxu0 0.0
    %846 = vmatprep.subr.mxu0 0.0
    %847 = vmatpush1.msra.mxu0 0.0
    %848 = vmatprep.subr.mxu0 0.0
    %849 = vmatpush1.msra.mxu0 0.0
    %850 = vmatprep.subr.mxu0 0.0
    %851 = vmatpush1.msra.mxu0 0.0
    %852 = vmatprep.subr.mxu0 0.0
    %853 = vmatpush1.msra.mxu0 0.0
    %854 = vmatprep.subr.mxu0 0.0
    %855 = vmatpush1.msra.mxu0 0.0
    %856 = vmatprep.subr.mxu0 0.0
    %857 = vmatpush1.msra.mxu0 0.0
    %858 = vmatprep.subr.mxu0 0.0
    %859 = vmatpush1.msra.mxu0 0.0
    %860 = vmatprep.subr.mxu0 0.0
    %861 = vmatpush1.msra.mxu0 0.0
    %862 = vmatprep.subr.mxu0 0.0
    %863 = vmatpush1.msra.mxu0 0.0
    %864 = vmatprep.subr.mxu0 0.0
    %865 = vmatpush1.msra.mxu0 0.0
    %866 = vmatprep.subr.mxu0 0.0
    %867 = vmatpush1.msra.mxu0 0.0
    %868 = vmatprep.subr.mxu0 0.0
    %869 = vmatpush1.msra.mxu0 0.0
    %870 = vmatprep.subr.mxu0 0.0
    %871 = vmatpush1.msra.mxu0 0.0
    %872 = vmatprep.subr.mxu0 0.0
    %873 = vmatpush1.msra.mxu0 0.0
    %874 = vmatprep.subr.mxu0 0.0
    %875 = vmatpush1.msra.mxu0 0.0
    %876 = vmatprep.mubr.f32.mxu0 0.0
    %877 = vmatmul.mubr.f32.gmra.mrb[0].mxu0 %v810
    %v878 = vpop.f32.mrb[0].mxu0
    %v879 = vadd.f32 0.0, %v878
    %v880 = vpop.f32.mrb[0].mxu0
    %881 = vdwg.mxu0
    %882 = vmatprep.subr.mxu0 0.0
    %883 = vmatpush1.msra.mxu0 %v312
    %884 = vmatprep.subr.mxu0 0.0
    %885 = vmatpush1.msra.mxu0 %v313
    %886 = vmatprep.subr.mxu0 0.0
    %887 = vmatpush1.msra.mxu0 %v314
    %888 = vmatprep.subr.mxu0 0.0
    %889 = vmatpush1.msra.mxu0 %v315
    %890 = vmatprep.subr.mxu0 0.0
    %891 = vmatpush1.msra.mxu0 0.0
    %892 = vmatprep.subr.mxu0 0.0
    %893 = vmatpush1.msra.mxu0 0.0
    %894 = vmatprep.subr.mxu0 0.0
    %895 = vmatpush1.msra.mxu0 0.0
    %896 = vmatprep.subr.mxu0 0.0
    %897 = vmatpush1.msra.mxu0 0.0
    %898 = vmatprep.subr.mxu0 0.0
    %899 = vmatpush1.msra.mxu0 0.0
    %900 = vmatprep.subr.mxu0 0.0
    %901 = vmatpush1.msra.mxu0 0.0
    %902 = vmatprep.subr.mxu0 0.0
    %903 = vmatpush1.msra.mxu0 0.0
    %904 = vmatprep.subr.mxu0 0.0
    %905 = vmatpush1.msra.mxu0 0.0
    %906 = vmatprep.subr.mxu0 0.0
    %907 = vmatpush1.msra.mxu0 0.0
    %908 = vmatprep.subr.mxu0 0.0
    %909 = vmatpush1.msra.mxu0 0.0
    %910 = vmatprep.subr.mxu0 0.0
    %911 = vmatpush1.msra.mxu0 0.0
    %912 = vmatprep.subr.mxu0 0.0
    %913 = vmatpush1.msra.mxu0 0.0
    %914 = vmatprep.subr.mxu0 0.0
    %915 = vmatpush1.msra.mxu0 0.0
    %916 = vmatprep.subr.mxu0 0.0
    %917 = vmatpush1.msra.mxu0 0.0
    %918 = vmatprep.subr.mxu0 0.0
    %919 = vmatpush1.msra.mxu0 0.0
    %920 = vmatprep.subr.mxu0 0.0
    %921 = vmatpush1.msra.mxu0 0.0
    %922 = vmatprep.subr.mxu0 0.0
    %923 = vmatpush1.msra.mxu0 0.0
    %924 = vmatprep.subr.mxu0 0.0
    %925 = vmatpush1.msra.mxu0 0.0
    %926 = vmatprep.subr.mxu0 0.0
    %927 = vmatpush1.msra.mxu0 0.0
    %928 = vmatprep.subr.mxu0 0.0
    %929 = vmatpush1.msra.mxu0 0.0
    %930 = vmatprep.subr.mxu0 0.0
    %931 = vmatpush1.msra.mxu0 0.0
    %932 = vmatprep.subr.mxu0 0.0
    %933 = vmatpush1.msra.mxu0 0.0
    %934 = vmatprep.subr.mxu0 0.0
    %935 = vmatpush1.msra.mxu0 0.0
    %936 = vmatprep.subr.mxu0 0.0
    %937 = vmatpush1.msra.mxu0 0.0
    %938 = vmatprep.subr.mxu0 0.0
    %939 = vmatpush1.msra.mxu0 0.0
    %940 = vmatprep.subr.mxu0 0.0
    %941 = vmatpush1.msra.mxu0 0.0
    %942 = vmatprep.subr.mxu0 0.0
    %943 = vmatpush1.msra.mxu0 0.0
    %944 = vmatprep.subr.mxu0 0.0
    %945 = vmatpush1.msra.mxu0 0.0
    %946 = vmatprep.mubr.f32.mxu0 0.0
    %947 = vmatmul.mubr.f32.gmra.mrb[0].mxu0 %v810
    %v948 = vpop.f32.mrb[0].mxu0
    %v949 = vadd.f32 0.0, %v948
    %v950 = vpop.f32.mrb[0].mxu0
    %951 = vdwg.mxu0
    %952 = vmatprep.subr.mxu0 0.0
    %953 = vmatpush1.msra.mxu0 %v317
    %954 = vmatprep.subr.mxu0 0.0
    %955 = vmatpush1.msra.mxu0 %v318
    %956 = vmatprep.subr.mxu0 0.0
    %957 = vmatpush1.msra.mxu0 %v319
    %958 = vmatprep.subr.mxu0 0.0
    %959 = vmatpush1.msra.mxu0 %v320
    %960 = vmatprep.subr.mxu0 0.0
    %961 = vmatpush1.msra.mxu0 0.0
    %962 = vmatprep.subr.mxu0 0.0
    %963 = vmatpush1.msra.mxu0 0.0
    %964 = vmatprep.subr.mxu0 0.0
    %965 = vmatpush1.msra.mxu0 0.0
    %966 = vmatprep.subr.mxu0 0.0
    %967 = vmatpush1.msra.mxu0 0.0
    %968 = vmatprep.subr.mxu0 0.0
    %969 = vmatpush1.msra.mxu0 0.0
    %970 = vmatprep.subr.mxu0 0.0
    %971 = vmatpush1.msra.mxu0 0.0
    %972 = vmatprep.subr.mxu0 0.0
    %973 = vmatpush1.msra.mxu0 0.0
    %974 = vmatprep.subr.mxu0 0.0
    %975 = vmatpush1.msra.mxu0 0.0
    %976 = vmatprep.subr.mxu0 0.0
    %977 = vmatpush1.msra.mxu0 0.0
    %978 = vmatprep.subr.mxu0 0.0
    %979 = vmatpush1.msra.mxu0 0.0
    %980 = vmatprep.subr.mxu0 0.0
    %981 = vmatpush1.msra.mxu0 0.0
    %982 = vmatprep.subr.mxu0 0.0
    %983 = vmatpush1.msra.mxu0 0.0
    %984 = vmatprep.subr.mxu0 0.0
    %985 = vmatpush1.msra.mxu0 0.0
    %986 = vmatprep.subr.mxu0 0.0
    %987 = vmatpush1.msra.mxu0 0.0
    %988 = vmatprep.subr.mxu0 0.0
    %989 = vmatpush1.msra.mxu0 0.0
    %990 = vmatprep.subr.mxu0 0.0
    %991 = vmatpush1.msra.mxu0 0.0
    %992 = vmatprep.subr.mxu0 0.0
    %993 = vmatpush1.msra.mxu0 0.0
    %994 = vmatprep.subr.mxu0 0.0
    %995 = vmatpush1.msra.mxu0 0.0
    %996 = vmatprep.subr.mxu0 0.0
    %997 = vmatpush1.msra.mxu0 0.0
    %998 = vmatprep.subr.mxu0 0.0
    %999 = vmatpush1.msra.mxu0 0.0
    %1000 = vmatprep.subr.mxu0 0.0
    %1001 = vmatpush1.msra.mxu0 0.0
    %1002 = vmatprep.subr.mxu0 0.0
    %1003 = vmatpush1.msra.mxu0 0.0
    %1004 = vmatprep.subr.mxu0 0.0
    %1005 = vmatpush1.msra.mxu0 0.0
    %1006 = vmatprep.subr.mxu0 0.0
    %1007 = vmatpush1.msra.mxu0 0.0
    %1008 = vmatprep.subr.mxu0 0.0
    %1009 = vmatpush1.msra.mxu0 0.0
    %1010 = vmatprep.subr.mxu0 0.0
    %1011 = vmatpush1.msra.mxu0 0.0
    %1012 = vmatprep.subr.mxu0 0.0
    %1013 = vmatpush1.msra.mxu0 0.0
    %1014 = vmatprep.subr.mxu0 0.0
    %1015 = vmatpush1.msra.mxu0 0.0
    %1016 = vmatprep.mubr.f32.mxu0 0.0
    %1017 = vmatmul.mubr.f32.gmra.mrb[0].mxu0 %v810
    %v1018 = vpop.f32.mrb[0].mxu0
    %v1019 = vadd.f32 %v473, %v1018
    %v1020 = vpop.f32.mrb[0].mxu0
    %1021 = vdwg.mxu0
    %v1022 = vadd.f32 %v806, %v879
    %v1023 = vxor.u32 %v1022, 2147483648
    %v1024 = vmul.f32 %v1023, 1.442695
    %v1025 = vpow.pop %v1024
    %v1026 = vadd.f32 %v1025, 1.0
    %v1027 = vrcp.pop %v1026
    %v1028 = vmul.f32 1.0, %v1027
    %v1029 = vadd.f32 %v807, %v949
    %v1030 = vxor.u32 %v1029, 2147483648
    %v1031 = vmul.f32 %v1030, 1.442695
    %v1032 = vpow.pop %v1031
    %v1033 = vadd.f32 %v1032, 1.0
    %v1034 = vrcp.pop %v1033
    %v1035 = vmul.f32 1.0, %v1034
    %v1036 = vmul.f32 %v1028, %v1019
    %v1037 = vadd.f32 %v808, %v1036
    %v1038 = vtanh.pop %v1037
    %v1039 = vsub.f32 1.0, %v1035
    %v1040 = vmul.f32 %v1039, %v1038
    %v1041 = vmul.f32 %v1035, %v804
    %v1042 = vadd.f32 %v1040, %v1041
    %1043 = vst.msk [vmem:[#allocation5 + $0x4] sm:$0x3] %vm566, %v1042
    %v1044 = vld [vmem:[#allocation2 + $0x6] sm:$0x3]
    %v1045 = vld [vmem:[#allocation3 + $0x6] sm:$0x3]
    %v1046 = vld [vmem:[#allocation4 + $0x6] sm:$0x3]
    %v1048 = vsel %vm128, %v1042, 0
    %1050 = vmatprep.subr.mxu0 0.0
    %1051 = vmatpush1.msra.mxu0 %v307
    %1052 = vmatprep.subr.mxu0 0.0
    %1053 = vmatpush1.msra.mxu0 %v308
    %1054 = vmatprep.subr.mxu0 0.0
    %1055 = vmatpush1.msra.mxu0 %v309
    %1056 = vmatprep.subr.mxu0 0.0
    %1057 = vmatpush1.msra.mxu0 %v310
    %1058 = vmatprep.subr.mxu0 0.0
    %1059 = vmatpush1.msra.mxu0 0.0
    %1060 = vmatprep.subr.mxu0 0.0
    %1061 = vmatpush1.msra.mxu0 0.0
    %1062 = vmatprep.subr.mxu0 0.0
    %1063 = vmatpush1.msra.mxu0 0.0
    %1064 = vmatprep.subr.mxu0 0.0
    %1065 = vmatpush1.msra.mxu0 0.0
    %1066 = vmatprep.subr.mxu0 0.0
    %1067 = vmatpush1.msra.mxu0 0.0
    %1068 = vmatprep.subr.mxu0 0.0
    %1069 = vmatpush1.msra.mxu0 0.0
    %1070 = vmatprep.subr.mxu0 0.0
    %1071 = vmatpush1.msra.mxu0 0.0
    %1072 = vmatprep.subr.mxu0 0.0
    %1073 = vmatpush1.msra.mxu0 0.0
    %1074 = vmatprep.subr.mxu0 0.0
    %1075 = vmatpush1.msra.mxu0 0.0
    %1076 = vmatprep.subr.mxu0 0.0
    %1077 = vmatpush1.msra.mxu0 0.0
    %1078 = vmatprep.subr.mxu0 0.0
    %1079 = vmatpush1.msra.mxu0 0.0
    %1080 = vmatprep.subr.mxu0 0.0
    %1081 = vmatpush1.msra.mxu0 0.0
    %1082 = vmatprep.subr.mxu0 0.0
    %1083 = vmatpush1.msra.mxu0 0.0
    %1084 = vmatprep.subr.mxu0 0.0
    %1085 = vmatpush1.msra.mxu0 0.0
    %1086 = vmatprep.subr.mxu0 0.0
    %1087 = vmatpush1.msra.mxu0 0.0
    %1088 = vmatprep.subr.mxu0 0.0
    %1089 = vmatpush1.msra.mxu0 0.0
    %1090 = vmatprep.subr.mxu0 0.0
    %1091 = vmatpush1.msra.mxu0 0.0
    %1092 = vmatprep.subr.mxu0 0.0
    %1093 = vmatpush1.msra.mxu0 0.0
    %1094 = vmatprep.subr.mxu0 0.0
    %1095 = vmatpush1.msra.mxu0 0.0
    %1096 = vmatprep.subr.mxu0 0.0
    %1097 = vmatpush1.msra.mxu0 0.0
    %1098 = vmatprep.subr.mxu0 0.0
    %1099 = vmatpush1.msra.mxu0 0.0
    %1100 = vmatprep.subr.mxu0 0.0
    %1101 = vmatpush1.msra.mxu0 0.0
    %1102 = vmatprep.subr.mxu0 0.0
    %1103 = vmatpush1.msra.mxu0 0.0
    %1104 = vmatprep.subr.mxu0 0.0
    %1105 = vmatpush1.msra.mxu0 0.0
    %1106 = vmatprep.subr.mxu0 0.0
    %1107 = vmatpush1.msra.mxu0 0.0
    %1108 = vmatprep.subr.mxu0 0.0
    %1109 = vmatpush1.msra.mxu0 0.0
    %1110 = vmatprep.subr.mxu0 0.0
    %1111 = vmatpush1.msra.mxu0 0.0
    %1112 = vmatprep.subr.mxu0 0.0
    %1113 = vmatpush1.msra.mxu0 0.0
    %1114 = vmatprep.mubr.f32.mxu0 0.0
    %1115 = vmatmul.mubr.f32.gmra.mrb[0].mxu0 %v1048
    %v1116 = vpop.f32.mrb[0].mxu0
    %v1117 = vadd.f32 0.0, %v1116
    %v1118 = vpop.f32.mrb[0].mxu0
    %1119 = vdwg.mxu0
    %1120 = vmatprep.subr.mxu0 0.0
    %1121 = vmatpush1.msra.mxu0 %v312
    %1122 = vmatprep.subr.mxu0 0.0
    %1123 = vmatpush1.msra.mxu0 %v313
    %1124 = vmatprep.subr.mxu0 0.0
    %1125 = vmatpush1.msra.mxu0 %v314
    %1126 = vmatprep.subr.mxu0 0.0
    %1127 = vmatpush1.msra.mxu0 %v315
    %1128 = vmatprep.subr.mxu0 0.0
    %1129 = vmatpush1.msra.mxu0 0.0
    %1130 = vmatprep.subr.mxu0 0.0
    %1131 = vmatpush1.msra.mxu0 0.0
    %1132 = vmatprep.subr.mxu0 0.0
    %1133 = vmatpush1.msra.mxu0 0.0
    %1134 = vmatprep.subr.mxu0 0.0
    %1135 = vmatpush1.msra.mxu0 0.0
    %1136 = vmatprep.subr.mxu0 0.0
    %1137 = vmatpush1.msra.mxu0 0.0
    %1138 = vmatprep.subr.mxu0 0.0
    %1139 = vmatpush1.msra.mxu0 0.0
    %1140 = vmatprep.subr.mxu0 0.0
    %1141 = vmatpush1.msra.mxu0 0.0
    %1142 = vmatprep.subr.mxu0 0.0
    %1143 = vmatpush1.msra.mxu0 0.0
    %1144 = vmatprep.subr.mxu0 0.0
    %1145 = vmatpush1.msra.mxu0 0.0
    %1146 = vmatprep.subr.mxu0 0.0
    %1147 = vmatpush1.msra.mxu0 0.0
    %1148 = vmatprep.subr.mxu0 0.0
    %1149 = vmatpush1.msra.mxu0 0.0
    %1150 = vmatprep.subr.mxu0 0.0
    %1151 = vmatpush1.msra.mxu0 0.0
    %1152 = vmatprep.subr.mxu0 0.0
    %1153 = vmatpush1.msra.mxu0 0.0
    %1154 = vmatprep.subr.mxu0 0.0
    %1155 = vmatpush1.msra.mxu0 0.0
    %1156 = vmatprep.subr.mxu0 0.0
    %1157 = vmatpush1.msra.mxu0 0.0
    %1158 = vmatprep.subr.mxu0 0.0
    %1159 = vmatpush1.msra.mxu0 0.0
    %1160 = vmatprep.subr.mxu0 0.0
    %1161 = vmatpush1.msra.mxu0 0.0
    %1162 = vmatprep.subr.mxu0 0.0
    %1163 = vmatpush1.msra.mxu0 0.0
    %1164 = vmatprep.subr.mxu0 0.0
    %1165 = vmatpush1.msra.mxu0 0.0
    %1166 = vmatprep.subr.mxu0 0.0
    %1167 = vmatpush1.msra.mxu0 0.0
    %1168 = vmatprep.subr.mxu0 0.0
    %1169 = vmatpush1.msra.mxu0 0.0
    %1170 = vmatprep.subr.mxu0 0.0
    %1171 = vmatpush1.msra.mxu0 0.0
    %1172 = vmatprep.subr.mxu0 0.0
    %1173 = vmatpush1.msra.mxu0 0.0
    %1174 = vmatprep.subr.mxu0 0.0
    %1175 = vmatpush1.msra.mxu0 0.0
    %1176 = vmatprep.subr.mxu0 0.0
    %1177 = vmatpush1.msra.mxu0 0.0
    %1178 = vmatprep.subr.mxu0 0.0
    %1179 = vmatpush1.msra.mxu0 0.0
    %1180 = vmatprep.subr.mxu0 0.0
    %1181 = vmatpush1.msra.mxu0 0.0
    %1182 = vmatprep.subr.mxu0 0.0
    %1183 = vmatpush1.msra.mxu0 0.0
    %1184 = vmatprep.mubr.f32.mxu0 0.0
    %1185 = vmatmul.mubr.f32.gmra.mrb[0].mxu0 %v1048
    %v1186 = vpop.f32.mrb[0].mxu0
    %v1187 = vadd.f32 0.0, %v1186
    %v1188 = vpop.f32.mrb[0].mxu0
    %1189 = vdwg.mxu0
    %1190 = vmatprep.subr.mxu0 0.0
    %1191 = vmatpush1.msra.mxu0 %v317
    %1192 = vmatprep.subr.mxu0 0.0
    %1193 = vmatpush1.msra.mxu0 %v318
    %1194 = vmatprep.subr.mxu0 0.0
    %1195 = vmatpush1.msra.mxu0 %v319
    %1196 = vmatprep.subr.mxu0 0.0
    %1197 = vmatpush1.msra.mxu0 %v320
    %1198 = vmatprep.subr.mxu0 0.0
    %1199 = vmatpush1.msra.mxu0 0.0
    %1200 = vmatprep.subr.mxu0 0.0
    %1201 = vmatpush1.msra.mxu0 0.0
    %1202 = vmatprep.subr.mxu0 0.0
    %1203 = vmatpush1.msra.mxu0 0.0
    %1204 = vmatprep.subr.mxu0 0.0
    %1205 = vmatpush1.msra.mxu0 0.0
    %1206 = vmatprep.subr.mxu0 0.0
    %1207 = vmatpush1.msra.mxu0 0.0
    %1208 = vmatprep.subr.mxu0 0.0
    %1209 = vmatpush1.msra.mxu0 0.0
    %1210 = vmatprep.subr.mxu0 0.0
    %1211 = vmatpush1.msra.mxu0 0.0
    %1212 = vmatprep.subr.mxu0 0.0
    %1213 = vmatpush1.msra.mxu0 0.0
    %1214 = vmatprep.subr.mxu0 0.0
    %1215 = vmatpush1.msra.mxu0 0.0
    %1216 = vmatprep.subr.mxu0 0.0
    %1217 = vmatpush1.msra.mxu0 0.0
    %1218 = vmatprep.subr.mxu0 0.0
    %1219 = vmatpush1.msra.mxu0 0.0
    %1220 = vmatprep.subr.mxu0 0.0
    %1221 = vmatpush1.msra.mxu0 0.0
    %1222 = vmatprep.subr.mxu0 0.0
    %1223 = vmatpush1.msra.mxu0 0.0
    %1224 = vmatprep.subr.mxu0 0.0
    %1225 = vmatpush1.msra.mxu0 0.0
    %1226 = vmatprep.subr.mxu0 0.0
    %1227 = vmatpush1.msra.mxu0 0.0
    %1228 = vmatprep.subr.mxu0 0.0
    %1229 = vmatpush1.msra.mxu0 0.0
    %1230 = vmatprep.subr.mxu0 0.0
    %1231 = vmatpush1.msra.mxu0 0.0
    %1232 = vmatprep.subr.mxu0 0.0
    %1233 = vmatpush1.msra.mxu0 0.0
    %1234 = vmatprep.subr.mxu0 0.0
    %1235 = vmatpush1.msra.mxu0 0.0
    %1236 = vmatprep.subr.mxu0 0.0
    %1237 = vmatpush1.msra.mxu0 0.0
    %1238 = vmatprep.subr.mxu0 0.0
    %1239 = vmatpush1.msra.mxu0 0.0
    %1240 = vmatprep.subr.mxu0 0.0
    %1241 = vmatpush1.msra.mxu0 0.0
    %1242 = vmatprep.subr.mxu0 0.0
    %1243 = vmatpush1.msra.mxu0 0.0
    %1244 = vmatprep.subr.mxu0 0.0
    %1245 = vmatpush1.msra.mxu0 0.0
    %1246 = vmatprep.subr.mxu0 0.0
    %1247 = vmatpush1.msra.mxu0 0.0
    %1248 = vmatprep.subr.mxu0 0.0
    %1249 = vmatpush1.msra.mxu0 0.0
    %1250 = vmatprep.subr.mxu0 0.0
    %1251 = vmatpush1.msra.mxu0 0.0
    %1252 = vmatprep.subr.mxu0 0.0
    %1253 = vmatpush1.msra.mxu0 0.0
    %1254 = vmatprep.mubr.f32.mxu0 0.0
    %1255 = vmatmul.mubr.f32.gmra.mrb[0].mxu0 %v1048
    %v1256 = vpop.f32.mrb[0].mxu0
    %v1257 = vadd.f32 %v473, %v1256
    %v1258 = vpop.f32.mrb[0].mxu0
    %1259 = vdwg.mxu0
    %v1260 = vadd.f32 %v1044, %v1117
    %v1261 = vxor.u32 %v1260, 2147483648
    %v1262 = vmul.f32 %v1261, 1.442695
    %v1263 = vpow.pop %v1262
    %v1264 = vadd.f32 %v1263, 1.0
    %v1265 = vrcp.pop %v1264
    %v1266 = vmul.f32 1.0, %v1265
    %v1267 = vadd.f32 %v1045, %v1187
    %v1268 = vxor.u32 %v1267, 2147483648
    %v1269 = vmul.f32 %v1268, 1.442695
    %v1270 = vpow.pop %v1269
    %v1271 = vadd.f32 %v1270, 1.0
    %v1272 = vrcp.pop %v1271
    %v1273 = vmul.f32 1.0, %v1272
    %v1274 = vmul.f32 %v1266, %v1257
    %v1275 = vadd.f32 %v1046, %v1274
    %v1276 = vtanh.pop %v1275
    %v1277 = vsub.f32 1.0, %v1273
    %v1278 = vmul.f32 %v1277, %v1276
    %v1279 = vmul.f32 %v1273, %v1042
    %v1280 = vadd.f32 %v1278, %v1279
    %1281 = vst.msk [vmem:[#allocation5 + $0x6] sm:$0x3] %vm566, %v1280
    %v1282 = vld [vmem:[#allocation2 + $0x8] sm:$0x3]
    %v1283 = vld [vmem:[#allocation3 + $0x8] sm:$0x3]
    %v1284 = vld [vmem:[#allocation4 + $0x8] sm:$0x3]
    %v1286 = vsel %vm128, %v1280, 0
    %1288 = vmatprep.subr.mxu0 0.0
    %1289 = vmatpush1.msra.mxu0 %v307
    %1290 = vmatprep.subr.mxu0 0.0
    %1291 = vmatpush1.msra.mxu0 %v308
    %1292 = vmatprep.subr.mxu0 0.0
    %1293 = vmatpush1.msra.mxu0 %v309
    %1294 = vmatprep.subr.mxu0 0.0
    %1295 = vmatpush1.msra.mxu0 %v310
    %1296 = vmatprep.subr.mxu0 0.0
    %1297 = vmatpush1.msra.mxu0 0.0
    %1298 = vmatprep.subr.mxu0 0.0
    %1299 = vmatpush1.msra.mxu0 0.0
    %1300 = vmatprep.subr.mxu0 0.0
    %1301 = vmatpush1.msra.mxu0 0.0
    %1302 = vmatprep.subr.mxu0 0.0
    %1303 = vmatpush1.msra.mxu0 0.0
    %1304 = vmatprep.subr.mxu0 0.0
    %1305 = vmatpush1.msra.mxu0 0.0
    %1306 = vmatprep.subr.mxu0 0.0
    %1307 = vmatpush1.msra.mxu0 0.0
    %1308 = vmatprep.subr.mxu0 0.0
    %1309 = vmatpush1.msra.mxu0 0.0
    %1310 = vmatprep.subr.mxu0 0.0
    %1311 = vmatpush1.msra.mxu0 0.0
    %1312 = vmatprep.subr.mxu0 0.0
    %1313 = vmatpush1.msra.mxu0 0.0
    %1314 = vmatprep.subr.mxu0 0.0
    %1315 = vmatpush1.msra.mxu0 0.0
    %1316 = vmatprep.subr.mxu0 0.0
    %1317 = vmatpush1.msra.mxu0 0.0
    %1318 = vmatprep.subr.mxu0 0.0
    %1319 = vmatpush1.msra.mxu0 0.0
    %1320 = vmatprep.subr.mxu0 0.0
    %1321 = vmatpush1.msra.mxu0 0.0
    %1322 = vmatprep.subr.mxu0 0.0
    %1323 = vmatpush1.msra.mxu0 0.0
    %1324 = vmatprep.subr.mxu0 0.0
    %1325 = vmatpush1.msra.mxu0 0.0
    %1326 = vmatprep.subr.mxu0 0.0
    %1327 = vmatpush1.msra.mxu0 0.0
    %1328 = vmatprep.subr.mxu0 0.0
    %1329 = vmatpush1.msra.mxu0 0.0
    %1330 = vmatprep.subr.mxu0 0.0
    %1331 = vmatpush1.msra.mxu0 0.0
    %1332 = vmatprep.subr.mxu0 0.0
    %1333 = vmatpush1.msra.mxu0 0.0
    %1334 = vmatprep.subr.mxu0 0.0
    %1335 = vmatpush1.msra.mxu0 0.0
    %1336 = vmatprep.subr.mxu0 0.0
    %1337 = vmatpush1.msra.mxu0 0.0
    %1338 = vmatprep.subr.mxu0 0.0
    %1339 = vmatpush1.msra.mxu0 0.0
    %1340 = vmatprep.subr.mxu0 0.0
    %1341 = vmatpush1.msra.mxu0 0.0
    %1342 = vmatprep.subr.mxu0 0.0
    %1343 = vmatpush1.msra.mxu0 0.0
    %1344 = vmatprep.subr.mxu0 0.0
    %1345 = vmatpush1.msra.mxu0 0.0
    %1346 = vmatprep.subr.mxu0 0.0
    %1347 = vmatpush1.msra.mxu0 0.0
    %1348 = vmatprep.subr.mxu0 0.0
    %1349 = vmatpush1.msra.mxu0 0.0
    %1350 = vmatprep.subr.mxu0 0.0
    %1351 = vmatpush1.msra.mxu0 0.0
    %1352 = vmatprep.mubr.f32.mxu0 0.0
    %1353 = vmatmul.mubr.f32.gmra.mrb[0].mxu0 %v1286
    %v1354 = vpop.f32.mrb[0].mxu0
    %v1355 = vadd.f32 0.0, %v1354
    %v1356 = vpop.f32.mrb[0].mxu0
    %1357 = vdwg.mxu0
    %1358 = vmatprep.subr.mxu0 0.0
    %1359 = vmatpush1.msra.mxu0 %v312
    %1360 = vmatprep.subr.mxu0 0.0
    %1361 = vmatpush1.msra.mxu0 %v313
    %1362 = vmatprep.subr.mxu0 0.0
    %1363 = vmatpush1.msra.mxu0 %v314
    %1364 = vmatprep.subr.mxu0 0.0
    %1365 = vmatpush1.msra.mxu0 %v315
    %1366 = vmatprep.subr.mxu0 0.0
    %1367 = vmatpush1.msra.mxu0 0.0
    %1368 = vmatprep.subr.mxu0 0.0
    %1369 = vmatpush1.msra.mxu0 0.0
    %1370 = vmatprep.subr.mxu0 0.0
    %1371 = vmatpush1.msra.mxu0 0.0
    %1372 = vmatprep.subr.mxu0 0.0
    %1373 = vmatpush1.msra.mxu0 0.0
    %1374 = vmatprep.subr.mxu0 0.0
    %1375 = vmatpush1.msra.mxu0 0.0
    %1376 = vmatprep.subr.mxu0 0.0
    %1377 = vmatpush1.msra.mxu0 0.0
    %1378 = vmatprep.subr.mxu0 0.0
    %1379 = vmatpush1.msra.mxu0 0.0
    %1380 = vmatprep.subr.mxu0 0.0
    %1381 = vmatpush1.msra.mxu0 0.0
    %1382 = vmatprep.subr.mxu0 0.0
    %1383 = vmatpush1.msra.mxu0 0.0
    %1384 = vmatprep.subr.mxu0 0.0
    %1385 = vmatpush1.msra.mxu0 0.0
    %1386 = vmatprep.subr.mxu0 0.0
    %1387 = vmatpush1.msra.mxu0 0.0
    %1388 = vmatprep.subr.mxu0 0.0
    %1389 = vmatpush1.msra.mxu0 0.0
    %1390 = vmatprep.subr.mxu0 0.0
    %1391 = vmatpush1.msra.mxu0 0.0
    %1392 = vmatprep.subr.mxu0 0.0
    %1393 = vmatpush1.msra.mxu0 0.0
    %1394 = vmatprep.subr.mxu0 0.0
    %1395 = vmatpush1.msra.mxu0 0.0
    %1396 = vmatprep.subr.mxu0 0.0
    %1397 = vmatpush1.msra.mxu0 0.0
    %1398 = vmatprep.subr.mxu0 0.0
    %1399 = vmatpush1.msra.mxu0 0.0
    %1400 = vmatprep.subr.mxu0 0.0
    %1401 = vmatpush1.msra.mxu0 0.0
    %1402 = vmatprep.subr.mxu0 0.0
    %1403 = vmatpush1.msra.mxu0 0.0
    %1404 = vmatprep.subr.mxu0 0.0
    %1405 = vmatpush1.msra.mxu0 0.0
    %1406 = vmatprep.subr.mxu0 0.0
    %1407 = vmatpush1.msra.mxu0 0.0
    %1408 = vmatprep.subr.mxu0 0.0
    %1409 = vmatpush1.msra.mxu0 0.0
    %1410 = vmatprep.subr.mxu0 0.0
    %1411 = vmatpush1.msra.mxu0 0.0
    %1412 = vmatprep.subr.mxu0 0.0
    %1413 = vmatpush1.msra.mxu0 0.0
    %1414 = vmatprep.subr.mxu0 0.0
    %1415 = vmatpush1.msra.mxu0 0.0
    %1416 = vmatprep.subr.mxu0 0.0
    %1417 = vmatpush1.msra.mxu0 0.0
    %1418 = vmatprep.subr.mxu0 0.0
    %1419 = vmatpush1.msra.mxu0 0.0
    %1420 = vmatprep.subr.mxu0 0.0
    %1421 = vmatpush1.msra.mxu0 0.0
    %1422 = vmatprep.mubr.f32.mxu0 0.0
    %1423 = vmatmul.mubr.f32.gmra.mrb[0].mxu0 %v1286
    %v1424 = vpop.f32.mrb[0].mxu0
    %v1425 = vadd.f32 0.0, %v1424
    %v1426 = vpop.f32.mrb[0].mxu0
    %1427 = vdwg.mxu0
    %1428 = vmatprep.subr.mxu0 0.0
    %1429 = vmatpush1.msra.mxu0 %v317
    %1430 = vmatprep.subr.mxu0 0.0
    %1431 = vmatpush1.msra.mxu0 %v318
    %1432 = vmatprep.subr.mxu0 0.0
    %1433 = vmatpush1.msra.mxu0 %v319
    %1434 = vmatprep.subr.mxu0 0.0
    %1435 = vmatpush1.msra.mxu0 %v320
    %1436 = vmatprep.subr.mxu0 0.0
    %1437 = vmatpush1.msra.mxu0 0.0
    %1438 = vmatprep.subr.mxu0 0.0
    %1439 = vmatpush1.msra.mxu0 0.0
    %1440 = vmatprep.subr.mxu0 0.0
    %1441 = vmatpush1.msra.mxu0 0.0
    %1442 = vmatprep.subr.mxu0 0.0
    %1443 = vmatpush1.msra.mxu0 0.0
    %1444 = vmatprep.subr.mxu0 0.0
    %1445 = vmatpush1.msra.mxu0 0.0
    %1446 = vmatprep.subr.mxu0 0.0
    %1447 = vmatpush1.msra.mxu0 0.0
    %1448 = vmatprep.subr.mxu0 0.0
    %1449 = vmatpush1.msra.mxu0 0.0
    %1450 = vmatprep.subr.mxu0 0.0
    %1451 = vmatpush1.msra.mxu0 0.0
    %1452 = vmatprep.subr.mxu0 0.0
    %1453 = vmatpush1.msra.mxu0 0.0
    %1454 = vmatprep.subr.mxu0 0.0
    %1455 = vmatpush1.msra.mxu0 0.0
    %1456 = vmatprep.subr.mxu0 0.0
    %1457 = vmatpush1.msra.mxu0 0.0
    %1458 = vmatprep.subr.mxu0 0.0
    %1459 = vmatpush1.msra.mxu0 0.0
    %1460 = vmatprep.subr.mxu0 0.0
    %1461 = vmatpush1.msra.mxu0 0.0
    %1462 = vmatprep.subr.mxu0 0.0
    %1463 = vmatpush1.msra.mxu0 0.0
    %1464 = vmatprep.subr.mxu0 0.0
    %1465 = vmatpush1.msra.mxu0 0.0
    %1466 = vmatprep.subr.mxu0 0.0
    %1467 = vmatpush1.msra.mxu0 0.0
    %1468 = vmatprep.subr.mxu0 0.0
    %1469 = vmatpush1.msra.mxu0 0.0
    %1470 = vmatprep.subr.mxu0 0.0
    %1471 = vmatpush1.msra.mxu0 0.0
    %1472 = vmatprep.subr.mxu0 0.0
    %1473 = vmatpush1.msra.mxu0 0.0
    %1474 = vmatprep.subr.mxu0 0.0
    %1475 = vmatpush1.msra.mxu0 0.0
    %1476 = vmatprep.subr.mxu0 0.0
    %1477 = vmatpush1.msra.mxu0 0.0
    %1478 = vmatprep.subr.mxu0 0.0
    %1479 = vmatpush1.msra.mxu0 0.0
    %1480 = vmatprep.subr.mxu0 0.0
    %1481 = vmatpush1.msra.mxu0 0.0
    %1482 = vmatprep.subr.mxu0 0.0
    %1483 = vmatpush1.msra.mxu0 0.0
    %1484 = vmatprep.subr.mxu0 0.0
    %1485 = vmatpush1.msra.mxu0 0.0
    %1486 = vmatprep.subr.mxu0 0.0
    %1487 = vmatpush1.msra.mxu0 0.0
    %1488 = vmatprep.subr.mxu0 0.0
    %1489 = vmatpush1.msra.mxu0 0.0
    %1490 = vmatprep.subr.mxu0 0.0
    %1491 = vmatpush1.msra.mxu0 0.0
    %1492 = vmatprep.mubr.f32.mxu0 0.0
    %1493 = vmatmul.mubr.f32.gmra.mrb[0].mxu0 %v1286
    %v1494 = vpop.f32.mrb[0].mxu0
    %v1495 = vadd.f32 %v473, %v1494
    %v1496 = vpop.f32.mrb[0].mxu0
    %1497 = vdwg.mxu0
    %v1498 = vadd.f32 %v1282, %v1355
    %v1499 = vxor.u32 %v1498, 2147483648
    %v1500 = vmul.f32 %v1499, 1.442695
    %v1501 = vpow.pop %v1500
    %v1502 = vadd.f32 %v1501, 1.0
    %v1503 = vrcp.pop %v1502
    %v1504 = vmul.f32 1.0, %v1503
    %v1505 = vadd.f32 %v1283, %v1425
    %v1506 = vxor.u32 %v1505, 2147483648
    %v1507 = vmul.f32 %v1506, 1.442695
    %v1508 = vpow.pop %v1507
    %v1509 = vadd.f32 %v1508, 1.0
    %v1510 = vrcp.pop %v1509
    %v1511 = vmul.f32 1.0, %v1510
    %v1512 = vmul.f32 %v1504, %v1495
    %v1513 = vadd.f32 %v1284, %v1512
    %v1514 = vtanh.pop %v1513
    %v1515 = vsub.f32 1.0, %v1511
    %v1516 = vmul.f32 %v1515, %v1514
    %v1517 = vmul.f32 %v1511, %v1280
    %v1518 = vadd.f32 %v1516, %v1517
    %1519 = vst.msk [vmem:[#allocation5 + $0x8] sm:$0x3] %vm566, %v1518
    %v1520 = vld [vmem:[#allocation2 + $0xa] sm:$0x3]
    %v1521 = vld [vmem:[#allocation3 + $0xa] sm:$0x3]
    %v1522 = vld [vmem:[#allocation4 + $0xa] sm:$0x3]
    %v1524 = vsel %vm128, %v1518, 0
    %1526 = vmatprep.subr.mxu0 0.0
    %1527 = vmatpush1.msra.mxu0 %v307
    %1528 = vmatprep.subr.mxu0 0.0
    %1529 = vmatpush1.msra.mxu0 %v308
    %1530 = vmatprep.subr.mxu0 0.0
    %1531 = vmatpush1.msra.mxu0 %v309
    %1532 = vmatprep.subr.mxu0 0.0
    %1533 = vmatpush1.msra.mxu0 %v310
    %1534 = vmatprep.subr.mxu0 0.0
    %1535 = vmatpush1.msra.mxu0 0.0
    %1536 = vmatprep.subr.mxu0 0.0
    %1537 = vmatpush1.msra.mxu0 0.0
    %1538 = vmatprep.subr.mxu0 0.0
    %1539 = vmatpush1.msra.mxu0 0.0
    %1540 = vmatprep.subr.mxu0 0.0
    %1541 = vmatpush1.msra.mxu0 0.0
    %1542 = vmatprep.subr.mxu0 0.0
    %1543 = vmatpush1.msra.mxu0 0.0
    %1544 = vmatprep.subr.mxu0 0.0
    %1545 = vmatpush1.msra.mxu0 0.0
    %1546 = vmatprep.subr.mxu0 0.0
    %1547 = vmatpush1.msra.mxu0 0.0
    %1548 = vmatprep.subr.mxu0 0.0
    %1549 = vmatpush1.msra.mxu0 0.0
    %1550 = vmatprep.subr.mxu0 0.0
    %1551 = vmatpush1.msra.mxu0 0.0
    %1552 = vmatprep.subr.mxu0 0.0
    %1553 = vmatpush1.msra.mxu0 0.0
    %1554 = vmatprep.subr.mxu0 0.0
    %1555 = vmatpush1.msra.mxu0 0.0
    %1556 = vmatprep.subr.mxu0 0.0
    %1557 = vmatpush1.msra.mxu0 0.0
    %1558 = vmatprep.subr.mxu0 0.0
    %1559 = vmatpush1.msra.mxu0 0.0
    %1560 = vmatprep.subr.mxu0 0.0
    %1561 = vmatpush1.msra.mxu0 0.0
    %1562 = vmatprep.subr.mxu0 0.0
    %1563 = vmatpush1.msra.mxu0 0.0
    %1564 = vmatprep.subr.mxu0 0.0
    %1565 = vmatpush1.msra.mxu0 0.0
    %1566 = vmatprep.subr.mxu0 0.0
    %1567 = vmatpush1.msra.mxu0 0.0
    %1568 = vmatprep.subr.mxu0 0.0
    %1569 = vmatpush1.msra.mxu0 0.0
    %1570 = vmatprep.subr.mxu0 0.0
    %1571 = vmatpush1.msra.mxu0 0.0
    %1572 = vmatprep.subr.mxu0 0.0
    %1573 = vmatpush1.msra.mxu0 0.0
    %1574 = vmatprep.subr.mxu0 0.0
    %1575 = vmatpush1.msra.mxu0 0.0
    %1576 = vmatprep.subr.mxu0 0.0
    %1577 = vmatpush1.msra.mxu0 0.0
    %1578 = vmatprep.subr.mxu0 0.0
    %1579 = vmatpush1.msra.mxu0 0.0
    %1580 = vmatprep.subr.mxu0 0.0
    %1581 = vmatpush1.msra.mxu0 0.0
    %1582 = vmatprep.subr.mxu0 0.0
    %1583 = vmatpush1.msra.mxu0 0.0
    %1584 = vmatprep.subr.mxu0 0.0
    %1585 = vmatpush1.msra.mxu0 0.0
    %1586 = vmatprep.subr.mxu0 0.0
    %1587 = vmatpush1.msra.mxu0 0.0
    %1588 = vmatprep.subr.mxu0 0.0
    %1589 = vmatpush1.msra.mxu0 0.0
    %1590 = vmatprep.mubr.f32.mxu0 0.0
    %1591 = vmatmul.mubr.f32.gmra.mrb[0].mxu0 %v1524
    %v1592 = vpop.f32.mrb[0].mxu0
    %v1593 = vadd.f32 0.0, %v1592
    %v1594 = vpop.f32.mrb[0].mxu0
    %1595 = vdwg.mxu0
    %1596 = vmatprep.subr.mxu0 0.0
    %1597 = vmatpush1.msra.mxu0 %v312
    %1598 = vmatprep.subr.mxu0 0.0
    %1599 = vmatpush1.msra.mxu0 %v313
    %1600 = vmatprep.subr.mxu0 0.0
    %1601 = vmatpush1.msra.mxu0 %v314
    %1602 = vmatprep.subr.mxu0 0.0
    %1603 = vmatpush1.msra.mxu0 %v315
    %1604 = vmatprep.subr.mxu0 0.0
    %1605 = vmatpush1.msra.mxu0 0.0
    %1606 = vmatprep.subr.mxu0 0.0
    %1607 = vmatpush1.msra.mxu0 0.0
    %1608 = vmatprep.subr.mxu0 0.0
    %1609 = vmatpush1.msra.mxu0 0.0
    %1610 = vmatprep.subr.mxu0 0.0
    %1611 = vmatpush1.msra.mxu0 0.0
    %1612 = vmatprep.subr.mxu0 0.0
    %1613 = vmatpush1.msra.mxu0 0.0
    %1614 = vmatprep.subr.mxu0 0.0
    %1615 = vmatpush1.msra.mxu0 0.0
    %1616 = vmatprep.subr.mxu0 0.0
    %1617 = vmatpush1.msra.mxu0 0.0
    %1618 = vmatprep.subr.mxu0 0.0
    %1619 = vmatpush1.msra.mxu0 0.0
    %1620 = vmatprep.subr.mxu0 0.0
    %1621 = vmatpush1.msra.mxu0 0.0
    %1622 = vmatprep.subr.mxu0 0.0
    %1623 = vmatpush1.msra.mxu0 0.0
    %1624 = vmatprep.subr.mxu0 0.0
    %1625 = vmatpush1.msra.mxu0 0.0
    %1626 = vmatprep.subr.mxu0 0.0
    %1627 = vmatpush1.msra.mxu0 0.0
    %1628 = vmatprep.subr.mxu0 0.0
    %1629 = vmatpush1.msra.mxu0 0.0
    %1630 = vmatprep.subr.mxu0 0.0
    %1631 = vmatpush1.msra.mxu0 0.0
    %1632 = vmatprep.subr.mxu0 0.0
    %1633 = vmatpush1.msra.mxu0 0.0
    %1634 = vmatprep.subr.mxu0 0.0
    %1635 = vmatpush1.msra.mxu0 0.0
    %1636 = vmatprep.subr.mxu0 0.0
    %1637 = vmatpush1.msra.mxu0 0.0
    %1638 = vmatprep.subr.mxu0 0.0
    %1639 = vmatpush1.msra.mxu0 0.0
    %1640 = vmatprep.subr.mxu0 0.0
    %1641 = vmatpush1.msra.mxu0 0.0
    %1642 = vmatprep.subr.mxu0 0.0
    %1643 = vmatpush1.msra.mxu0 0.0
    %1644 = vmatprep.subr.mxu0 0.0
    %1645 = vmatpush1.msra.mxu0 0.0
    %1646 = vmatprep.subr.mxu0 0.0
    %1647 = vmatpush1.msra.mxu0 0.0
    %1648 = vmatprep.subr.mxu0 0.0
    %1649 = vmatpush1.msra.mxu0 0.0
    %1650 = vmatprep.subr.mxu0 0.0
    %1651 = vmatpush1.msra.mxu0 0.0
    %1652 = vmatprep.subr.mxu0 0.0
    %1653 = vmatpush1.msra.mxu0 0.0
    %1654 = vmatprep.subr.mxu0 0.0
    %1655 = vmatpush1.msra.mxu0 0.0
    %1656 = vmatprep.subr.mxu0 0.0
    %1657 = vmatpush1.msra.mxu0 0.0
    %1658 = vmatprep.subr.mxu0 0.0
    %1659 = vmatpush1.msra.mxu0 0.0
    %1660 = vmatprep.mubr.f32.mxu0 0.0
    %1661 = vmatmul.mubr.f32.gmra.mrb[0].mxu0 %v1524
    %v1662 = vpop.f32.mrb[0].mxu0
    %v1663 = vadd.f32 0.0, %v1662
    %v1664 = vpop.f32.mrb[0].mxu0
    %1665 = vdwg.mxu0
    %1666 = vmatprep.subr.mxu0 0.0
    %1667 = vmatpush1.msra.mxu0 %v317
    %1668 = vmatprep.subr.mxu0 0.0
    %1669 = vmatpush1.msra.mxu0 %v318
    %1670 = vmatprep.subr.mxu0 0.0
    %1671 = vmatpush1.msra.mxu0 %v319
    %1672 = vmatprep.subr.mxu0 0.0
    %1673 = vmatpush1.msra.mxu0 %v320
    %1674 = vmatprep.subr.mxu0 0.0
    %1675 = vmatpush1.msra.mxu0 0.0
    %1676 = vmatprep.subr.mxu0 0.0
    %1677 = vmatpush1.msra.mxu0 0.0
    %1678 = vmatprep.subr.mxu0 0.0
    %1679 = vmatpush1.msra.mxu0 0.0
    %1680 = vmatprep.subr.mxu0 0.0
    %1681 = vmatpush1.msra.mxu0 0.0
    %1682 = vmatprep.subr.mxu0 0.0
    %1683 = vmatpush1.msra.mxu0 0.0
    %1684 = vmatprep.subr.mxu0 0.0
    %1685 = vmatpush1.msra.mxu0 0.0
    %1686 = vmatprep.subr.mxu0 0.0
    %1687 = vmatpush1.msra.mxu0 0.0
    %1688 = vmatprep.subr.mxu0 0.0
    %1689 = vmatpush1.msra.mxu0 0.0
    %1690 = vmatprep.subr.mxu0 0.0
    %1691 = vmatpush1.msra.mxu0 0.0
    %1692 = vmatprep.subr.mxu0 0.0
    %1693 = vmatpush1.msra.mxu0 0.0
    %1694 = vmatprep.subr.mxu0 0.0
    %1695 = vmatpush1.msra.mxu0 0.0
    %1696 = vmatprep.subr.mxu0 0.0
    %1697 = vmatpush1.msra.mxu0 0.0
    %1698 = vmatprep.subr.mxu0 0.0
    %1699 = vmatpush1.msra.mxu0 0.0
    %1700 = vmatprep.subr.mxu0 0.0
    %1701 = vmatpush1.msra.mxu0 0.0
    %1702 = vmatprep.subr.mxu0 0.0
    %1703 = vmatpush1.msra.mxu0 0.0
    %1704 = vmatprep.subr.mxu0 0.0
    %1705 = vmatpush1.msra.mxu0 0.0
    %1706 = vmatprep.subr.mxu0 0.0
    %1707 = vmatpush1.msra.mxu0 0.0
    %1708 = vmatprep.subr.mxu0 0.0
    %1709 = vmatpush1.msra.mxu0 0.0
    %1710 = vmatprep.subr.mxu0 0.0
    %1711 = vmatpush1.msra.mxu0 0.0
    %1712 = vmatprep.subr.mxu0 0.0
    %1713 = vmatpush1.msra.mxu0 0.0
    %1714 = vmatprep.subr.mxu0 0.0
    %1715 = vmatpush1.msra.mxu0 0.0
    %1716 = vmatprep.subr.mxu0 0.0
    %1717 = vmatpush1.msra.mxu0 0.0
    %1718 = vmatprep.subr.mxu0 0.0
    %1719 = vmatpush1.msra.mxu0 0.0
    %1720 = vmatprep.subr.mxu0 0.0
    %1721 = vmatpush1.msra.mxu0 0.0
    %1722 = vmatprep.subr.mxu0 0.0
    %1723 = vmatpush1.msra.mxu0 0.0
    %1724 = vmatprep.subr.mxu0 0.0
    %1725 = vmatpush1.msra.mxu0 0.0
    %1726 = vmatprep.subr.mxu0 0.0
    %1727 = vmatpush1.msra.mxu0 0.0
    %1728 = vmatprep.subr.mxu0 0.0
    %1729 = vmatpush1.msra.mxu0 0.0
    %1730 = vmatprep.mubr.f32.mxu0 0.0
    %1731 = vmatmul.mubr.f32.gmra.mrb[0].mxu0 %v1524
    %v1732 = vpop.f32.mrb[0].mxu0
    %v1733 = vadd.f32 %v473, %v1732
    %v1734 = vpop.f32.mrb[0].mxu0
    %1735 = vdwg.mxu0
    %v1736 = vadd.f32 %v1520, %v1593
    %v1737 = vxor.u32 %v1736, 2147483648
    %v1738 = vmul.f32 %v1737, 1.442695
    %v1739 = vpow.pop %v1738
    %v1740 = vadd.f32 %v1739, 1.0
    %v1741 = vrcp.pop %v1740
    %v1742 = vmul.f32 1.0, %v1741
    %v1743 = vadd.f32 %v1521, %v1663
    %v1744 = vxor.u32 %v1743, 2147483648
    %v1745 = vmul.f32 %v1744, 1.442695
    %v1746 = vpow.pop %v1745
    %v1747 = vadd.f32 %v1746, 1.0
    %v1748 = vrcp.pop %v1747
    %v1749 = vmul.f32 1.0, %v1748
    %v1750 = vmul.f32 %v1742, %v1733
    %v1751 = vadd.f32 %v1522, %v1750
    %v1752 = vtanh.pop %v1751
    %v1753 = vsub.f32 1.0, %v1749
    %v1754 = vmul.f32 %v1753, %v1752
    %v1755 = vmul.f32 %v1749, %v1518
    %v1756 = vadd.f32 %v1754, %v1755
    %1757 = vst.msk [vmem:[#allocation5 + $0xa] sm:$0x3] %vm566, %v1756
    %v1758 = vld [vmem:[#allocation2 + $0xc] sm:$0x3]
    %v1759 = vld [vmem:[#allocation3 + $0xc] sm:$0x3]
    %v1760 = vld [vmem:[#allocation4 + $0xc] sm:$0x3]
    %v1762 = vsel %vm128, %v1756, 0
    %1764 = vmatprep.subr.mxu0 0.0
    %1765 = vmatpush1.msra.mxu0 %v307
    %1766 = vmatprep.subr.mxu0 0.0
    %1767 = vmatpush1.msra.mxu0 %v308
    %1768 = vmatprep.subr.mxu0 0.0
    %1769 = vmatpush1.msra.mxu0 %v309
    %1770 = vmatprep.subr.mxu0 0.0
    %1771 = vmatpush1.msra.mxu0 %v310
    %1772 = vmatprep.subr.mxu0 0.0
    %1773 = vmatpush1.msra.mxu0 0.0
    %1774 = vmatprep.subr.mxu0 0.0
    %1775 = vmatpush1.msra.mxu0 0.0
    %1776 = vmatprep.subr.mxu0 0.0
    %1777 = vmatpush1.msra.mxu0 0.0
    %1778 = vmatprep.subr.mxu0 0.0
    %1779 = vmatpush1.msra.mxu0 0.0
    %1780 = vmatprep.subr.mxu0 0.0
    %1781 = vmatpush1.msra.mxu0 0.0
    %1782 = vmatprep.subr.mxu0 0.0
    %1783 = vmatpush1.msra.mxu0 0.0
    %1784 = vmatprep.subr.mxu0 0.0
    %1785 = vmatpush1.msra.mxu0 0.0
    %1786 = vmatprep.subr.mxu0 0.0
    %1787 = vmatpush1.msra.mxu0 0.0
    %1788 = vmatprep.subr.mxu0 0.0
    %1789 = vmatpush1.msra.mxu0 0.0
    %1790 = vmatprep.subr.mxu0 0.0
    %1791 = vmatpush1.msra.mxu0 0.0
    %1792 = vmatprep.subr.mxu0 0.0
    %1793 = vmatpush1.msra.mxu0 0.0
    %1794 = vmatprep.subr.mxu0 0.0
    %1795 = vmatpush1.msra.mxu0 0.0
    %1796 = vmatprep.subr.mxu0 0.0
    %1797 = vmatpush1.msra.mxu0 0.0
    %1798 = vmatprep.subr.mxu0 0.0
    %1799 = vmatpush1.msra.mxu0 0.0
    %1800 = vmatprep.subr.mxu0 0.0
    %1801 = vmatpush1.msra.mxu0 0.0
    %1802 = vmatprep.subr.mxu0 0.0
    %1803 = vmatpush1.msra.mxu0 0.0
    %1804 = vmatprep.subr.mxu0 0.0
    %1805 = vmatpush1.msra.mxu0 0.0
    %1806 = vmatprep.subr.mxu0 0.0
    %1807 = vmatpush1.msra.mxu0 0.0
    %1808 = vmatprep.subr.mxu0 0.0
    %1809 = vmatpush1.msra.mxu0 0.0
    %1810 = vmatprep.subr.mxu0 0.0
    %1811 = vmatpush1.msra.mxu0 0.0
    %1812 = vmatprep.subr.mxu0 0.0
    %1813 = vmatpush1.msra.mxu0 0.0
    %1814 = vmatprep.subr.mxu0 0.0
    %1815 = vmatpush1.msra.mxu0 0.0
    %1816 = vmatprep.subr.mxu0 0.0
    %1817 = vmatpush1.msra.mxu0 0.0
    %1818 = vmatprep.subr.mxu0 0.0
    %1819 = vmatpush1.msra.mxu0 0.0
    %1820 = vmatprep.subr.mxu0 0.0
    %1821 = vmatpush1.msra.mxu0 0.0
    %1822 = vmatprep.subr.mxu0 0.0
    %1823 = vmatpush1.msra.mxu0 0.0
    %1824 = vmatprep.subr.mxu0 0.0
    %1825 = vmatpush1.msra.mxu0 0.0
    %1826 = vmatprep.subr.mxu0 0.0
    %1827 = vmatpush1.msra.mxu0 0.0
    %1828 = vmatprep.mubr.f32.mxu0 0.0
    %1829 = vmatmul.mubr.f32.gmra.mrb[0].mxu0 %v1762
    %v1830 = vpop.f32.mrb[0].mxu0
    %v1831 = vadd.f32 0.0, %v1830
    %v1832 = vpop.f32.mrb[0].mxu0
    %1833 = vdwg.mxu0
    %1834 = vmatprep.subr.mxu0 0.0
    %1835 = vmatpush1.msra.mxu0 %v312
    %1836 = vmatprep.subr.mxu0 0.0
    %1837 = vmatpush1.msra.mxu0 %v313
    %1838 = vmatprep.subr.mxu0 0.0
    %1839 = vmatpush1.msra.mxu0 %v314
    %1840 = vmatprep.subr.mxu0 0.0
    %1841 = vmatpush1.msra.mxu0 %v315
    %1842 = vmatprep.subr.mxu0 0.0
    %1843 = vmatpush1.msra.mxu0 0.0
    %1844 = vmatprep.subr.mxu0 0.0
    %1845 = vmatpush1.msra.mxu0 0.0
    %1846 = vmatprep.subr.mxu0 0.0
    %1847 = vmatpush1.msra.mxu0 0.0
    %1848 = vmatprep.subr.mxu0 0.0
    %1849 = vmatpush1.msra.mxu0 0.0
    %1850 = vmatprep.subr.mxu0 0.0
    %1851 = vmatpush1.msra.mxu0 0.0
    %1852 = vmatprep.subr.mxu0 0.0
    %1853 = vmatpush1.msra.mxu0 0.0
    %1854 = vmatprep.subr.mxu0 0.0
    %1855 = vmatpush1.msra.mxu0 0.0
    %1856 = vmatprep.subr.mxu0 0.0
    %1857 = vmatpush1.msra.mxu0 0.0
    %1858 = vmatprep.subr.mxu0 0.0
    %1859 = vmatpush1.msra.mxu0 0.0
    %1860 = vmatprep.subr.mxu0 0.0
    %1861 = vmatpush1.msra.mxu0 0.0
    %1862 = vmatprep.subr.mxu0 0.0
    %1863 = vmatpush1.msra.mxu0 0.0
    %1864 = vmatprep.subr.mxu0 0.0
    %1865 = vmatpush1.msra.mxu0 0.0
    %1866 = vmatprep.subr.mxu0 0.0
    %1867 = vmatpush1.msra.mxu0 0.0
    %1868 = vmatprep.subr.mxu0 0.0
    %1869 = vmatpush1.msra.mxu0 0.0
    %1870 = vmatprep.subr.mxu0 0.0
    %1871 = vmatpush1.msra.mxu0 0.0
    %1872 = vmatprep.subr.mxu0 0.0
    %1873 = vmatpush1.msra.mxu0 0.0
    %1874 = vmatprep.subr.mxu0 0.0
    %1875 = vmatpush1.msra.mxu0 0.0
    %1876 = vmatprep.subr.mxu0 0.0
    %1877 = vmatpush1.msra.mxu0 0.0
    %1878 = vmatprep.subr.mxu0 0.0
    %1879 = vmatpush1.msra.mxu0 0.0
    %1880 = vmatprep.subr.mxu0 0.0
    %1881 = vmatpush1.msra.mxu0 0.0
    %1882 = vmatprep.subr.mxu0 0.0
    %1883 = vmatpush1.msra.mxu0 0.0
    %1884 = vmatprep.subr.mxu0 0.0
    %1885 = vmatpush1.msra.mxu0 0.0
    %1886 = vmatprep.subr.mxu0 0.0
    %1887 = vmatpush1.msra.mxu0 0.0
    %1888 = vmatprep.subr.mxu0 0.0
    %1889 = vmatpush1.msra.mxu0 0.0
    %1890 = vmatprep.subr.mxu0 0.0
    %1891 = vmatpush1.msra.mxu0 0.0
    %1892 = vmatprep.subr.mxu0 0.0
    %1893 = vmatpush1.msra.mxu0 0.0
    %1894 = vmatprep.subr.mxu0 0.0
    %1895 = vmatpush1.msra.mxu0 0.0
    %1896 = vmatprep.subr.mxu0 0.0
    %1897 = vmatpush1.msra.mxu0 0.0
    %1898 = vmatprep.mubr.f32.mxu0 0.0
    %1899 = vmatmul.mubr.f32.gmra.mrb[0].mxu0 %v1762
    %v1900 = vpop.f32.mrb[0].mxu0
    %v1901 = vadd.f32 0.0, %v1900
    %v1902 = vpop.f32.mrb[0].mxu0
    %1903 = vdwg.mxu0
    %1904 = vmatprep.subr.mxu0 0.0
    %1905 = vmatpush1.msra.mxu0 %v317
    %1906 = vmatprep.subr.mxu0 0.0
    %1907 = vmatpush1.msra.mxu0 %v318
    %1908 = vmatprep.subr.mxu0 0.0
    %1909 = vmatpush1.msra.mxu0 %v319
    %1910 = vmatprep.subr.mxu0 0.0
    %1911 = vmatpush1.msra.mxu0 %v320
    %1912 = vmatprep.subr.mxu0 0.0
    %1913 = vmatpush1.msra.mxu0 0.0
    %1914 = vmatprep.subr.mxu0 0.0
    %1915 = vmatpush1.msra.mxu0 0.0
    %1916 = vmatprep.subr.mxu0 0.0
    %1917 = vmatpush1.msra.mxu0 0.0
    %1918 = vmatprep.subr.mxu0 0.0
    %1919 = vmatpush1.msra.mxu0 0.0
    %1920 = vmatprep.subr.mxu0 0.0
    %1921 = vmatpush1.msra.mxu0 0.0
    %1922 = vmatprep.subr.mxu0 0.0
    %1923 = vmatpush1.msra.mxu0 0.0
    %1924 = vmatprep.subr.mxu0 0.0
    %1925 = vmatpush1.msra.mxu0 0.0
    %1926 = vmatprep.subr.mxu0 0.0
    %1927 = vmatpush1.msra.mxu0 0.0
    %1928 = vmatprep.subr.mxu0 0.0
    %1929 = vmatpush1.msra.mxu0 0.0
    %1930 = vmatprep.subr.mxu0 0.0
    %1931 = vmatpush1.msra.mxu0 0.0
    %1932 = vmatprep.subr.mxu0 0.0
    %1933 = vmatpush1.msra.mxu0 0.0
    %1934 = vmatprep.subr.mxu0 0.0
    %1935 = vmatpush1.msra.mxu0 0.0
    %1936 = vmatprep.subr.mxu0 0.0
    %1937 = vmatpush1.msra.mxu0 0.0
    %1938 = vmatprep.subr.mxu0 0.0
    %1939 = vmatpush1.msra.mxu0 0.0
    %1940 = vmatprep.subr.mxu0 0.0
    %1941 = vmatpush1.msra.mxu0 0.0
    %1942 = vmatprep.subr.mxu0 0.0
    %1943 = vmatpush1.msra.mxu0 0.0
    %1944 = vmatprep.subr.mxu0 0.0
    %1945 = vmatpush1.msra.mxu0 0.0
    %1946 = vmatprep.subr.mxu0 0.0
    %1947 = vmatpush1.msra.mxu0 0.0
    %1948 = vmatprep.subr.mxu0 0.0
    %1949 = vmatpush1.msra.mxu0 0.0
    %1950 = vmatprep.subr.mxu0 0.0
    %1951 = vmatpush1.msra.mxu0 0.0
    %1952 = vmatprep.subr.mxu0 0.0
    %1953 = vmatpush1.msra.mxu0 0.0
    %1954 = vmatprep.subr.mxu0 0.0
    %1955 = vmatpush1.msra.mxu0 0.0
    %1956 = vmatprep.subr.mxu0 0.0
    %1957 = vmatpush1.msra.mxu0 0.0
    %1958 = vmatprep.subr.mxu0 0.0
    %1959 = vmatpush1.msra.mxu0 0.0
    %1960 = vmatprep.subr.mxu0 0.0
    %1961 = vmatpush1.msra.mxu0 0.0
    %1962 = vmatprep.subr.mxu0 0.0
    %1963 = vmatpush1.msra.mxu0 0.0
    %1964 = vmatprep.subr.mxu0 0.0
    %1965 = vmatpush1.msra.mxu0 0.0
    %1966 = vmatprep.subr.mxu0 0.0
    %1967 = vmatpush1.msra.mxu0 0.0
    %1968 = vmatprep.mubr.f32.mxu0 0.0
    %1969 = vmatmul.mubr.f32.gmra.mrb[0].mxu0 %v1762
    %v1970 = vpop.f32.mrb[0].mxu0
    %v1971 = vadd.f32 %v473, %v1970
    %v1972 = vpop.f32.mrb[0].mxu0
    %1973 = vdwg.mxu0
    %v1974 = vadd.f32 %v1758, %v1831
    %v1975 = vxor.u32 %v1974, 2147483648
    %v1976 = vmul.f32 %v1975, 1.442695
    %v1977 = vpow.pop %v1976
    %v1978 = vadd.f32 %v1977, 1.0
    %v1979 = vrcp.pop %v1978
    %v1980 = vmul.f32 1.0, %v1979
    %v1981 = vadd.f32 %v1759, %v1901
    %v1982 = vxor.u32 %v1981, 2147483648
    %v1983 = vmul.f32 %v1982, 1.442695
    %v1984 = vpow.pop %v1983
    %v1985 = vadd.f32 %v1984, 1.0
    %v1986 = vrcp.pop %v1985
    %v1987 = vmul.f32 1.0, %v1986
    %v1988 = vmul.f32 %v1980, %v1971
    %v1989 = vadd.f32 %v1760, %v1988
    %v1990 = vtanh.pop %v1989
    %v1991 = vsub.f32 1.0, %v1987
    %v1992 = vmul.f32 %v1991, %v1990
    %v1993 = vmul.f32 %v1987, %v1756
    %v1994 = vadd.f32 %v1992, %v1993
    %1995 = vst.msk [vmem:[#allocation5 + $0xc] sm:$0x3] %vm566, %v1994
    %v1996 = vld [vmem:[#allocation2 + $0xe] sm:$0x3]
    %v1997 = vld [vmem:[#allocation3 + $0xe] sm:$0x3]
    %v1998 = vld [vmem:[#allocation4 + $0xe] sm:$0x3]
    %v2000 = vsel %vm128, %v1994, 0
    %2002 = vmatprep.subr.mxu0 0.0
    %2003 = vmatpush1.msra.mxu0 %v307
    %2004 = vmatprep.subr.mxu0 0.0
    %2005 = vmatpush1.msra.mxu0 %v308
    %2006 = vmatprep.subr.mxu0 0.0
    %2007 = vmatpush1.msra.mxu0 %v309
    %2008 = vmatprep.subr.mxu0 0.0
    %2009 = vmatpush1.msra.mxu0 %v310
    %2010 = vmatprep.subr.mxu0 0.0
    %2011 = vmatpush1.msra.mxu0 0.0
    %2012 = vmatprep.subr.mxu0 0.0
    %2013 = vmatpush1.msra.mxu0 0.0
    %2014 = vmatprep.subr.mxu0 0.0
    %2015 = vmatpush1.msra.mxu0 0.0
    %2016 = vmatprep.subr.mxu0 0.0
    %2017 = vmatpush1.msra.mxu0 0.0
    %2018 = vmatprep.subr.mxu0 0.0
    %2019 = vmatpush1.msra.mxu0 0.0
    %2020 = vmatprep.subr.mxu0 0.0
    %2021 = vmatpush1.msra.mxu0 0.0
    %2022 = vmatprep.subr.mxu0 0.0
    %2023 = vmatpush1.msra.mxu0 0.0
    %2024 = vmatprep.subr.mxu0 0.0
    %2025 = vmatpush1.msra.mxu0 0.0
    %2026 = vmatprep.subr.mxu0 0.0
    %2027 = vmatpush1.msra.mxu0 0.0
    %2028 = vmatprep.subr.mxu0 0.0
    %2029 = vmatpush1.msra.mxu0 0.0
    %2030 = vmatprep.subr.mxu0 0.0
    %2031 = vmatpush1.msra.mxu0 0.0
    %2032 = vmatprep.subr.mxu0 0.0
    %2033 = vmatpush1.msra.mxu0 0.0
    %2034 = vmatprep.subr.mxu0 0.0
    %2035 = vmatpush1.msra.mxu0 0.0
    %2036 = vmatprep.subr.mxu0 0.0
    %2037 = vmatpush1.msra.mxu0 0.0
    %2038 = vmatprep.subr.mxu0 0.0
    %2039 = vmatpush1.msra.mxu0 0.0
    %2040 = vmatprep.subr.mxu0 0.0
    %2041 = vmatpush1.msra.mxu0 0.0
    %2042 = vmatprep.subr.mxu0 0.0
    %2043 = vmatpush1.msra.mxu0 0.0
    %2044 = vmatprep.subr.mxu0 0.0
    %2045 = vmatpush1.msra.mxu0 0.0
    %2046 = vmatprep.subr.mxu0 0.0
    %2047 = vmatpush1.msra.mxu0 0.0
    %2048 = vmatprep.subr.mxu0 0.0
    %2049 = vmatpush1.msra.mxu0 0.0
    %2050 = vmatprep.subr.mxu0 0.0
    %2051 = vmatpush1.msra.mxu0 0.0
    %2052 = vmatprep.subr.mxu0 0.0
    %2053 = vmatpush1.msra.mxu0 0.0
    %2054 = vmatprep.subr.mxu0 0.0
    %2055 = vmatpush1.msra.mxu0 0.0
    %2056 = vmatprep.subr.mxu0 0.0
    %2057 = vmatpush1.msra.mxu0 0.0
    %2058 = vmatprep.subr.mxu0 0.0
    %2059 = vmatpush1.msra.mxu0 0.0
    %2060 = vmatprep.subr.mxu0 0.0
    %2061 = vmatpush1.msra.mxu0 0.0
    %2062 = vmatprep.subr.mxu0 0.0
    %2063 = vmatpush1.msra.mxu0 0.0
    %2064 = vmatprep.subr.mxu0 0.0
    %2065 = vmatpush1.msra.mxu0 0.0
    %2066 = vmatprep.mubr.f32.mxu0 0.0
    %2067 = vmatmul.mubr.f32.gmra.mrb[0].mxu0 %v2000
    %v2068 = vpop.f32.mrb[0].mxu0
    %v2069 = vadd.f32 0.0, %v2068
    %v2070 = vpop.f32.mrb[0].mxu0
    %2071 = vdwg.mxu0
    %2072 = vmatprep.subr.mxu0 0.0
    %2073 = vmatpush1.msra.mxu0 %v312
    %2074 = vmatprep.subr.mxu0 0.0
    %2075 = vmatpush1.msra.mxu0 %v313
    %2076 = vmatprep.subr.mxu0 0.0
    %2077 = vmatpush1.msra.mxu0 %v314
    %2078 = vmatprep.subr.mxu0 0.0
    %2079 = vmatpush1.msra.mxu0 %v315
    %2080 = vmatprep.subr.mxu0 0.0
    %2081 = vmatpush1.msra.mxu0 0.0
    %2082 = vmatprep.subr.mxu0 0.0
    %2083 = vmatpush1.msra.mxu0 0.0
    %2084 = vmatprep.subr.mxu0 0.0
    %2085 = vmatpush1.msra.mxu0 0.0
    %2086 = vmatprep.subr.mxu0 0.0
    %2087 = vmatpush1.msra.mxu0 0.0
    %2088 = vmatprep.subr.mxu0 0.0
    %2089 = vmatpush1.msra.mxu0 0.0
    %2090 = vmatprep.subr.mxu0 0.0
    %2091 = vmatpush1.msra.mxu0 0.0
    %2092 = vmatprep.subr.mxu0 0.0
    %2093 = vmatpush1.msra.mxu0 0.0
    %2094 = vmatprep.subr.mxu0 0.0
    %2095 = vmatpush1.msra.mxu0 0.0
    %2096 = vmatprep.subr.mxu0 0.0
    %2097 = vmatpush1.msra.mxu0 0.0
    %2098 = vmatprep.subr.mxu0 0.0
    %2099 = vmatpush1.msra.mxu0 0.0
    %2100 = vmatprep.subr.mxu0 0.0
    %2101 = vmatpush1.msra.mxu0 0.0
    %2102 = vmatprep.subr.mxu0 0.0
    %2103 = vmatpush1.msra.mxu0 0.0
    %2104 = vmatprep.subr.mxu0 0.0
    %2105 = vmatpush1.msra.mxu0 0.0
    %2106 = vmatprep.subr.mxu0 0.0
    %2107 = vmatpush1.msra.mxu0 0.0
    %2108 = vmatprep.subr.mxu0 0.0
    %2109 = vmatpush1.msra.mxu0 0.0
    %2110 = vmatprep.subr.mxu0 0.0
    %2111 = vmatpush1.msra.mxu0 0.0
    %2112 = vmatprep.subr.mxu0 0.0
    %2113 = vmatpush1.msra.mxu0 0.0
    %2114 = vmatprep.subr.mxu0 0.0
    %2115 = vmatpush1.msra.mxu0 0.0
    %2116 = vmatprep.subr.mxu0 0.0
    %2117 = vmatpush1.msra.mxu0 0.0
    %2118 = vmatprep.subr.mxu0 0.0
    %2119 = vmatpush1.msra.mxu0 0.0
    %2120 = vmatprep.subr.mxu0 0.0
    %2121 = vmatpush1.msra.mxu0 0.0
    %2122 = vmatprep.subr.mxu0 0.0
    %2123 = vmatpush1.msra.mxu0 0.0
    %2124 = vmatprep.subr.mxu0 0.0
    %2125 = vmatpush1.msra.mxu0 0.0
    %2126 = vmatprep.subr.mxu0 0.0
    %2127 = vmatpush1.msra.mxu0 0.0
    %2128 = vmatprep.subr.mxu0 0.0
    %2129 = vmatpush1.msra.mxu0 0.0
    %2130 = vmatprep.subr.mxu0 0.0
    %2131 = vmatpush1.msra.mxu0 0.0
    %2132 = vmatprep.subr.mxu0 0.0
    %2133 = vmatpush1.msra.mxu0 0.0
    %2134 = vmatprep.subr.mxu0 0.0
    %2135 = vmatpush1.msra.mxu0 0.0
    %2136 = vmatprep.mubr.f32.mxu0 0.0
    %2137 = vmatmul.mubr.f32.gmra.mrb[0].mxu0 %v2000
    %v2138 = vpop.f32.mrb[0].mxu0
    %v2139 = vadd.f32 0.0, %v2138
    %v2140 = vpop.f32.mrb[0].mxu0
    %2141 = vdwg.mxu0
    %2142 = vmatprep.subr.mxu0 0.0
    %2143 = vmatpush1.msra.mxu0 %v317
    %2144 = vmatprep.subr.mxu0 0.0
    %2145 = vmatpush1.msra.mxu0 %v318
    %2146 = vmatprep.subr.mxu0 0.0
    %2147 = vmatpush1.msra.mxu0 %v319
    %2148 = vmatprep.subr.mxu0 0.0
    %2149 = vmatpush1.msra.mxu0 %v320
    %2150 = vmatprep.subr.mxu0 0.0
    %2151 = vmatpush1.msra.mxu0 0.0
    %2152 = vmatprep.subr.mxu0 0.0
    %2153 = vmatpush1.msra.mxu0 0.0
    %2154 = vmatprep.subr.mxu0 0.0
    %2155 = vmatpush1.msra.mxu0 0.0
    %2156 = vmatprep.subr.mxu0 0.0
    %2157 = vmatpush1.msra.mxu0 0.0
    %2158 = vmatprep.subr.mxu0 0.0
    %2159 = vmatpush1.msra.mxu0 0.0
    %2160 = vmatprep.subr.mxu0 0.0
    %2161 = vmatpush1.msra.mxu0 0.0
    %2162 = vmatprep.subr.mxu0 0.0
    %2163 = vmatpush1.msra.mxu0 0.0
    %2164 = vmatprep.subr.mxu0 0.0
    %2165 = vmatpush1.msra.mxu0 0.0
    %2166 = vmatprep.subr.mxu0 0.0
    %2167 = vmatpush1.msra.mxu0 0.0
    %2168 = vmatprep.subr.mxu0 0.0
    %2169 = vmatpush1.msra.mxu0 0.0
    %2170 = vmatprep.subr.mxu0 0.0
    %2171 = vmatpush1.msra.mxu0 0.0
    %2172 = vmatprep.subr.mxu0 0.0
    %2173 = vmatpush1.msra.mxu0 0.0
    %2174 = vmatprep.subr.mxu0 0.0
    %2175 = vmatpush1.msra.mxu0 0.0
    %2176 = vmatprep.subr.mxu0 0.0
    %2177 = vmatpush1.msra.mxu0 0.0
    %2178 = vmatprep.subr.mxu0 0.0
    %2179 = vmatpush1.msra.mxu0 0.0
    %2180 = vmatprep.subr.mxu0 0.0
    %2181 = vmatpush1.msra.mxu0 0.0
    %2182 = vmatprep.subr.mxu0 0.0
    %2183 = vmatpush1.msra.mxu0 0.0
    %2184 = vmatprep.subr.mxu0 0.0
    %2185 = vmatpush1.msra.mxu0 0.0
    %2186 = vmatprep.subr.mxu0 0.0
    %2187 = vmatpush1.msra.mxu0 0.0
    %2188 = vmatprep.subr.mxu0 0.0
    %2189 = vmatpush1.msra.mxu0 0.0
    %2190 = vmatprep.subr.mxu0 0.0
    %2191 = vmatpush1.msra.mxu0 0.0
    %2192 = vmatprep.subr.mxu0 0.0
    %2193 = vmatpush1.msra.mxu0 0.0
    %2194 = vmatprep.subr.mxu0 0.0
    %2195 = vmatpush1.msra.mxu0 0.0
    %2196 = vmatprep.subr.mxu0 0.0
    %2197 = vmatpush1.msra.mxu0 0.0
    %2198 = vmatprep.subr.mxu0 0.0
    %2199 = vmatpush1.msra.mxu0 0.0
    %2200 = vmatprep.subr.mxu0 0.0
    %2201 = vmatpush1.msra.mxu0 0.0
    %2202 = vmatprep.subr.mxu0 0.0
    %2203 = vmatpush1.msra.mxu0 0.0
    %2204 = vmatprep.subr.mxu0 0.0
    %2205 = vmatpush1.msra.mxu0 0.0
    %2206 = vmatprep.mubr.f32.mxu0 0.0
    %2207 = vmatmul.mubr.f32.gmra.mrb[0].mxu0 %v2000
    %v2208 = vpop.f32.mrb[0].mxu0
    %v2209 = vadd.f32 %v473, %v2208
    %v2210 = vpop.f32.mrb[0].mxu0
    %2211 = vdwg.mxu0
    %v2212 = vadd.f32 %v1996, %v2069
    %v2213 = vxor.u32 %v2212, 2147483648
    %v2214 = vmul.f32 %v2213, 1.442695
    %v2215 = vpow.pop %v2214
    %v2216 = vadd.f32 %v2215, 1.0
    %v2217 = vrcp.pop %v2216
    %v2218 = vmul.f32 1.0, %v2217
    %v2219 = vadd.f32 %v1997, %v2139
    %v2220 = vxor.u32 %v2219, 2147483648
    %v2221 = vmul.f32 %v2220, 1.442695
    %v2222 = vpow.pop %v2221
    %v2223 = vadd.f32 %v2222, 1.0
    %v2224 = vrcp.pop %v2223
    %v2225 = vmul.f32 1.0, %v2224
    %v2226 = vmul.f32 %v2218, %v2209
    %v2227 = vadd.f32 %v1998, %v2226
    %v2228 = vtanh.pop %v2227
    %v2229 = vsub.f32 1.0, %v2225
    %v2230 = vmul.f32 %v2229, %v2228
    %v2231 = vmul.f32 %v2225, %v1994
    %v2232 = vadd.f32 %v2230, %v2231
    %2233 = vst.msk [vmem:[#allocation5 + $0xe] sm:$0x3] %vm566, %v2232
    %v2234 = vld [vmem:[#allocation5] sm:$0xff]
    %v2235 = vld [vmem:[#allocation5 + $0x8] sm:$0xff]
    %v2236 = vld [vmem:[%s4] sm:$0xff]
    %v2237 = vld [vmem:[%s4 + $0x8] sm:$0xff]
    %v2238 = vld [vmem:[%s4 + $0x10] sm:$0xff]
    %v2239 = vld [vmem:[%s4 + $0x18] sm:$0xff]
    %v2240 = vld [vmem:[%s6] sm:$0x1]
    %v2242 = vlaneseq
    %v2243 = vshrl.u32 %v2242, 7
    %v2244 = vsub.s32 0, %v2243
    %v2245 = vrot.slane %v2240, %v2244
    %v2248 = vsel %vm128, %v2234, 0
    %v2251 = vsel %vm128, %v2235, 0
    %2253 = vmatprep.subr.mxu0 0.0
    %2254 = vmatpush1.msra.mxu0 %v2236
    %2255 = vmatprep.subr.mxu0 0.0
    %2256 = vmatpush1.msra.mxu0 %v2237
    %2257 = vmatprep.subr.mxu0 0.0
    %2258 = vmatpush1.msra.mxu0 %v2238
    %2259 = vmatprep.subr.mxu0 0.0
    %2260 = vmatpush1.msra.mxu0 %v2239
    %2261 = vmatprep.subr.mxu0 0.0
    %2262 = vmatpush1.msra.mxu0 0.0
    %2263 = vmatprep.subr.mxu0 0.0
    %2264 = vmatpush1.msra.mxu0 0.0
    %2265 = vmatprep.subr.mxu0 0.0
    %2266 = vmatpush1.msra.mxu0 0.0
    %2267 = vmatprep.subr.mxu0 0.0
    %2268 = vmatpush1.msra.mxu0 0.0
    %2269 = vmatprep.subr.mxu0 0.0
    %2270 = vmatpush1.msra.mxu0 0.0
    %2271 = vmatprep.subr.mxu0 0.0
    %2272 = vmatpush1.msra.mxu0 0.0
    %2273 = vmatprep.subr.mxu0 0.0
    %2274 = vmatpush1.msra.mxu0 0.0
    %2275 = vmatprep.subr.mxu0 0.0
    %2276 = vmatpush1.msra.mxu0 0.0
    %2277 = vmatprep.subr.mxu0 0.0
    %2278 = vmatpush1.msra.mxu0 0.0
    %2279 = vmatprep.subr.mxu0 0.0
    %2280 = vmatpush1.msra.mxu0 0.0
    %2281 = vmatprep.subr.mxu0 0.0
    %2282 = vmatpush1.msra.mxu0 0.0
    %2283 = vmatprep.subr.mxu0 0.0
    %2284 = vmatpush1.msra.mxu0 0.0
    %2285 = vmatprep.subr.mxu0 0.0
    %2286 = vmatpush1.msra.mxu0 0.0
    %2287 = vmatprep.subr.mxu0 0.0
    %2288 = vmatpush1.msra.mxu0 0.0
    %2289 = vmatprep.subr.mxu0 0.0
    %2290 = vmatpush1.msra.mxu0 0.0
    %2291 = vmatprep.subr.mxu0 0.0
    %2292 = vmatpush1.msra.mxu0 0.0
    %2293 = vmatprep.subr.mxu0 0.0
    %2294 = vmatpush1.msra.mxu0 0.0
    %2295 = vmatprep.subr.mxu0 0.0
    %2296 = vmatpush1.msra.mxu0 0.0
    %2297 = vmatprep.subr.mxu0 0.0
    %2298 = vmatpush1.msra.mxu0 0.0
    %2299 = vmatprep.subr.mxu0 0.0
    %2300 = vmatpush1.msra.mxu0 0.0
    %2301 = vmatprep.subr.mxu0 0.0
    %2302 = vmatpush1.msra.mxu0 0.0
    %2303 = vmatprep.subr.mxu0 0.0
    %2304 = vmatpush1.msra.mxu0 0.0
    %2305 = vmatprep.subr.mxu0 0.0
    %2306 = vmatpush1.msra.mxu0 0.0
    %2307 = vmatprep.subr.mxu0 0.0
    %2308 = vmatpush1.msra.mxu0 0.0
    %2309 = vmatprep.subr.mxu0 0.0
    %2310 = vmatpush1.msra.mxu0 0.0
    %2311 = vmatprep.subr.mxu0 0.0
    %2312 = vmatpush1.msra.mxu0 0.0
    %2313 = vmatprep.subr.mxu0 0.0
    %2314 = vmatpush1.msra.mxu0 0.0
    %2315 = vmatprep.subr.mxu0 0.0
    %2316 = vmatpush1.msra.mxu0 0.0
    %2317 = vmatprep.mubr.f32.mxu0 0.0
    %2318 = vmatmul.mubr.f32.gmra.mrb[0].mxu0 %v2248
    %v2319 = vpop.f32.mrb[0].mxu0
    %v2320 = vadd.f32 %v2245, %v2319
    %v2321 = vpop.f32.mrb[0].mxu0
    %2322 = vmatprep.mubr.f32.mxu0 0.0
    %2323 = vmatmul.mubr.f32.gmra.mrb[0].mxu0 %v2251
    %v2324 = vpop.f32.mrb[0].mxu0
    %v2325 = vadd.f32 %v2245, %v2324
    %v2326 = vpop.f32.mrb[0].mxu0
    %2327 = vdwg.mxu0
    %2328 = vst.msk [vmem:[#allocation2] sm:$0xff] %vm128, %v2320
    %2329 = vst.msk [vmem:[#allocation2 + $0x8] sm:$0xff] %vm128, %v2325
    %s2330 = scalar_lea.vmem %s4, 32
    %v2331 = vld [vmem:[%s2330] sm:$0xff]
    %v2332 = vld [vmem:[%s2330 + $0x8] sm:$0xff]
    %v2333 = vld [vmem:[%s2330 + $0x10] sm:$0xff]
    %v2334 = vld [vmem:[%s2330 + $0x18] sm:$0xff]
    %s2335 = scalar_lea.vmem %s6, 1
    %v2336 = vld [vmem:[%s2335] sm:$0x1]
    %v2338 = vlaneseq
    %v2339 = vshrl.u32 %v2338, 7
    %v2340 = vsub.s32 0, %v2339
    %v2341 = vrot.slane %v2336, %v2340
    %2343 = vmatprep.subr.mxu0 0.0
    %2344 = vmatpush1.msra.mxu0 %v2331
    %2345 = vmatprep.subr.mxu0 0.0
    %2346 = vmatpush1.msra.mxu0 %v2332
    %2347 = vmatprep.subr.mxu0 0.0
    %2348 = vmatpush1.msra.mxu0 %v2333
    %2349 = vmatprep.subr.mxu0 0.0
    %2350 = vmatpush1.msra.mxu0 %v2334
    %2351 = vmatprep.subr.mxu0 0.0
    %2352 = vmatpush1.msra.mxu0 0.0
    %2353 = vmatprep.subr.mxu0 0.0
    %2354 = vmatpush1.msra.mxu0 0.0
    %2355 = vmatprep.subr.mxu0 0.0
    %2356 = vmatpush1.msra.mxu0 0.0
    %2357 = vmatprep.subr.mxu0 0.0
    %2358 = vmatpush1.msra.mxu0 0.0
    %2359 = vmatprep.subr.mxu0 0.0
    %2360 = vmatpush1.msra.mxu0 0.0
    %2361 = vmatprep.subr.mxu0 0.0
    %2362 = vmatpush1.msra.mxu0 0.0
    %2363 = vmatprep.subr.mxu0 0.0
    %2364 = vmatpush1.msra.mxu0 0.0
    %2365 = vmatprep.subr.mxu0 0.0
    %2366 = vmatpush1.msra.mxu0 0.0
    %2367 = vmatprep.subr.mxu0 0.0
    %2368 = vmatpush1.msra.mxu0 0.0
    %2369 = vmatprep.subr.mxu0 0.0
    %2370 = vmatpush1.msra.mxu0 0.0
    %2371 = vmatprep.subr.mxu0 0.0
    %2372 = vmatpush1.msra.mxu0 0.0
    %2373 = vmatprep.subr.mxu0 0.0
    %2374 = vmatpush1.msra.mxu0 0.0
    %2375 = vmatprep.subr.mxu0 0.0
    %2376 = vmatpush1.msra.mxu0 0.0
    %2377 = vmatprep.subr.mxu0 0.0
    %2378 = vmatpush1.msra.mxu0 0.0
    %2379 = vmatprep.subr.mxu0 0.0
    %2380 = vmatpush1.msra.mxu0 0.0
    %2381 = vmatprep.subr.mxu0 0.0
    %2382 = vmatpush1.msra.mxu0 0.0
    %2383 = vmatprep.subr.mxu0 0.0
    %2384 = vmatpush1.msra.mxu0 0.0
    %2385 = vmatprep.subr.mxu0 0.0
    %2386 = vmatpush1.msra.mxu0 0.0
    %2387 = vmatprep.subr.mxu0 0.0
    %2388 = vmatpush1.msra.mxu0 0.0
    %2389 = vmatprep.subr.mxu0 0.0
    %2390 = vmatpush1.msra.mxu0 0.0
    %2391 = vmatprep.subr.mxu0 0.0
    %2392 = vmatpush1.msra.mxu0 0.0
    %2393 = vmatprep.subr.mxu0 0.0
    %2394 = vmatpush1.msra.mxu0 0.0
    %2395 = vmatprep.subr.mxu0 0.0
    %2396 = vmatpush1.msra.mxu0 0.0
    %2397 = vmatprep.subr.mxu0 0.0
    %2398 = vmatpush1.msra.mxu0 0.0
    %2399 = vmatprep.subr.mxu0 0.0
    %2400 = vmatpush1.msra.mxu0 0.0
    %2401 = vmatprep.subr.mxu0 0.0
    %2402 = vmatpush1.msra.mxu0 0.0
    %2403 = vmatprep.subr.mxu0 0.0
    %2404 = vmatpush1.msra.mxu0 0.0
    %2405 = vmatprep.subr.mxu0 0.0
    %2406 = vmatpush1.msra.mxu0 0.0
    %2407 = vmatprep.mubr.f32.mxu0 0.0
    %2408 = vmatmul.mubr.f32.gmra.mrb[0].mxu0 %v2248
    %v2409 = vpop.f32.mrb[0].mxu0
    %v2410 = vadd.f32 %v2341, %v2409
    %v2411 = vpop.f32.mrb[0].mxu0
    %2412 = vmatprep.mubr.f32.mxu0 0.0
    %2413 = vmatmul.mubr.f32.gmra.mrb[0].mxu0 %v2251
    %v2414 = vpop.f32.mrb[0].mxu0
    %v2415 = vadd.f32 %v2341, %v2414
    %v2416 = vpop.f32.mrb[0].mxu0
    %2417 = vdwg.mxu0
    %2418 = vst.msk [vmem:[#allocation3] sm:$0xff] %vm128, %v2410
    %2419 = vst.msk [vmem:[#allocation3 + $0x8] sm:$0xff] %vm128, %v2415
    %s2420 = scalar_lea.vmem %s4, 64
    %v2421 = vld [vmem:[%s2420] sm:$0xff]
    %v2422 = vld [vmem:[%s2420 + $0x8] sm:$0xff]
    %v2423 = vld [vmem:[%s2420 + $0x10] sm:$0xff]
    %v2424 = vld [vmem:[%s2420 + $0x18] sm:$0xff]
    %s2425 = scalar_lea.vmem %s6, 2
    %v2426 = vld [vmem:[%s2425] sm:$0x1]
    %v2428 = vlaneseq
    %v2429 = vshrl.u32 %v2428, 7
    %v2430 = vsub.s32 0, %v2429
    %v2431 = vrot.slane %v2426, %v2430
    %2433 = vmatprep.subr.mxu0 0.0
    %2434 = vmatpush1.msra.mxu0 %v2421
    %2435 = vmatprep.subr.mxu0 0.0
    %2436 = vmatpush1.msra.mxu0 %v2422
    %2437 = vmatprep.subr.mxu0 0.0
    %2438 = vmatpush1.msra.mxu0 %v2423
    %2439 = vmatprep.subr.mxu0 0.0
    %2440 = vmatpush1.msra.mxu0 %v2424
    %2441 = vmatprep.subr.mxu0 0.0
    %2442 = vmatpush1.msra.mxu0 0.0
    %2443 = vmatprep.subr.mxu0 0.0
    %2444 = vmatpush1.msra.mxu0 0.0
    %2445 = vmatprep.subr.mxu0 0.0
    %2446 = vmatpush1.msra.mxu0 0.0
    %2447 = vmatprep.subr.mxu0 0.0
    %2448 = vmatpush1.msra.mxu0 0.0
    %2449 = vmatprep.subr.mxu0 0.0
    %2450 = vmatpush1.msra.mxu0 0.0
    %2451 = vmatprep.subr.mxu0 0.0
    %2452 = vmatpush1.msra.mxu0 0.0
    %2453 = vmatprep.subr.mxu0 0.0
    %2454 = vmatpush1.msra.mxu0 0.0
    %2455 = vmatprep.subr.mxu0 0.0
    %2456 = vmatpush1.msra.mxu0 0.0
    %2457 = vmatprep.subr.mxu0 0.0
    %2458 = vmatpush1.msra.mxu0 0.0
    %2459 = vmatprep.subr.mxu0 0.0
    %2460 = vmatpush1.msra.mxu0 0.0
    %2461 = vmatprep.subr.mxu0 0.0
    %2462 = vmatpush1.msra.mxu0 0.0
    %2463 = vmatprep.subr.mxu0 0.0
    %2464 = vmatpush1.msra.mxu0 0.0
    %2465 = vmatprep.subr.mxu0 0.0
    %2466 = vmatpush1.msra.mxu0 0.0
    %2467 = vmatprep.subr.mxu0 0.0
    %2468 = vmatpush1.msra.mxu0 0.0
    %2469 = vmatprep.subr.mxu0 0.0
    %2470 = vmatpush1.msra.mxu0 0.0
    %2471 = vmatprep.subr.mxu0 0.0
    %2472 = vmatpush1.msra.mxu0 0.0
    %2473 = vmatprep.subr.mxu0 0.0
    %2474 = vmatpush1.msra.mxu0 0.0
    %2475 = vmatprep.subr.mxu0 0.0
    %2476 = vmatpush1.msra.mxu0 0.0
    %2477 = vmatprep.subr.mxu0 0.0
    %2478 = vmatpush1.msra.mxu0 0.0
    %2479 = vmatprep.subr.mxu0 0.0
    %2480 = vmatpush1.msra.mxu0 0.0
    %2481 = vmatprep.subr.mxu0 0.0
    %2482 = vmatpush1.msra.mxu0 0.0
    %2483 = vmatprep.subr.mxu0 0.0
    %2484 = vmatpush1.msra.mxu0 0.0
    %2485 = vmatprep.subr.mxu0 0.0
    %2486 = vmatpush1.msra.mxu0 0.0
    %2487 = vmatprep.subr.mxu0 0.0
    %2488 = vmatpush1.msra.mxu0 0.0
    %2489 = vmatprep.subr.mxu0 0.0
    %2490 = vmatpush1.msra.mxu0 0.0
    %2491 = vmatprep.subr.mxu0 0.0
    %2492 = vmatpush1.msra.mxu0 0.0
    %2493 = vmatprep.subr.mxu0 0.0
    %2494 = vmatpush1.msra.mxu0 0.0
    %2495 = vmatprep.subr.mxu0 0.0
    %2496 = vmatpush1.msra.mxu0 0.0
    %2497 = vmatprep.mubr.f32.mxu0 0.0
    %2498 = vmatmul.mubr.f32.gmra.mrb[0].mxu0 %v2248
    %v2499 = vpop.f32.mrb[0].mxu0
    %v2500 = vadd.f32 %v2431, %v2499
    %v2501 = vpop.f32.mrb[0].mxu0
    %2502 = vmatprep.mubr.f32.mxu0 0.0
    %2503 = vmatmul.mubr.f32.gmra.mrb[0].mxu0 %v2251
    %v2504 = vpop.f32.mrb[0].mxu0
    %v2505 = vadd.f32 %v2431, %v2504
    %v2506 = vpop.f32.mrb[0].mxu0
    %2507 = vdwg.mxu0
    %2508 = vst.msk [vmem:[#allocation4] sm:$0xff] %vm128, %v2500
    %2509 = vst.msk [vmem:[#allocation4 + $0x8] sm:$0xff] %vm128, %v2505
    %v2510 = vld [vmem:[%s5] sm:$0xff]
    %v2511 = vld [vmem:[%s5 + $0x8] sm:$0xff]
    %v2512 = vld [vmem:[%s5 + $0x10] sm:$0xff]
    %v2513 = vld [vmem:[%s5 + $0x18] sm:$0xff]
    %s2514 = scalar_lea.vmem %s5, 32
    %v2515 = vld [vmem:[%s2514] sm:$0xff]
    %v2516 = vld [vmem:[%s2514 + $0x8] sm:$0xff]
    %v2517 = vld [vmem:[%s2514 + $0x10] sm:$0xff]
    %v2518 = vld [vmem:[%s2514 + $0x18] sm:$0xff]
    %s2519 = scalar_lea.vmem %s5, 64
    %v2520 = vld [vmem:[%s2519] sm:$0xff]
    %v2521 = vld [vmem:[%s2519 + $0x8] sm:$0xff]
    %v2522 = vld [vmem:[%s2519 + $0x10] sm:$0xff]
    %v2523 = vld [vmem:[%s2519 + $0x18] sm:$0xff]
    %s2524 = scalar_lea.vmem %s6, 3
    %v2525 = vld [vmem:[%s2524] sm:$0x1]
    %v2526 = vld [vmem:[#allocation2] sm:$0x3]
    %v2527 = vld [vmem:[#allocation3] sm:$0x3]
    %v2528 = vld [vmem:[#allocation4] sm:$0x3]
    %2529 = vmatprep.subr.mxu0 0.0
    %2530 = vmatpush1.msra.mxu0 %v2510
    %2531 = vmatprep.subr.mxu0 0.0
    %2532 = vmatpush1.msra.mxu0 %v2511
    %2533 = vmatprep.subr.mxu0 0.0
    %2534 = vmatpush1.msra.mxu0 %v2512
    %2535 = vmatprep.subr.mxu0 0.0
    %2536 = vmatpush1.msra.mxu0 %v2513
    %2537 = vmatprep.subr.mxu0 0.0
    %2538 = vmatpush1.msra.mxu0 0.0
    %2539 = vmatprep.subr.mxu0 0.0
    %2540 = vmatpush1.msra.mxu0 0.0
    %2541 = vmatprep.subr.mxu0 0.0
    %2542 = vmatpush1.msra.mxu0 0.0
    %2543 = vmatprep.subr.mxu0 0.0
    %2544 = vmatpush1.msra.mxu0 0.0
    %2545 = vmatprep.subr.mxu0 0.0
    %2546 = vmatpush1.msra.mxu0 0.0
    %2547 = vmatprep.subr.mxu0 0.0
    %2548 = vmatpush1.msra.mxu0 0.0
    %2549 = vmatprep.subr.mxu0 0.0
    %2550 = vmatpush1.msra.mxu0 0.0
    %2551 = vmatprep.subr.mxu0 0.0
    %2552 = vmatpush1.msra.mxu0 0.0
    %2553 = vmatprep.subr.mxu0 0.0
    %2554 = vmatpush1.msra.mxu0 0.0
    %2555 = vmatprep.subr.mxu0 0.0
    %2556 = vmatpush1.msra.mxu0 0.0
    %2557 = vmatprep.subr.mxu0 0.0
    %2558 = vmatpush1.msra.mxu0 0.0
    %2559 = vmatprep.subr.mxu0 0.0
    %2560 = vmatpush1.msra.mxu0 0.0
    %2561 = vmatprep.subr.mxu0 0.0
    %2562 = vmatpush1.msra.mxu0 0.0
    %2563 = vmatprep.subr.mxu0 0.0
    %2564 = vmatpush1.msra.mxu0 0.0
    %2565 = vmatprep.subr.mxu0 0.0
    %2566 = vmatpush1.msra.mxu0 0.0
    %2567 = vmatprep.subr.mxu0 0.0
    %2568 = vmatpush1.msra.mxu0 0.0
    %2569 = vmatprep.subr.mxu0 0.0
    %2570 = vmatpush1.msra.mxu0 0.0
    %2571 = vmatprep.subr.mxu0 0.0
    %2572 = vmatpush1.msra.mxu0 0.0
    %2573 = vmatprep.subr.mxu0 0.0
    %2574 = vmatpush1.msra.mxu0 0.0
    %2575 = vmatprep.subr.mxu0 0.0
    %2576 = vmatpush1.msra.mxu0 0.0
    %2577 = vmatprep.subr.mxu0 0.0
    %2578 = vmatpush1.msra.mxu0 0.0
    %2579 = vmatprep.subr.mxu0 0.0
    %2580 = vmatpush1.msra.mxu0 0.0
    %2581 = vmatprep.subr.mxu0 0.0
    %2582 = vmatpush1.msra.mxu0 0.0
    %2583 = vmatprep.subr.mxu0 0.0
    %2584 = vmatpush1.msra.mxu0 0.0
    %2585 = vmatprep.subr.mxu0 0.0
    %2586 = vmatpush1.msra.mxu0 0.0
    %2587 = vmatprep.subr.mxu0 0.0
    %2588 = vmatpush1.msra.mxu0 0.0
    %2589 = vmatprep.subr.mxu0 0.0
    %2590 = vmatpush1.msra.mxu0 0.0
    %2591 = vmatprep.subr.mxu0 0.0
    %2592 = vmatpush1.msra.mxu0 0.0
    %2593 = vmatprep.mubr.f32.mxu0 0.0
    %2594 = vmatmul.mubr.f32.gmra.mrb[0].mxu0 %v327
    %v2595 = vpop.f32.mrb[0].mxu0
    %v2596 = vadd.f32 0.0, %v2595
    %v2597 = vpop.f32.mrb[0].mxu0
    %2598 = vdwg.mxu0
    %2599 = vmatprep.subr.mxu0 0.0
    %2600 = vmatpush1.msra.mxu0 %v2515
    %2601 = vmatprep.subr.mxu0 0.0
    %2602 = vmatpush1.msra.mxu0 %v2516
    %2603 = vmatprep.subr.mxu0 0.0
    %2604 = vmatpush1.msra.mxu0 %v2517
    %2605 = vmatprep.subr.mxu0 0.0
    %2606 = vmatpush1.msra.mxu0 %v2518
    %2607 = vmatprep.subr.mxu0 0.0
    %2608 = vmatpush1.msra.mxu0 0.0
    %2609 = vmatprep.subr.mxu0 0.0
    %2610 = vmatpush1.msra.mxu0 0.0
    %2611 = vmatprep.subr.mxu0 0.0
    %2612 = vmatpush1.msra.mxu0 0.0
    %2613 = vmatprep.subr.mxu0 0.0
    %2614 = vmatpush1.msra.mxu0 0.0
    %2615 = vmatprep.subr.mxu0 0.0
    %2616 = vmatpush1.msra.mxu0 0.0
    %2617 = vmatprep.subr.mxu0 0.0
    %2618 = vmatpush1.msra.mxu0 0.0
    %2619 = vmatprep.subr.mxu0 0.0
    %2620 = vmatpush1.msra.mxu0 0.0
    %2621 = vmatprep.subr.mxu0 0.0
    %2622 = vmatpush1.msra.mxu0 0.0
    %2623 = vmatprep.subr.mxu0 0.0
    %2624 = vmatpush1.msra.mxu0 0.0
    %2625 = vmatprep.subr.mxu0 0.0
    %2626 = vmatpush1.msra.mxu0 0.0
    %2627 = vmatprep.subr.mxu0 0.0
    %2628 = vmatpush1.msra.mxu0 0.0
    %2629 = vmatprep.subr.mxu0 0.0
    %2630 = vmatpush1.msra.mxu0 0.0
    %2631 = vmatprep.subr.mxu0 0.0
    %2632 = vmatpush1.msra.mxu0 0.0
    %2633 = vmatprep.subr.mxu0 0.0
    %2634 = vmatpush1.msra.mxu0 0.0
    %2635 = vmatprep.subr.mxu0 0.0
    %2636 = vmatpush1.msra.mxu0 0.0
    %2637 = vmatprep.subr.mxu0 0.0
    %2638 = vmatpush1.msra.mxu0 0.0
    %2639 = vmatprep.subr.mxu0 0.0
    %2640 = vmatpush1.msra.mxu0 0.0
    %2641 = vmatprep.subr.mxu0 0.0
    %2642 = vmatpush1.msra.mxu0 0.0
    %2643 = vmatprep.subr.mxu0 0.0
    %2644 = vmatpush1.msra.mxu0 0.0
    %2645 = vmatprep.subr.mxu0 0.0
    %2646 = vmatpush1.msra.mxu0 0.0
    %2647 = vmatprep.subr.mxu0 0.0
    %2648 = vmatpush1.msra.mxu0 0.0
    %2649 = vmatprep.subr.mxu0 0.0
    %2650 = vmatpush1.msra.mxu0 0.0
    %2651 = vmatprep.subr.mxu0 0.0
    %2652 = vmatpush1.msra.mxu0 0.0
    %2653 = vmatprep.subr.mxu0 0.0
    %2654 = vmatpush1.msra.mxu0 0.0
    %2655 = vmatprep.subr.mxu0 0.0
    %2656 = vmatpush1.msra.mxu0 0.0
    %2657 = vmatprep.subr.mxu0 0.0
    %2658 = vmatpush1.msra.mxu0 0.0
    %2659 = vmatprep.subr.mxu0 0.0
    %2660 = vmatpush1.msra.mxu0 0.0
    %2661 = vmatprep.subr.mxu0 0.0
    %2662 = vmatpush1.msra.mxu0 0.0
    %2663 = vmatprep.mubr.f32.mxu0 0.0
    %2664 = vmatmul.mubr.f32.gmra.mrb[0].mxu0 %v327
    %v2665 = vpop.f32.mrb[0].mxu0
    %v2666 = vadd.f32 0.0, %v2665
    %v2667 = vpop.f32.mrb[0].mxu0
    %2668 = vdwg.mxu0
    %v2670 = vlaneseq
    %v2671 = vshrl.u32 %v2670, 7
    %v2672 = vsub.s32 0, %v2671
    %v2673 = vrot.slane %v2525, %v2672
    %2675 = vmatprep.subr.mxu0 0.0
    %2676 = vmatpush1.msra.mxu0 %v2520
    %2677 = vmatprep.subr.mxu0 0.0
    %2678 = vmatpush1.msra.mxu0 %v2521
    %2679 = vmatprep.subr.mxu0 0.0
    %2680 = vmatpush1.msra.mxu0 %v2522
    %2681 = vmatprep.subr.mxu0 0.0
    %2682 = vmatpush1.msra.mxu0 %v2523
    %2683 = vmatprep.subr.mxu0 0.0
    %2684 = vmatpush1.msra.mxu0 0.0
    %2685 = vmatprep.subr.mxu0 0.0
    %2686 = vmatpush1.msra.mxu0 0.0
    %2687 = vmatprep.subr.mxu0 0.0
    %2688 = vmatpush1.msra.mxu0 0.0
    %2689 = vmatprep.subr.mxu0 0.0
    %2690 = vmatpush1.msra.mxu0 0.0
    %2691 = vmatprep.subr.mxu0 0.0
    %2692 = vmatpush1.msra.mxu0 0.0
    %2693 = vmatprep.subr.mxu0 0.0
    %2694 = vmatpush1.msra.mxu0 0.0
    %2695 = vmatprep.subr.mxu0 0.0
    %2696 = vmatpush1.msra.mxu0 0.0
    %2697 = vmatprep.subr.mxu0 0.0
    %2698 = vmatpush1.msra.mxu0 0.0
    %2699 = vmatprep.subr.mxu0 0.0
    %2700 = vmatpush1.msra.mxu0 0.0
    %2701 = vmatprep.subr.mxu0 0.0
    %2702 = vmatpush1.msra.mxu0 0.0
    %2703 = vmatprep.subr.mxu0 0.0
    %2704 = vmatpush1.msra.mxu0 0.0
    %2705 = vmatprep.subr.mxu0 0.0
    %2706 = vmatpush1.msra.mxu0 0.0
    %2707 = vmatprep.subr.mxu0 0.0
    %2708 = vmatpush1.msra.mxu0 0.0
    %2709 = vmatprep.subr.mxu0 0.0
    %2710 = vmatpush1.msra.mxu0 0.0
    %2711 = vmatprep.subr.mxu0 0.0
    %2712 = vmatpush1.msra.mxu0 0.0
    %2713 = vmatprep.subr.mxu0 0.0
    %2714 = vmatpush1.msra.mxu0 0.0
    %2715 = vmatprep.subr.mxu0 0.0
    %2716 = vmatpush1.msra.mxu0 0.0
    %2717 = vmatprep.subr.mxu0 0.0
    %2718 = vmatpush1.msra.mxu0 0.0
    %2719 = vmatprep.subr.mxu0 0.0
    %2720 = vmatpush1.msra.mxu0 0.0
    %2721 = vmatprep.subr.mxu0 0.0
    %2722 = vmatpush1.msra.mxu0 0.0
    %2723 = vmatprep.subr.mxu0 0.0
    %2724 = vmatpush1.msra.mxu0 0.0
    %2725 = vmatprep.subr.mxu0 0.0
    %2726 = vmatpush1.msra.mxu0 0.0
    %2727 = vmatprep.subr.mxu0 0.0
    %2728 = vmatpush1.msra.mxu0 0.0
    %2729 = vmatprep.subr.mxu0 0.0
    %2730 = vmatpush1.msra.mxu0 0.0
    %2731 = vmatprep.subr.mxu0 0.0
    %2732 = vmatpush1.msra.mxu0 0.0
    %2733 = vmatprep.subr.mxu0 0.0
    %2734 = vmatpush1.msra.mxu0 0.0
    %2735 = vmatprep.subr.mxu0 0.0
    %2736 = vmatpush1.msra.mxu0 0.0
    %2737 = vmatprep.subr.mxu0 0.0
    %2738 = vmatpush1.msra.mxu0 0.0
    %2739 = vmatprep.mubr.f32.mxu0 0.0
    %2740 = vmatmul.mubr.f32.gmra.mrb[0].mxu0 %v327
    %v2741 = vpop.f32.mrb[0].mxu0
    %v2742 = vadd.f32 %v2673, %v2741
    %v2743 = vpop.f32.mrb[0].mxu0
    %2744 = vdwg.mxu0
    %v2745 = vadd.f32 %v2526, %v2596
    %v2746 = vxor.u32 %v2745, 2147483648
    %v2747 = vmul.f32 %v2746, 1.442695
    %v2748 = vpow.pop %v2747
    %v2749 = vadd.f32 %v2748, 1.0
    %v2750 = vrcp.pop %v2749
    %v2751 = vmul.f32 1.0, %v2750
    %v2752 = vadd.f32 %v2527, %v2666
    %v2753 = vxor.u32 %v2752, 2147483648
    %v2754 = vmul.f32 %v2753, 1.442695
    %v2755 = vpow.pop %v2754
    %v2756 = vadd.f32 %v2755, 1.0
    %v2757 = vrcp.pop %v2756
    %v2758 = vmul.f32 1.0, %v2757
    %v2759 = vmul.f32 %v2751, %v2742
    %v2760 = vadd.f32 %v2528, %v2759
    %v2761 = vtanh.pop %v2760
    %v2762 = vsub.f32 1.0, %v2758
    %v2763 = vmul.f32 %v2762, %v2761
    %v2764 = vmul.f32 %v2758, 0.0
    %v2765 = vadd.f32 %v2763, %v2764
    %2766 = vst.msk [vmem:[#allocation6] sm:$0x3] %vm566, %v2765
    %v2767 = vld [vmem:[#allocation2 + $0x2] sm:$0x3]
    %v2768 = vld [vmem:[#allocation3 + $0x2] sm:$0x3]
    %v2769 = vld [vmem:[#allocation4 + $0x2] sm:$0x3]
    %v2771 = vsel %vm128, %v2765, 0
    %2773 = vmatprep.subr.mxu0 0.0
    %2774 = vmatpush1.msra.mxu0 %v2510
    %2775 = vmatprep.subr.mxu0 0.0
    %2776 = vmatpush1.msra.mxu0 %v2511
    %2777 = vmatprep.subr.mxu0 0.0
    %2778 = vmatpush1.msra.mxu0 %v2512
    %2779 = vmatprep.subr.mxu0 0.0
    %2780 = vmatpush1.msra.mxu0 %v2513
    %2781 = vmatprep.subr.mxu0 0.0
    %2782 = vmatpush1.msra.mxu0 0.0
    %2783 = vmatprep.subr.mxu0 0.0
    %2784 = vmatpush1.msra.mxu0 0.0
    %2785 = vmatprep.subr.mxu0 0.0
    %2786 = vmatpush1.msra.mxu0 0.0
    %2787 = vmatprep.subr.mxu0 0.0
    %2788 = vmatpush1.msra.mxu0 0.0
    %2789 = vmatprep.subr.mxu0 0.0
    %2790 = vmatpush1.msra.mxu0 0.0
    %2791 = vmatprep.subr.mxu0 0.0
    %2792 = vmatpush1.msra.mxu0 0.0
    %2793 = vmatprep.subr.mxu0 0.0
    %2794 = vmatpush1.msra.mxu0 0.0
    %2795 = vmatprep.subr.mxu0 0.0
    %2796 = vmatpush1.msra.mxu0 0.0
    %2797 = vmatprep.subr.mxu0 0.0
    %2798 = vmatpush1.msra.mxu0 0.0
    %2799 = vmatprep.subr.mxu0 0.0
    %2800 = vmatpush1.msra.mxu0 0.0
    %2801 = vmatprep.subr.mxu0 0.0
    %2802 = vmatpush1.msra.mxu0 0.0
    %2803 = vmatprep.subr.mxu0 0.0
    %2804 = vmatpush1.msra.mxu0 0.0
    %2805 = vmatprep.subr.mxu0 0.0
    %2806 = vmatpush1.msra.mxu0 0.0
    %2807 = vmatprep.subr.mxu0 0.0
    %2808 = vmatpush1.msra.mxu0 0.0
    %2809 = vmatprep.subr.mxu0 0.0
    %2810 = vmatpush1.msra.mxu0 0.0
    %2811 = vmatprep.subr.mxu0 0.0
    %2812 = vmatpush1.msra.mxu0 0.0
    %2813 = vmatprep.subr.mxu0 0.0
    %2814 = vmatpush1.msra.mxu0 0.0
    %2815 = vmatprep.subr.mxu0 0.0
    %2816 = vmatpush1.msra.mxu0 0.0
    %2817 = vmatprep.subr.mxu0 0.0
    %2818 = vmatpush1.msra.mxu0 0.0
    %2819 = vmatprep.subr.mxu0 0.0
    %2820 = vmatpush1.msra.mxu0 0.0
    %2821 = vmatprep.subr.mxu0 0.0
    %2822 = vmatpush1.msra.mxu0 0.0
    %2823 = vmatprep.subr.mxu0 0.0
    %2824 = vmatpush1.msra.mxu0 0.0
    %2825 = vmatprep.subr.mxu0 0.0
    %2826 = vmatpush1.msra.mxu0 0.0
    %2827 = vmatprep.subr.mxu0 0.0
    %2828 = vmatpush1.msra.mxu0 0.0
    %2829 = vmatprep.subr.mxu0 0.0
    %2830 = vmatpush1.msra.mxu0 0.0
    %2831 = vmatprep.subr.mxu0 0.0
    %2832 = vmatpush1.msra.mxu0 0.0
    %2833 = vmatprep.subr.mxu0 0.0
    %2834 = vmatpush1.msra.mxu0 0.0
    %2835 = vmatprep.subr.mxu0 0.0
    %2836 = vmatpush1.msra.mxu0 0.0
    %2837 = vmatprep.mubr.f32.mxu0 0.0
    %2838 = vmatmul.mubr.f32.gmra.mrb[0].mxu0 %v2771
    %v2839 = vpop.f32.mrb[0].mxu0
    %v2840 = vadd.f32 0.0, %v2839
    %v2841 = vpop.f32.mrb[0].mxu0
    %2842 = vdwg.mxu0
    %2843 = vmatprep.subr.mxu0 0.0
    %2844 = vmatpush1.msra.mxu0 %v2515
    %2845 = vmatprep.subr.mxu0 0.0
    %2846 = vmatpush1.msra.mxu0 %v2516
    %2847 = vmatprep.subr.mxu0 0.0
    %2848 = vmatpush1.msra.mxu0 %v2517
    %2849 = vmatprep.subr.mxu0 0.0
    %2850 = vmatpush1.msra.mxu0 %v2518
    %2851 = vmatprep.subr.mxu0 0.0
    %2852 = vmatpush1.msra.mxu0 0.0
    %2853 = vmatprep.subr.mxu0 0.0
    %2854 = vmatpush1.msra.mxu0 0.0
    %2855 = vmatprep.subr.mxu0 0.0
    %2856 = vmatpush1.msra.mxu0 0.0
    %2857 = vmatprep.subr.mxu0 0.0
    %2858 = vmatpush1.msra.mxu0 0.0
    %2859 = vmatprep.subr.mxu0 0.0
    %2860 = vmatpush1.msra.mxu0 0.0
    %2861 = vmatprep.subr.mxu0 0.0
    %2862 = vmatpush1.msra.mxu0 0.0
    %2863 = vmatprep.subr.mxu0 0.0
    %2864 = vmatpush1.msra.mxu0 0.0
    %2865 = vmatprep.subr.mxu0 0.0
    %2866 = vmatpush1.msra.mxu0 0.0
    %2867 = vmatprep.subr.mxu0 0.0
    %2868 = vmatpush1.msra.mxu0 0.0
    %2869 = vmatprep.subr.mxu0 0.0
    %2870 = vmatpush1.msra.mxu0 0.0
    %2871 = vmatprep.subr.mxu0 0.0
    %2872 = vmatpush1.msra.mxu0 0.0
    %2873 = vmatprep.subr.mxu0 0.0
    %2874 = vmatpush1.msra.mxu0 0.0
    %2875 = vmatprep.subr.mxu0 0.0
    %2876 = vmatpush1.msra.mxu0 0.0
    %2877 = vmatprep.subr.mxu0 0.0
    %2878 = vmatpush1.msra.mxu0 0.0
    %2879 = vmatprep.subr.mxu0 0.0
    %2880 = vmatpush1.msra.mxu0 0.0
    %2881 = vmatprep.subr.mxu0 0.0
    %2882 = vmatpush1.msra.mxu0 0.0
    %2883 = vmatprep.subr.mxu0 0.0
    %2884 = vmatpush1.msra.mxu0 0.0
    %2885 = vmatprep.subr.mxu0 0.0
    %2886 = vmatpush1.msra.mxu0 0.0
    %2887 = vmatprep.subr.mxu0 0.0
    %2888 = vmatpush1.msra.mxu0 0.0
    %2889 = vmatprep.subr.mxu0 0.0
    %2890 = vmatpush1.msra.mxu0 0.0
    %2891 = vmatprep.subr.mxu0 0.0
    %2892 = vmatpush1.msra.mxu0 0.0
    %2893 = vmatprep.subr.mxu0 0.0
    %2894 = vmatpush1.msra.mxu0 0.0
    %2895 = vmatprep.subr.mxu0 0.0
    %2896 = vmatpush1.msra.mxu0 0.0
    %2897 = vmatprep.subr.mxu0 0.0
    %2898 = vmatpush1.msra.mxu0 0.0
    %2899 = vmatprep.subr.mxu0 0.0
    %2900 = vmatpush1.msra.mxu0 0.0
    %2901 = vmatprep.subr.mxu0 0.0
    %2902 = vmatpush1.msra.mxu0 0.0
    %2903 = vmatprep.subr.mxu0 0.0
    %2904 = vmatpush1.msra.mxu0 0.0
    %2905 = vmatprep.subr.mxu0 0.0
    %2906 = vmatpush1.msra.mxu0 0.0
    %2907 = vmatprep.mubr.f32.mxu0 0.0
    %2908 = vmatmul.mubr.f32.gmra.mrb[0].mxu0 %v2771
    %v2909 = vpop.f32.mrb[0].mxu0
    %v2910 = vadd.f32 0.0, %v2909
    %v2911 = vpop.f32.mrb[0].mxu0
    %2912 = vdwg.mxu0
    %2913 = vmatprep.subr.mxu0 0.0
    %2914 = vmatpush1.msra.mxu0 %v2520
    %2915 = vmatprep.subr.mxu0 0.0
    %2916 = vmatpush1.msra.mxu0 %v2521
    %2917 = vmatprep.subr.mxu0 0.0
    %2918 = vmatpush1.msra.mxu0 %v2522
    %2919 = vmatprep.subr.mxu0 0.0
    %2920 = vmatpush1.msra.mxu0 %v2523
    %2921 = vmatprep.subr.mxu0 0.0
    %2922 = vmatpush1.msra.mxu0 0.0
    %2923 = vmatprep.subr.mxu0 0.0
    %2924 = vmatpush1.msra.mxu0 0.0
    %2925 = vmatprep.subr.mxu0 0.0
    %2926 = vmatpush1.msra.mxu0 0.0
    %2927 = vmatprep.subr.mxu0 0.0
    %2928 = vmatpush1.msra.mxu0 0.0
    %2929 = vmatprep.subr.mxu0 0.0
    %2930 = vmatpush1.msra.mxu0 0.0
    %2931 = vmatprep.subr.mxu0 0.0
    %2932 = vmatpush1.msra.mxu0 0.0
    %2933 = vmatprep.subr.mxu0 0.0
    %2934 = vmatpush1.msra.mxu0 0.0
    %2935 = vmatprep.subr.mxu0 0.0
    %2936 = vmatpush1.msra.mxu0 0.0
    %2937 = vmatprep.subr.mxu0 0.0
    %2938 = vmatpush1.msra.mxu0 0.0
    %2939 = vmatprep.subr.mxu0 0.0
    %2940 = vmatpush1.msra.mxu0 0.0
    %2941 = vmatprep.subr.mxu0 0.0
    %2942 = vmatpush1.msra.mxu0 0.0
    %2943 = vmatprep.subr.mxu0 0.0
    %2944 = vmatpush1.msra.mxu0 0.0
    %2945 = vmatprep.subr.mxu0 0.0
    %2946 = vmatpush1.msra.mxu0 0.0
    %2947 = vmatprep.subr.mxu0 0.0
    %2948 = vmatpush1.msra.mxu0 0.0
    %2949 = vmatprep.subr.mxu0 0.0
    %2950 = vmatpush1.msra.mxu0 0.0
    %2951 = vmatprep.subr.mxu0 0.0
    %2952 = vmatpush1.msra.mxu0 0.0
    %2953 = vmatprep.subr.mxu0 0.0
    %2954 = vmatpush1.msra.mxu0 0.0
    %2955 = vmatprep.subr.mxu0 0.0
    %2956 = vmatpush1.msra.mxu0 0.0
    %2957 = vmatprep.subr.mxu0 0.0
    %2958 = vmatpush1.msra.mxu0 0.0
    %2959 = vmatprep.subr.mxu0 0.0
    %2960 = vmatpush1.msra.mxu0 0.0
    %2961 = vmatprep.subr.mxu0 0.0
    %2962 = vmatpush1.msra.mxu0 0.0
    %2963 = vmatprep.subr.mxu0 0.0
    %2964 = vmatpush1.msra.mxu0 0.0
    %2965 = vmatprep.subr.mxu0 0.0
    %2966 = vmatpush1.msra.mxu0 0.0
    %2967 = vmatprep.subr.mxu0 0.0
    %2968 = vmatpush1.msra.mxu0 0.0
    %2969 = vmatprep.subr.mxu0 0.0
    %2970 = vmatpush1.msra.mxu0 0.0
    %2971 = vmatprep.subr.mxu0 0.0
    %2972 = vmatpush1.msra.mxu0 0.0
    %2973 = vmatprep.subr.mxu0 0.0
    %2974 = vmatpush1.msra.mxu0 0.0
    %2975 = vmatprep.subr.mxu0 0.0
    %2976 = vmatpush1.msra.mxu0 0.0
    %2977 = vmatprep.mubr.f32.mxu0 0.0
    %2978 = vmatmul.mubr.f32.gmra.mrb[0].mxu0 %v2771
    %v2979 = vpop.f32.mrb[0].mxu0
    %v2980 = vadd.f32 %v2673, %v2979
    %v2981 = vpop.f32.mrb[0].mxu0
    %2982 = vdwg.mxu0
    %v2983 = vadd.f32 %v2767, %v2840
    %v2984 = vxor.u32 %v2983, 2147483648
    %v2985 = vmul.f32 %v2984, 1.442695
    %v2986 = vpow.pop %v2985
    %v2987 = vadd.f32 %v2986, 1.0
    %v2988 = vrcp.pop %v2987
    %v2989 = vmul.f32 1.0, %v2988
    %v2990 = vadd.f32 %v2768, %v2910
    %v2991 = vxor.u32 %v2990, 2147483648
    %v2992 = vmul.f32 %v2991, 1.442695
    %v2993 = vpow.pop %v2992
    %v2994 = vadd.f32 %v2993, 1.0
    %v2995 = vrcp.pop %v2994
    %v2996 = vmul.f32 1.0, %v2995
    %v2997 = vmul.f32 %v2989, %v2980
    %v2998 = vadd.f32 %v2769, %v2997
    %v2999 = vtanh.pop %v2998
    %v3000 = vsub.f32 1.0, %v2996
    %v3001 = vmul.f32 %v3000, %v2999
    %v3002 = vmul.f32 %v2996, %v2765
    %v3003 = vadd.f32 %v3001, %v3002
    %3004 = vst.msk [vmem:[#allocation6 + $0x2] sm:$0x3] %vm566, %v3003
    %v3005 = vld [vmem:[#allocation2 + $0x4] sm:$0x3]
    %v3006 = vld [vmem:[#allocation3 + $0x4] sm:$0x3]
    %v3007 = vld [vmem:[#allocation4 + $0x4] sm:$0x3]
    %v3009 = vsel %vm128, %v3003, 0
    %3011 = vmatprep.subr.mxu0 0.0
    %3012 = vmatpush1.msra.mxu0 %v2510
    %3013 = vmatprep.subr.mxu0 0.0
    %3014 = vmatpush1.msra.mxu0 %v2511
    %3015 = vmatprep.subr.mxu0 0.0
    %3016 = vmatpush1.msra.mxu0 %v2512
    %3017 = vmatprep.subr.mxu0 0.0
    %3018 = vmatpush1.msra.mxu0 %v2513
    %3019 = vmatprep.subr.mxu0 0.0
    %3020 = vmatpush1.msra.mxu0 0.0
    %3021 = vmatprep.subr.mxu0 0.0
    %3022 = vmatpush1.msra.mxu0 0.0
    %3023 = vmatprep.subr.mxu0 0.0
    %3024 = vmatpush1.msra.mxu0 0.0
    %3025 = vmatprep.subr.mxu0 0.0
    %3026 = vmatpush1.msra.mxu0 0.0
    %3027 = vmatprep.subr.mxu0 0.0
    %3028 = vmatpush1.msra.mxu0 0.0
    %3029 = vmatprep.subr.mxu0 0.0
    %3030 = vmatpush1.msra.mxu0 0.0
    %3031 = vmatprep.subr.mxu0 0.0
    %3032 = vmatpush1.msra.mxu0 0.0
    %3033 = vmatprep.subr.mxu0 0.0
    %3034 = vmatpush1.msra.mxu0 0.0
    %3035 = vmatprep.subr.mxu0 0.0
    %3036 = vmatpush1.msra.mxu0 0.0
    %3037 = vmatprep.subr.mxu0 0.0
    %3038 = vmatpush1.msra.mxu0 0.0
    %3039 = vmatprep.subr.mxu0 0.0
    %3040 = vmatpush1.msra.mxu0 0.0
    %3041 = vmatprep.subr.mxu0 0.0
    %3042 = vmatpush1.msra.mxu0 0.0
    %3043 = vmatprep.subr.mxu0 0.0
    %3044 = vmatpush1.msra.mxu0 0.0
    %3045 = vmatprep.subr.mxu0 0.0
    %3046 = vmatpush1.msra.mxu0 0.0
    %3047 = vmatprep.subr.mxu0 0.0
    %3048 = vmatpush1.msra.mxu0 0.0
    %3049 = vmatprep.subr.mxu0 0.0
    %3050 = vmatpush1.msra.mxu0 0.0
    %3051 = vmatprep.subr.mxu0 0.0
    %3052 = vmatpush1.msra.mxu0 0.0
    %3053 = vmatprep.subr.mxu0 0.0
    %3054 = vmatpush1.msra.mxu0 0.0
    %3055 = vmatprep.subr.mxu0 0.0
    %3056 = vmatpush1.msra.mxu0 0.0
    %3057 = vmatprep.subr.mxu0 0.0
    %3058 = vmatpush1.msra.mxu0 0.0
    %3059 = vmatprep.subr.mxu0 0.0
    %3060 = vmatpush1.msra.mxu0 0.0
    %3061 = vmatprep.subr.mxu0 0.0
    %3062 = vmatpush1.msra.mxu0 0.0
    %3063 = vmatprep.subr.mxu0 0.0
    %3064 = vmatpush1.msra.mxu0 0.0
    %3065 = vmatprep.subr.mxu0 0.0
    %3066 = vmatpush1.msra.mxu0 0.0
    %3067 = vmatprep.subr.mxu0 0.0
    %3068 = vmatpush1.msra.mxu0 0.0
    %3069 = vmatprep.subr.mxu0 0.0
    %3070 = vmatpush1.msra.mxu0 0.0
    %3071 = vmatprep.subr.mxu0 0.0
    %3072 = vmatpush1.msra.mxu0 0.0
    %3073 = vmatprep.subr.mxu0 0.0
    %3074 = vmatpush1.msra.mxu0 0.0
    %3075 = vmatprep.mubr.f32.mxu0 0.0
    %3076 = vmatmul.mubr.f32.gmra.mrb[0].mxu0 %v3009
    %v3077 = vpop.f32.mrb[0].mxu0
    %v3078 = vadd.f32 0.0, %v3077
    %v3079 = vpop.f32.mrb[0].mxu0
    %3080 = vdwg.mxu0
    %3081 = vmatprep.subr.mxu0 0.0
    %3082 = vmatpush1.msra.mxu0 %v2515
    %3083 = vmatprep.subr.mxu0 0.0
    %3084 = vmatpush1.msra.mxu0 %v2516
    %3085 = vmatprep.subr.mxu0 0.0
    %3086 = vmatpush1.msra.mxu0 %v2517
    %3087 = vmatprep.subr.mxu0 0.0
    %3088 = vmatpush1.msra.mxu0 %v2518
    %3089 = vmatprep.subr.mxu0 0.0
    %3090 = vmatpush1.msra.mxu0 0.0
    %3091 = vmatprep.subr.mxu0 0.0
    %3092 = vmatpush1.msra.mxu0 0.0
    %3093 = vmatprep.subr.mxu0 0.0
    %3094 = vmatpush1.msra.mxu0 0.0
    %3095 = vmatprep.subr.mxu0 0.0
    %3096 = vmatpush1.msra.mxu0 0.0
    %3097 = vmatprep.subr.mxu0 0.0
    %3098 = vmatpush1.msra.mxu0 0.0
    %3099 = vmatprep.subr.mxu0 0.0
    %3100 = vmatpush1.msra.mxu0 0.0
    %3101 = vmatprep.subr.mxu0 0.0
    %3102 = vmatpush1.msra.mxu0 0.0
    %3103 = vmatprep.subr.mxu0 0.0
    %3104 = vmatpush1.msra.mxu0 0.0
    %3105 = vmatprep.subr.mxu0 0.0
    %3106 = vmatpush1.msra.mxu0 0.0
    %3107 = vmatprep.subr.mxu0 0.0
    %3108 = vmatpush1.msra.mxu0 0.0
    %3109 = vmatprep.subr.mxu0 0.0
    %3110 = vmatpush1.msra.mxu0 0.0
    %3111 = vmatprep.subr.mxu0 0.0
    %3112 = vmatpush1.msra.mxu0 0.0
    %3113 = vmatprep.subr.mxu0 0.0
    %3114 = vmatpush1.msra.mxu0 0.0
    %3115 = vmatprep.subr.mxu0 0.0
    %3116 = vmatpush1.msra.mxu0 0.0
    %3117 = vmatprep.subr.mxu0 0.0
    %3118 = vmatpush1.msra.mxu0 0.0
    %3119 = vmatprep.subr.mxu0 0.0
    %3120 = vmatpush1.msra.mxu0 0.0
    %3121 = vmatprep.subr.mxu0 0.0
    %3122 = vmatpush1.msra.mxu0 0.0
    %3123 = vmatprep.subr.mxu0 0.0
    %3124 = vmatpush1.msra.mxu0 0.0
    %3125 = vmatprep.subr.mxu0 0.0
    %3126 = vmatpush1.msra.mxu0 0.0
    %3127 = vmatprep.subr.mxu0 0.0
    %3128 = vmatpush1.msra.mxu0 0.0
    %3129 = vmatprep.subr.mxu0 0.0
    %3130 = vmatpush1.msra.mxu0 0.0
    %3131 = vmatprep.subr.mxu0 0.0
    %3132 = vmatpush1.msra.mxu0 0.0
    %3133 = vmatprep.subr.mxu0 0.0
    %3134 = vmatpush1.msra.mxu0 0.0
    %3135 = vmatprep.subr.mxu0 0.0
    %3136 = vmatpush1.msra.mxu0 0.0
    %3137 = vmatprep.subr.mxu0 0.0
    %3138 = vmatpush1.msra.mxu0 0.0
    %3139 = vmatprep.subr.mxu0 0.0
    %3140 = vmatpush1.msra.mxu0 0.0
    %3141 = vmatprep.subr.mxu0 0.0
    %3142 = vmatpush1.msra.mxu0 0.0
    %3143 = vmatprep.subr.mxu0 0.0
    %3144 = vmatpush1.msra.mxu0 0.0
    %3145 = vmatprep.mubr.f32.mxu0 0.0
    %3146 = vmatmul.mubr.f32.gmra.mrb[0].mxu0 %v3009
    %v3147 = vpop.f32.mrb[0].mxu0
    %v3148 = vadd.f32 0.0, %v3147
    %v3149 = vpop.f32.mrb[0].mxu0
    %3150 = vdwg.mxu0
    %3151 = vmatprep.subr.mxu0 0.0
    %3152 = vmatpush1.msra.mxu0 %v2520
    %3153 = vmatprep.subr.mxu0 0.0
    %3154 = vmatpush1.msra.mxu0 %v2521
    %3155 = vmatprep.subr.mxu0 0.0
    %3156 = vmatpush1.msra.mxu0 %v2522
    %3157 = vmatprep.subr.mxu0 0.0
    %3158 = vmatpush1.msra.mxu0 %v2523
    %3159 = vmatprep.subr.mxu0 0.0
    %3160 = vmatpush1.msra.mxu0 0.0
    %3161 = vmatprep.subr.mxu0 0.0
    %3162 = vmatpush1.msra.mxu0 0.0
    %3163 = vmatprep.subr.mxu0 0.0
    %3164 = vmatpush1.msra.mxu0 0.0
    %3165 = vmatprep.subr.mxu0 0.0
    %3166 = vmatpush1.msra.mxu0 0.0
    %3167 = vmatprep.subr.mxu0 0.0
    %3168 = vmatpush1.msra.mxu0 0.0
    %3169 = vmatprep.subr.mxu0 0.0
    %3170 = vmatpush1.msra.mxu0 0.0
    %3171 = vmatprep.subr.mxu0 0.0
    %3172 = vmatpush1.msra.mxu0 0.0
    %3173 = vmatprep.subr.mxu0 0.0
    %3174 = vmatpush1.msra.mxu0 0.0
    %3175 = vmatprep.subr.mxu0 0.0
    %3176 = vmatpush1.msra.mxu0 0.0
    %3177 = vmatprep.subr.mxu0 0.0
    %3178 = vmatpush1.msra.mxu0 0.0
    %3179 = vmatprep.subr.mxu0 0.0
    %3180 = vmatpush1.msra.mxu0 0.0
    %3181 = vmatprep.subr.mxu0 0.0
    %3182 = vmatpush1.msra.mxu0 0.0
    %3183 = vmatprep.subr.mxu0 0.0
    %3184 = vmatpush1.msra.mxu0 0.0
    %3185 = vmatprep.subr.mxu0 0.0
    %3186 = vmatpush1.msra.mxu0 0.0
    %3187 = vmatprep.subr.mxu0 0.0
    %3188 = vmatpush1.msra.mxu0 0.0
    %3189 = vmatprep.subr.mxu0 0.0
    %3190 = vmatpush1.msra.mxu0 0.0
    %3191 = vmatprep.subr.mxu0 0.0
    %3192 = vmatpush1.msra.mxu0 0.0
    %3193 = vmatprep.subr.mxu0 0.0
    %3194 = vmatpush1.msra.mxu0 0.0
    %3195 = vmatprep.subr.mxu0 0.0
    %3196 = vmatpush1.msra.mxu0 0.0
    %3197 = vmatprep.subr.mxu0 0.0
    %3198 = vmatpush1.msra.mxu0 0.0
    %3199 = vmatprep.subr.mxu0 0.0
    %3200 = vmatpush1.msra.mxu0 0.0
    %3201 = vmatprep.subr.mxu0 0.0
    %3202 = vmatpush1.msra.mxu0 0.0
    %3203 = vmatprep.subr.mxu0 0.0
    %3204 = vmatpush1.msra.mxu0 0.0
    %3205 = vmatprep.subr.mxu0 0.0
    %3206 = vmatpush1.msra.mxu0 0.0
    %3207 = vmatprep.subr.mxu0 0.0
    %3208 = vmatpush1.msra.mxu0 0.0
    %3209 = vmatprep.subr.mxu0 0.0
    %3210 = vmatpush1.msra.mxu0 0.0
    %3211 = vmatprep.subr.mxu0 0.0
    %3212 = vmatpush1.msra.mxu0 0.0
    %3213 = vmatprep.subr.mxu0 0.0
    %3214 = vmatpush1.msra.mxu0 0.0
    %3215 = vmatprep.mubr.f32.mxu0 0.0
    %3216 = vmatmul.mubr.f32.gmra.mrb[0].mxu0 %v3009
    %v3217 = vpop.f32.mrb[0].mxu0
    %v3218 = vadd.f32 %v2673, %v3217
    %v3219 = vpop.f32.mrb[0].mxu0
    %3220 = vdwg.mxu0
    %v3221 = vadd.f32 %v3005, %v3078
    %v3222 = vxor.u32 %v3221, 2147483648
    %v3223 = vmul.f32 %v3222, 1.442695
    %v3224 = vpow.pop %v3223
    %v3225 = vadd.f32 %v3224, 1.0
    %v3226 = vrcp.pop %v3225
    %v3227 = vmul.f32 1.0, %v3226
    %v3228 = vadd.f32 %v3006, %v3148
    %v3229 = vxor.u32 %v3228, 2147483648
    %v3230 = vmul.f32 %v3229, 1.442695
    %v3231 = vpow.pop %v3230
    %v3232 = vadd.f32 %v3231, 1.0
    %v3233 = vrcp.pop %v3232
    %v3234 = vmul.f32 1.0, %v3233
    %v3235 = vmul.f32 %v3227, %v3218
    %v3236 = vadd.f32 %v3007, %v3235
    %v3237 = vtanh.pop %v3236
    %v3238 = vsub.f32 1.0, %v3234
    %v3239 = vmul.f32 %v3238, %v3237
    %v3240 = vmul.f32 %v3234, %v3003
    %v3241 = vadd.f32 %v3239, %v3240
    %3242 = vst.msk [vmem:[#allocation6 + $0x4] sm:$0x3] %vm566, %v3241
    %v3243 = vld [vmem:[#allocation2 + $0x6] sm:$0x3]
    %v3244 = vld [vmem:[#allocation3 + $0x6] sm:$0x3]
    %v3245 = vld [vmem:[#allocation4 + $0x6] sm:$0x3]
    %v3247 = vsel %vm128, %v3241, 0
    %3249 = vmatprep.subr.mxu0 0.0
    %3250 = vmatpush1.msra.mxu0 %v2510
    %3251 = vmatprep.subr.mxu0 0.0
    %3252 = vmatpush1.msra.mxu0 %v2511
    %3253 = vmatprep.subr.mxu0 0.0
    %3254 = vmatpush1.msra.mxu0 %v2512
    %3255 = vmatprep.subr.mxu0 0.0
    %3256 = vmatpush1.msra.mxu0 %v2513
    %3257 = vmatprep.subr.mxu0 0.0
    %3258 = vmatpush1.msra.mxu0 0.0
    %3259 = vmatprep.subr.mxu0 0.0
    %3260 = vmatpush1.msra.mxu0 0.0
    %3261 = vmatprep.subr.mxu0 0.0
    %3262 = vmatpush1.msra.mxu0 0.0
    %3263 = vmatprep.subr.mxu0 0.0
    %3264 = vmatpush1.msra.mxu0 0.0
    %3265 = vmatprep.subr.mxu0 0.0
    %3266 = vmatpush1.msra.mxu0 0.0
    %3267 = vmatprep.subr.mxu0 0.0
    %3268 = vmatpush1.msra.mxu0 0.0
    %3269 = vmatprep.subr.mxu0 0.0
    %3270 = vmatpush1.msra.mxu0 0.0
    %3271 = vmatprep.subr.mxu0 0.0
    %3272 = vmatpush1.msra.mxu0 0.0
    %3273 = vmatprep.subr.mxu0 0.0
    %3274 = vmatpush1.msra.mxu0 0.0
    %3275 = vmatprep.subr.mxu0 0.0
    %3276 = vmatpush1.msra.mxu0 0.0
    %3277 = vmatprep.subr.mxu0 0.0
    %3278 = vmatpush1.msra.mxu0 0.0
    %3279 = vmatprep.subr.mxu0 0.0
    %3280 = vmatpush1.msra.mxu0 0.0
    %3281 = vmatprep.subr.mxu0 0.0
    %3282 = vmatpush1.msra.mxu0 0.0
    %3283 = vmatprep.subr.mxu0 0.0
    %3284 = vmatpush1.msra.mxu0 0.0
    %3285 = vmatprep.subr.mxu0 0.0
    %3286 = vmatpush1.msra.mxu0 0.0
    %3287 = vmatprep.subr.mxu0 0.0
    %3288 = vmatpush1.msra.mxu0 0.0
    %3289 = vmatprep.subr.mxu0 0.0
    %3290 = vmatpush1.msra.mxu0 0.0
    %3291 = vmatprep.subr.mxu0 0.0
    %3292 = vmatpush1.msra.mxu0 0.0
    %3293 = vmatprep.subr.mxu0 0.0
    %3294 = vmatpush1.msra.mxu0 0.0
    %3295 = vmatprep.subr.mxu0 0.0
    %3296 = vmatpush1.msra.mxu0 0.0
    %3297 = vmatprep.subr.mxu0 0.0
    %3298 = vmatpush1.msra.mxu0 0.0
    %3299 = vmatprep.subr.mxu0 0.0
    %3300 = vmatpush1.msra.mxu0 0.0
    %3301 = vmatprep.subr.mxu0 0.0
    %3302 = vmatpush1.msra.mxu0 0.0
    %3303 = vmatprep.subr.mxu0 0.0
    %3304 = vmatpush1.msra.mxu0 0.0
    %3305 = vmatprep.subr.mxu0 0.0
    %3306 = vmatpush1.msra.mxu0 0.0
    %3307 = vmatprep.subr.mxu0 0.0
    %3308 = vmatpush1.msra.mxu0 0.0
    %3309 = vmatprep.subr.mxu0 0.0
    %3310 = vmatpush1.msra.mxu0 0.0
    %3311 = vmatprep.subr.mxu0 0.0
    %3312 = vmatpush1.msra.mxu0 0.0
    %3313 = vmatprep.mubr.f32.mxu0 0.0
    %3314 = vmatmul.mubr.f32.gmra.mrb[0].mxu0 %v3247
    %v3315 = vpop.f32.mrb[0].mxu0
    %v3316 = vadd.f32 0.0, %v3315
    %v3317 = vpop.f32.mrb[0].mxu0
    %3318 = vdwg.mxu0
    %3319 = vmatprep.subr.mxu0 0.0
    %3320 = vmatpush1.msra.mxu0 %v2515
    %3321 = vmatprep.subr.mxu0 0.0
    %3322 = vmatpush1.msra.mxu0 %v2516
    %3323 = vmatprep.subr.mxu0 0.0
    %3324 = vmatpush1.msra.mxu0 %v2517
    %3325 = vmatprep.subr.mxu0 0.0
    %3326 = vmatpush1.msra.mxu0 %v2518
    %3327 = vmatprep.subr.mxu0 0.0
    %3328 = vmatpush1.msra.mxu0 0.0
    %3329 = vmatprep.subr.mxu0 0.0
    %3330 = vmatpush1.msra.mxu0 0.0
    %3331 = vmatprep.subr.mxu0 0.0
    %3332 = vmatpush1.msra.mxu0 0.0
    %3333 = vmatprep.subr.mxu0 0.0
    %3334 = vmatpush1.msra.mxu0 0.0
    %3335 = vmatprep.subr.mxu0 0.0
    %3336 = vmatpush1.msra.mxu0 0.0
    %3337 = vmatprep.subr.mxu0 0.0
    %3338 = vmatpush1.msra.mxu0 0.0
    %3339 = vmatprep.subr.mxu0 0.0
    %3340 = vmatpush1.msra.mxu0 0.0
    %3341 = vmatprep.subr.mxu0 0.0
    %3342 = vmatpush1.msra.mxu0 0.0
    %3343 = vmatprep.subr.mxu0 0.0
    %3344 = vmatpush1.msra.mxu0 0.0
    %3345 = vmatprep.subr.mxu0 0.0
    %3346 = vmatpush1.msra.mxu0 0.0
    %3347 = vmatprep.subr.mxu0 0.0
    %3348 = vmatpush1.msra.mxu0 0.0
    %3349 = vmatprep.subr.mxu0 0.0
    %3350 = vmatpush1.msra.mxu0 0.0
    %3351 = vmatprep.subr.mxu0 0.0
    %3352 = vmatpush1.msra.mxu0 0.0
    %3353 = vmatprep.subr.mxu0 0.0
    %3354 = vmatpush1.msra.mxu0 0.0
    %3355 = vmatprep.subr.mxu0 0.0
    %3356 = vmatpush1.msra.mxu0 0.0
    %3357 = vmatprep.subr.mxu0 0.0
    %3358 = vmatpush1.msra.mxu0 0.0
    %3359 = vmatprep.subr.mxu0 0.0
    %3360 = vmatpush1.msra.mxu0 0.0
    %3361 = vmatprep.subr.mxu0 0.0
    %3362 = vmatpush1.msra.mxu0 0.0
    %3363 = vmatprep.subr.mxu0 0.0
    %3364 = vmatpush1.msra.mxu0 0.0
    %3365 = vmatprep.subr.mxu0 0.0
    %3366 = vmatpush1.msra.mxu0 0.0
    %3367 = vmatprep.subr.mxu0 0.0
    %3368 = vmatpush1.msra.mxu0 0.0
    %3369 = vmatprep.subr.mxu0 0.0
    %3370 = vmatpush1.msra.mxu0 0.0
    %3371 = vmatprep.subr.mxu0 0.0
    %3372 = vmatpush1.msra.mxu0 0.0
    %3373 = vmatprep.subr.mxu0 0.0
    %3374 = vmatpush1.msra.mxu0 0.0
    %3375 = vmatprep.subr.mxu0 0.0
    %3376 = vmatpush1.msra.mxu0 0.0
    %3377 = vmatprep.subr.mxu0 0.0
    %3378 = vmatpush1.msra.mxu0 0.0
    %3379 = vmatprep.subr.mxu0 0.0
    %3380 = vmatpush1.msra.mxu0 0.0
    %3381 = vmatprep.subr.mxu0 0.0
    %3382 = vmatpush1.msra.mxu0 0.0
    %3383 = vmatprep.mubr.f32.mxu0 0.0
    %3384 = vmatmul.mubr.f32.gmra.mrb[0].mxu0 %v3247
    %v3385 = vpop.f32.mrb[0].mxu0
    %v3386 = vadd.f32 0.0, %v3385
    %v3387 = vpop.f32.mrb[0].mxu0
    %3388 = vdwg.mxu0
    %3389 = vmatprep.subr.mxu0 0.0
    %3390 = vmatpush1.msra.mxu0 %v2520
    %3391 = vmatprep.subr.mxu0 0.0
    %3392 = vmatpush1.msra.mxu0 %v2521
    %3393 = vmatprep.subr.mxu0 0.0
    %3394 = vmatpush1.msra.mxu0 %v2522
    %3395 = vmatprep.subr.mxu0 0.0
    %3396 = vmatpush1.msra.mxu0 %v2523
    %3397 = vmatprep.subr.mxu0 0.0
    %3398 = vmatpush1.msra.mxu0 0.0
    %3399 = vmatprep.subr.mxu0 0.0
    %3400 = vmatpush1.msra.mxu0 0.0
    %3401 = vmatprep.subr.mxu0 0.0
    %3402 = vmatpush1.msra.mxu0 0.0
    %3403 = vmatprep.subr.mxu0 0.0
    %3404 = vmatpush1.msra.mxu0 0.0
    %3405 = vmatprep.subr.mxu0 0.0
    %3406 = vmatpush1.msra.mxu0 0.0
    %3407 = vmatprep.subr.mxu0 0.0
    %3408 = vmatpush1.msra.mxu0 0.0
    %3409 = vmatprep.subr.mxu0 0.0
    %3410 = vmatpush1.msra.mxu0 0.0
    %3411 = vmatprep.subr.mxu0 0.0
    %3412 = vmatpush1.msra.mxu0 0.0
    %3413 = vmatprep.subr.mxu0 0.0
    %3414 = vmatpush1.msra.mxu0 0.0
    %3415 = vmatprep.subr.mxu0 0.0
    %3416 = vmatpush1.msra.mxu0 0.0
    %3417 = vmatprep.subr.mxu0 0.0
    %3418 = vmatpush1.msra.mxu0 0.0
    %3419 = vmatprep.subr.mxu0 0.0
    %3420 = vmatpush1.msra.mxu0 0.0
    %3421 = vmatprep.subr.mxu0 0.0
    %3422 = vmatpush1.msra.mxu0 0.0
    %3423 = vmatprep.subr.mxu0 0.0
    %3424 = vmatpush1.msra.mxu0 0.0
    %3425 = vmatprep.subr.mxu0 0.0
    %3426 = vmatpush1.msra.mxu0 0.0
    %3427 = vmatprep.subr.mxu0 0.0
    %3428 = vmatpush1.msra.mxu0 0.0
    %3429 = vmatprep.subr.mxu0 0.0
    %3430 = vmatpush1.msra.mxu0 0.0
    %3431 = vmatprep.subr.mxu0 0.0
    %3432 = vmatpush1.msra.mxu0 0.0
    %3433 = vmatprep.subr.mxu0 0.0
    %3434 = vmatpush1.msra.mxu0 0.0
    %3435 = vmatprep.subr.mxu0 0.0
    %3436 = vmatpush1.msra.mxu0 0.0
    %3437 = vmatprep.subr.mxu0 0.0
    %3438 = vmatpush1.msra.mxu0 0.0
    %3439 = vmatprep.subr.mxu0 0.0
    %3440 = vmatpush1.msra.mxu0 0.0
    %3441 = vmatprep.subr.mxu0 0.0
    %3442 = vmatpush1.msra.mxu0 0.0
    %3443 = vmatprep.subr.mxu0 0.0
    %3444 = vmatpush1.msra.mxu0 0.0
    %3445 = vmatprep.subr.mxu0 0.0
    %3446 = vmatpush1.msra.mxu0 0.0
    %3447 = vmatprep.subr.mxu0 0.0
    %3448 = vmatpush1.msra.mxu0 0.0
    %3449 = vmatprep.subr.mxu0 0.0
    %3450 = vmatpush1.msra.mxu0 0.0
    %3451 = vmatprep.subr.mxu0 0.0
    %3452 = vmatpush1.msra.mxu0 0.0
    %3453 = vmatprep.mubr.f32.mxu0 0.0
    %3454 = vmatmul.mubr.f32.gmra.mrb[0].mxu0 %v3247
    %v3455 = vpop.f32.mrb[0].mxu0
    %v3456 = vadd.f32 %v2673, %v3455
    %v3457 = vpop.f32.mrb[0].mxu0
    %3458 = vdwg.mxu0
    %v3459 = vadd.f32 %v3243, %v3316
    %v3460 = vxor.u32 %v3459, 2147483648
    %v3461 = vmul.f32 %v3460, 1.442695
    %v3462 = vpow.pop %v3461
    %v3463 = vadd.f32 %v3462, 1.0
    %v3464 = vrcp.pop %v3463
    %v3465 = vmul.f32 1.0, %v3464
    %v3466 = vadd.f32 %v3244, %v3386
    %v3467 = vxor.u32 %v3466, 2147483648
    %v3468 = vmul.f32 %v3467, 1.442695
    %v3469 = vpow.pop %v3468
    %v3470 = vadd.f32 %v3469, 1.0
    %v3471 = vrcp.pop %v3470
    %v3472 = vmul.f32 1.0, %v3471
    %v3473 = vmul.f32 %v3465, %v3456
    %v3474 = vadd.f32 %v3245, %v3473
    %v3475 = vtanh.pop %v3474
    %v3476 = vsub.f32 1.0, %v3472
    %v3477 = vmul.f32 %v3476, %v3475
    %v3478 = vmul.f32 %v3472, %v3241
    %v3479 = vadd.f32 %v3477, %v3478
    %3480 = vst.msk [vmem:[#allocation6 + $0x6] sm:$0x3] %vm566, %v3479
    %v3481 = vld [vmem:[#allocation2 + $0x8] sm:$0x3]
    %v3482 = vld [vmem:[#allocation3 + $0x8] sm:$0x3]
    %v3483 = vld [vmem:[#allocation4 + $0x8] sm:$0x3]
    %v3485 = vsel %vm128, %v3479, 0
    %3487 = vmatprep.subr.mxu0 0.0
    %3488 = vmatpush1.msra.mxu0 %v2510
    %3489 = vmatprep.subr.mxu0 0.0
    %3490 = vmatpush1.msra.mxu0 %v2511
    %3491 = vmatprep.subr.mxu0 0.0
    %3492 = vmatpush1.msra.mxu0 %v2512
    %3493 = vmatprep.subr.mxu0 0.0
    %3494 = vmatpush1.msra.mxu0 %v2513
    %3495 = vmatprep.subr.mxu0 0.0
    %3496 = vmatpush1.msra.mxu0 0.0
    %3497 = vmatprep.subr.mxu0 0.0
    %3498 = vmatpush1.msra.mxu0 0.0
    %3499 = vmatprep.subr.mxu0 0.0
    %3500 = vmatpush1.msra.mxu0 0.0
    %3501 = vmatprep.subr.mxu0 0.0
    %3502 = vmatpush1.msra.mxu0 0.0
    %3503 = vmatprep.subr.mxu0 0.0
    %3504 = vmatpush1.msra.mxu0 0.0
    %3505 = vmatprep.subr.mxu0 0.0
    %3506 = vmatpush1.msra.mxu0 0.0
    %3507 = vmatprep.subr.mxu0 0.0
    %3508 = vmatpush1.msra.mxu0 0.0
    %3509 = vmatprep.subr.mxu0 0.0
    %3510 = vmatpush1.msra.mxu0 0.0
    %3511 = vmatprep.subr.mxu0 0.0
    %3512 = vmatpush1.msra.mxu0 0.0
    %3513 = vmatprep.subr.mxu0 0.0
    %3514 = vmatpush1.msra.mxu0 0.0
    %3515 = vmatprep.subr.mxu0 0.0
    %3516 = vmatpush1.msra.mxu0 0.0
    %3517 = vmatprep.subr.mxu0 0.0
    %3518 = vmatpush1.msra.mxu0 0.0
    %3519 = vmatprep.subr.mxu0 0.0
    %3520 = vmatpush1.msra.mxu0 0.0
    %3521 = vmatprep.subr.mxu0 0.0
    %3522 = vmatpush1.msra.mxu0 0.0
    %3523 = vmatprep.subr.mxu0 0.0
    %3524 = vmatpush1.msra.mxu0 0.0
    %3525 = vmatprep.subr.mxu0 0.0
    %3526 = vmatpush1.msra.mxu0 0.0
    %3527 = vmatprep.subr.mxu0 0.0
    %3528 = vmatpush1.msra.mxu0 0.0
    %3529 = vmatprep.subr.mxu0 0.0
    %3530 = vmatpush1.msra.mxu0 0.0
    %3531 = vmatprep.subr.mxu0 0.0
    %3532 = vmatpush1.msra.mxu0 0.0
    %3533 = vmatprep.subr.mxu0 0.0
    %3534 = vmatpush1.msra.mxu0 0.0
    %3535 = vmatprep.subr.mxu0 0.0
    %3536 = vmatpush1.msra.mxu0 0.0
    %3537 = vmatprep.subr.mxu0 0.0
    %3538 = vmatpush1.msra.mxu0 0.0
    %3539 = vmatprep.subr.mxu0 0.0
    %3540 = vmatpush1.msra.mxu0 0.0
    %3541 = vmatprep.subr.mxu0 0.0
    %3542 = vmatpush1.msra.mxu0 0.0
    %3543 = vmatprep.subr.mxu0 0.0
    %3544 = vmatpush1.msra.mxu0 0.0
    %3545 = vmatprep.subr.mxu0 0.0
    %3546 = vmatpush1.msra.mxu0 0.0
    %3547 = vmatprep.subr.mxu0 0.0
    %3548 = vmatpush1.msra.mxu0 0.0
    %3549 = vmatprep.subr.mxu0 0.0
    %3550 = vmatpush1.msra.mxu0 0.0
    %3551 = vmatprep.mubr.f32.mxu0 0.0
    %3552 = vmatmul.mubr.f32.gmra.mrb[0].mxu0 %v3485
    %v3553 = vpop.f32.mrb[0].mxu0
    %v3554 = vadd.f32 0.0, %v3553
    %v3555 = vpop.f32.mrb[0].mxu0
    %3556 = vdwg.mxu0
    %3557 = vmatprep.subr.mxu0 0.0
    %3558 = vmatpush1.msra.mxu0 %v2515
    %3559 = vmatprep.subr.mxu0 0.0
    %3560 = vmatpush1.msra.mxu0 %v2516
    %3561 = vmatprep.subr.mxu0 0.0
    %3562 = vmatpush1.msra.mxu0 %v2517
    %3563 = vmatprep.subr.mxu0 0.0
    %3564 = vmatpush1.msra.mxu0 %v2518
    %3565 = vmatprep.subr.mxu0 0.0
    %3566 = vmatpush1.msra.mxu0 0.0
    %3567 = vmatprep.subr.mxu0 0.0
    %3568 = vmatpush1.msra.mxu0 0.0
    %3569 = vmatprep.subr.mxu0 0.0
    %3570 = vmatpush1.msra.mxu0 0.0
    %3571 = vmatprep.subr.mxu0 0.0
    %3572 = vmatpush1.msra.mxu0 0.0
    %3573 = vmatprep.subr.mxu0 0.0
    %3574 = vmatpush1.msra.mxu0 0.0
    %3575 = vmatprep.subr.mxu0 0.0
    %3576 = vmatpush1.msra.mxu0 0.0
    %3577 = vmatprep.subr.mxu0 0.0
    %3578 = vmatpush1.msra.mxu0 0.0
    %3579 = vmatprep.subr.mxu0 0.0
    %3580 = vmatpush1.msra.mxu0 0.0
    %3581 = vmatprep.subr.mxu0 0.0
    %3582 = vmatpush1.msra.mxu0 0.0
    %3583 = vmatprep.subr.mxu0 0.0
    %3584 = vmatpush1.msra.mxu0 0.0
    %3585 = vmatprep.subr.mxu0 0.0
    %3586 = vmatpush1.msra.mxu0 0.0
    %3587 = vmatprep.subr.mxu0 0.0
    %3588 = vmatpush1.msra.mxu0 0.0
    %3589 = vmatprep.subr.mxu0 0.0
    %3590 = vmatpush1.msra.mxu0 0.0
    %3591 = vmatprep.subr.mxu0 0.0
    %3592 = vmatpush1.msra.mxu0 0.0
    %3593 = vmatprep.subr.mxu0 0.0
    %3594 = vmatpush1.msra.mxu0 0.0
    %3595 = vmatprep.subr.mxu0 0.0
    %3596 = vmatpush1.msra.mxu0 0.0
    %3597 = vmatprep.subr.mxu0 0.0
    %3598 = vmatpush1.msra.mxu0 0.0
    %3599 = vmatprep.subr.mxu0 0.0
    %3600 = vmatpush1.msra.mxu0 0.0
    %3601 = vmatprep.subr.mxu0 0.0
    %3602 = vmatpush1.msra.mxu0 0.0
    %3603 = vmatprep.subr.mxu0 0.0
    %3604 = vmatpush1.msra.mxu0 0.0
    %3605 = vmatprep.subr.mxu0 0.0
    %3606 = vmatpush1.msra.mxu0 0.0
    %3607 = vmatprep.subr.mxu0 0.0
    %3608 = vmatpush1.msra.mxu0 0.0
    %3609 = vmatprep.subr.mxu0 0.0
    %3610 = vmatpush1.msra.mxu0 0.0
    %3611 = vmatprep.subr.mxu0 0.0
    %3612 = vmatpush1.msra.mxu0 0.0
    %3613 = vmatprep.subr.mxu0 0.0
    %3614 = vmatpush1.msra.mxu0 0.0
    %3615 = vmatprep.subr.mxu0 0.0
    %3616 = vmatpush1.msra.mxu0 0.0
    %3617 = vmatprep.subr.mxu0 0.0
    %3618 = vmatpush1.msra.mxu0 0.0
    %3619 = vmatprep.subr.mxu0 0.0
    %3620 = vmatpush1.msra.mxu0 0.0
    %3621 = vmatprep.mubr.f32.mxu0 0.0
    %3622 = vmatmul.mubr.f32.gmra.mrb[0].mxu0 %v3485
    %v3623 = vpop.f32.mrb[0].mxu0
    %v3624 = vadd.f32 0.0, %v3623
    %v3625 = vpop.f32.mrb[0].mxu0
    %3626 = vdwg.mxu0
    %3627 = vmatprep.subr.mxu0 0.0
    %3628 = vmatpush1.msra.mxu0 %v2520
    %3629 = vmatprep.subr.mxu0 0.0
    %3630 = vmatpush1.msra.mxu0 %v2521
    %3631 = vmatprep.subr.mxu0 0.0
    %3632 = vmatpush1.msra.mxu0 %v2522
    %3633 = vmatprep.subr.mxu0 0.0
    %3634 = vmatpush1.msra.mxu0 %v2523
    %3635 = vmatprep.subr.mxu0 0.0
    %3636 = vmatpush1.msra.mxu0 0.0
    %3637 = vmatprep.subr.mxu0 0.0
    %3638 = vmatpush1.msra.mxu0 0.0
    %3639 = vmatprep.subr.mxu0 0.0
    %3640 = vmatpush1.msra.mxu0 0.0
    %3641 = vmatprep.subr.mxu0 0.0
    %3642 = vmatpush1.msra.mxu0 0.0
    %3643 = vmatprep.subr.mxu0 0.0
    %3644 = vmatpush1.msra.mxu0 0.0
    %3645 = vmatprep.subr.mxu0 0.0
    %3646 = vmatpush1.msra.mxu0 0.0
    %3647 = vmatprep.subr.mxu0 0.0
    %3648 = vmatpush1.msra.mxu0 0.0
    %3649 = vmatprep.subr.mxu0 0.0
    %3650 = vmatpush1.msra.mxu0 0.0
    %3651 = vmatprep.subr.mxu0 0.0
    %3652 = vmatpush1.msra.mxu0 0.0
    %3653 = vmatprep.subr.mxu0 0.0
    %3654 = vmatpush1.msra.mxu0 0.0
    %3655 = vmatprep.subr.mxu0 0.0
    %3656 = vmatpush1.msra.mxu0 0.0
    %3657 = vmatprep.subr.mxu0 0.0
    %3658 = vmatpush1.msra.mxu0 0.0
    %3659 = vmatprep.subr.mxu0 0.0
    %3660 = vmatpush1.msra.mxu0 0.0
    %3661 = vmatprep.subr.mxu0 0.0
    %3662 = vmatpush1.msra.mxu0 0.0
    %3663 = vmatprep.subr.mxu0 0.0
    %3664 = vmatpush1.msra.mxu0 0.0
    %3665 = vmatprep.subr.mxu0 0.0
    %3666 = vmatpush1.msra.mxu0 0.0
    %3667 = vmatprep.subr.mxu0 0.0
    %3668 = vmatpush1.msra.mxu0 0.0
    %3669 = vmatprep.subr.mxu0 0.0
    %3670 = vmatpush1.msra.mxu0 0.0
    %3671 = vmatprep.subr.mxu0 0.0
    %3672 = vmatpush1.msra.mxu0 0.0
    %3673 = vmatprep.subr.mxu0 0.0
    %3674 = vmatpush1.msra.mxu0 0.0
    %3675 = vmatprep.subr.mxu0 0.0
    %3676 = vmatpush1.msra.mxu0 0.0
    %3677 = vmatprep.subr.mxu0 0.0
    %3678 = vmatpush1.msra.mxu0 0.0
    %3679 = vmatprep.subr.mxu0 0.0
    %3680 = vmatpush1.msra.mxu0 0.0
    %3681 = vmatprep.subr.mxu0 0.0
    %3682 = vmatpush1.msra.mxu0 0.0
    %3683 = vmatprep.subr.mxu0 0.0
    %3684 = vmatpush1.msra.mxu0 0.0
    %3685 = vmatprep.subr.mxu0 0.0
    %3686 = vmatpush1.msra.mxu0 0.0
    %3687 = vmatprep.subr.mxu0 0.0
    %3688 = vmatpush1.msra.mxu0 0.0
    %3689 = vmatprep.subr.mxu0 0.0
    %3690 = vmatpush1.msra.mxu0 0.0
    %3691 = vmatprep.mubr.f32.mxu0 0.0
    %3692 = vmatmul.mubr.f32.gmra.mrb[0].mxu0 %v3485
    %v3693 = vpop.f32.mrb[0].mxu0
    %v3694 = vadd.f32 %v2673, %v3693
    %v3695 = vpop.f32.mrb[0].mxu0
    %3696 = vdwg.mxu0
    %v3697 = vadd.f32 %v3481, %v3554
    %v3698 = vxor.u32 %v3697, 2147483648
    %v3699 = vmul.f32 %v3698, 1.442695
    %v3700 = vpow.pop %v3699
    %v3701 = vadd.f32 %v3700, 1.0
    %v3702 = vrcp.pop %v3701
    %v3703 = vmul.f32 1.0, %v3702
    %v3704 = vadd.f32 %v3482, %v3624
    %v3705 = vxor.u32 %v3704, 2147483648
    %v3706 = vmul.f32 %v3705, 1.442695
    %v3707 = vpow.pop %v3706
    %v3708 = vadd.f32 %v3707, 1.0
    %v3709 = vrcp.pop %v3708
    %v3710 = vmul.f32 1.0, %v3709
    %v3711 = vmul.f32 %v3703, %v3694
    %v3712 = vadd.f32 %v3483, %v3711
    %v3713 = vtanh.pop %v3712
    %v3714 = vsub.f32 1.0, %v3710
    %v3715 = vmul.f32 %v3714, %v3713
    %v3716 = vmul.f32 %v3710, %v3479
    %v3717 = vadd.f32 %v3715, %v3716
    %3718 = vst.msk [vmem:[#allocation6 + $0x8] sm:$0x3] %vm566, %v3717
    %v3719 = vld [vmem:[#allocation2 + $0xa] sm:$0x3]
    %v3720 = vld [vmem:[#allocation3 + $0xa] sm:$0x3]
    %v3721 = vld [vmem:[#allocation4 + $0xa] sm:$0x3]
    %v3723 = vsel %vm128, %v3717, 0
    %3725 = vmatprep.subr.mxu0 0.0
    %3726 = vmatpush1.msra.mxu0 %v2510
    %3727 = vmatprep.subr.mxu0 0.0
    %3728 = vmatpush1.msra.mxu0 %v2511
    %3729 = vmatprep.subr.mxu0 0.0
    %3730 = vmatpush1.msra.mxu0 %v2512
    %3731 = vmatprep.subr.mxu0 0.0
    %3732 = vmatpush1.msra.mxu0 %v2513
    %3733 = vmatprep.subr.mxu0 0.0
    %3734 = vmatpush1.msra.mxu0 0.0
    %3735 = vmatprep.subr.mxu0 0.0
    %3736 = vmatpush1.msra.mxu0 0.0
    %3737 = vmatprep.subr.mxu0 0.0
    %3738 = vmatpush1.msra.mxu0 0.0
    %3739 = vmatprep.subr.mxu0 0.0
    %3740 = vmatpush1.msra.mxu0 0.0
    %3741 = vmatprep.subr.mxu0 0.0
    %3742 = vmatpush1.msra.mxu0 0.0
    %3743 = vmatprep.subr.mxu0 0.0
    %3744 = vmatpush1.msra.mxu0 0.0
    %3745 = vmatprep.subr.mxu0 0.0
    %3746 = vmatpush1.msra.mxu0 0.0
    %3747 = vmatprep.subr.mxu0 0.0
    %3748 = vmatpush1.msra.mxu0 0.0
    %3749 = vmatprep.subr.mxu0 0.0
    %3750 = vmatpush1.msra.mxu0 0.0
    %3751 = vmatprep.subr.mxu0 0.0
    %3752 = vmatpush1.msra.mxu0 0.0
    %3753 = vmatprep.subr.mxu0 0.0
    %3754 = vmatpush1.msra.mxu0 0.0
    %3755 = vmatprep.subr.mxu0 0.0
    %3756 = vmatpush1.msra.mxu0 0.0
    %3757 = vmatprep.subr.mxu0 0.0
    %3758 = vmatpush1.msra.mxu0 0.0
    %3759 = vmatprep.subr.mxu0 0.0
    %3760 = vmatpush1.msra.mxu0 0.0
    %3761 = vmatprep.subr.mxu0 0.0
    %3762 = vmatpush1.msra.mxu0 0.0
    %3763 = vmatprep.subr.mxu0 0.0
    %3764 = vmatpush1.msra.mxu0 0.0
    %3765 = vmatprep.subr.mxu0 0.0
    %3766 = vmatpush1.msra.mxu0 0.0
    %3767 = vmatprep.subr.mxu0 0.0
    %3768 = vmatpush1.msra.mxu0 0.0
    %3769 = vmatprep.subr.mxu0 0.0
    %3770 = vmatpush1.msra.mxu0 0.0
    %3771 = vmatprep.subr.mxu0 0.0
    %3772 = vmatpush1.msra.mxu0 0.0
    %3773 = vmatprep.subr.mxu0 0.0
    %3774 = vmatpush1.msra.mxu0 0.0
    %3775 = vmatprep.subr.mxu0 0.0
    %3776 = vmatpush1.msra.mxu0 0.0
    %3777 = vmatprep.subr.mxu0 0.0
    %3778 = vmatpush1.msra.mxu0 0.0
    %3779 = vmatprep.subr.mxu0 0.0
    %3780 = vmatpush1.msra.mxu0 0.0
    %3781 = vmatprep.subr.mxu0 0.0
    %3782 = vmatpush1.msra.mxu0 0.0
    %3783 = vmatprep.subr.mxu0 0.0
    %3784 = vmatpush1.msra.mxu0 0.0
    %3785 = vmatprep.subr.mxu0 0.0
    %3786 = vmatpush1.msra.mxu0 0.0
    %3787 = vmatprep.subr.mxu0 0.0
    %3788 = vmatpush1.msra.mxu0 0.0
    %3789 = vmatprep.mubr.f32.mxu0 0.0
    %3790 = vmatmul.mubr.f32.gmra.mrb[0].mxu0 %v3723
    %v3791 = vpop.f32.mrb[0].mxu0
    %v3792 = vadd.f32 0.0, %v3791
    %v3793 = vpop.f32.mrb[0].mxu0
    %3794 = vdwg.mxu0
    %3795 = vmatprep.subr.mxu0 0.0
    %3796 = vmatpush1.msra.mxu0 %v2515
    %3797 = vmatprep.subr.mxu0 0.0
    %3798 = vmatpush1.msra.mxu0 %v2516
    %3799 = vmatprep.subr.mxu0 0.0
    %3800 = vmatpush1.msra.mxu0 %v2517
    %3801 = vmatprep.subr.mxu0 0.0
    %3802 = vmatpush1.msra.mxu0 %v2518
    %3803 = vmatprep.subr.mxu0 0.0
    %3804 = vmatpush1.msra.mxu0 0.0
    %3805 = vmatprep.subr.mxu0 0.0
    %3806 = vmatpush1.msra.mxu0 0.0
    %3807 = vmatprep.subr.mxu0 0.0
    %3808 = vmatpush1.msra.mxu0 0.0
    %3809 = vmatprep.subr.mxu0 0.0
    %3810 = vmatpush1.msra.mxu0 0.0
    %3811 = vmatprep.subr.mxu0 0.0
    %3812 = vmatpush1.msra.mxu0 0.0
    %3813 = vmatprep.subr.mxu0 0.0
    %3814 = vmatpush1.msra.mxu0 0.0
    %3815 = vmatprep.subr.mxu0 0.0
    %3816 = vmatpush1.msra.mxu0 0.0
    %3817 = vmatprep.subr.mxu0 0.0
    %3818 = vmatpush1.msra.mxu0 0.0
    %3819 = vmatprep.subr.mxu0 0.0
    %3820 = vmatpush1.msra.mxu0 0.0
    %3821 = vmatprep.subr.mxu0 0.0
    %3822 = vmatpush1.msra.mxu0 0.0
    %3823 = vmatprep.subr.mxu0 0.0
    %3824 = vmatpush1.msra.mxu0 0.0
    %3825 = vmatprep.subr.mxu0 0.0
    %3826 = vmatpush1.msra.mxu0 0.0
    %3827 = vmatprep.subr.mxu0 0.0
    %3828 = vmatpush1.msra.mxu0 0.0
    %3829 = vmatprep.subr.mxu0 0.0
    %3830 = vmatpush1.msra.mxu0 0.0
    %3831 = vmatprep.subr.mxu0 0.0
    %3832 = vmatpush1.msra.mxu0 0.0
    %3833 = vmatprep.subr.mxu0 0.0
    %3834 = vmatpush1.msra.mxu0 0.0
    %3835 = vmatprep.subr.mxu0 0.0
    %3836 = vmatpush1.msra.mxu0 0.0
    %3837 = vmatprep.subr.mxu0 0.0
    %3838 = vmatpush1.msra.mxu0 0.0
    %3839 = vmatprep.subr.mxu0 0.0
    %3840 = vmatpush1.msra.mxu0 0.0
    %3841 = vmatprep.subr.mxu0 0.0
    %3842 = vmatpush1.msra.mxu0 0.0
    %3843 = vmatprep.subr.mxu0 0.0
    %3844 = vmatpush1.msra.mxu0 0.0
    %3845 = vmatprep.subr.mxu0 0.0
    %3846 = vmatpush1.msra.mxu0 0.0
    %3847 = vmatprep.subr.mxu0 0.0
    %3848 = vmatpush1.msra.mxu0 0.0
    %3849 = vmatprep.subr.mxu0 0.0
    %3850 = vmatpush1.msra.mxu0 0.0
    %3851 = vmatprep.subr.mxu0 0.0
    %3852 = vmatpush1.msra.mxu0 0.0
    %3853 = vmatprep.subr.mxu0 0.0
    %3854 = vmatpush1.msra.mxu0 0.0
    %3855 = vmatprep.subr.mxu0 0.0
    %3856 = vmatpush1.msra.mxu0 0.0
    %3857 = vmatprep.subr.mxu0 0.0
    %3858 = vmatpush1.msra.mxu0 0.0
    %3859 = vmatprep.mubr.f32.mxu0 0.0
    %3860 = vmatmul.mubr.f32.gmra.mrb[0].mxu0 %v3723
    %v3861 = vpop.f32.mrb[0].mxu0
    %v3862 = vadd.f32 0.0, %v3861
    %v3863 = vpop.f32.mrb[0].mxu0
    %3864 = vdwg.mxu0
    %3865 = vmatprep.subr.mxu0 0.0
    %3866 = vmatpush1.msra.mxu0 %v2520
    %3867 = vmatprep.subr.mxu0 0.0
    %3868 = vmatpush1.msra.mxu0 %v2521
    %3869 = vmatprep.subr.mxu0 0.0
    %3870 = vmatpush1.msra.mxu0 %v2522
    %3871 = vmatprep.subr.mxu0 0.0
    %3872 = vmatpush1.msra.mxu0 %v2523
    %3873 = vmatprep.subr.mxu0 0.0
    %3874 = vmatpush1.msra.mxu0 0.0
    %3875 = vmatprep.subr.mxu0 0.0
    %3876 = vmatpush1.msra.mxu0 0.0
    %3877 = vmatprep.subr.mxu0 0.0
    %3878 = vmatpush1.msra.mxu0 0.0
    %3879 = vmatprep.subr.mxu0 0.0
    %3880 = vmatpush1.msra.mxu0 0.0
    %3881 = vmatprep.subr.mxu0 0.0
    %3882 = vmatpush1.msra.mxu0 0.0
    %3883 = vmatprep.subr.mxu0 0.0
    %3884 = vmatpush1.msra.mxu0 0.0
    %3885 = vmatprep.subr.mxu0 0.0
    %3886 = vmatpush1.msra.mxu0 0.0
    %3887 = vmatprep.subr.mxu0 0.0
    %3888 = vmatpush1.msra.mxu0 0.0
    %3889 = vmatprep.subr.mxu0 0.0
    %3890 = vmatpush1.msra.mxu0 0.0
    %3891 = vmatprep.subr.mxu0 0.0
    %3892 = vmatpush1.msra.mxu0 0.0
    %3893 = vmatprep.subr.mxu0 0.0
    %3894 = vmatpush1.msra.mxu0 0.0
    %3895 = vmatprep.subr.mxu0 0.0
    %3896 = vmatpush1.msra.mxu0 0.0
    %3897 = vmatprep.subr.mxu0 0.0
    %3898 = vmatpush1.msra.mxu0 0.0
    %3899 = vmatprep.subr.mxu0 0.0
    %3900 = vmatpush1.msra.mxu0 0.0
    %3901 = vmatprep.subr.mxu0 0.0
    %3902 = vmatpush1.msra.mxu0 0.0
    %3903 = vmatprep.subr.mxu0 0.0
    %3904 = vmatpush1.msra.mxu0 0.0
    %3905 = vmatprep.subr.mxu0 0.0
    %3906 = vmatpush1.msra.mxu0 0.0
    %3907 = vmatprep.subr.mxu0 0.0
    %3908 = vmatpush1.msra.mxu0 0.0
    %3909 = vmatprep.subr.mxu0 0.0
    %3910 = vmatpush1.msra.mxu0 0.0
    %3911 = vmatprep.subr.mxu0 0.0
    %3912 = vmatpush1.msra.mxu0 0.0
    %3913 = vmatprep.subr.mxu0 0.0
    %3914 = vmatpush1.msra.mxu0 0.0
    %3915 = vmatprep.subr.mxu0 0.0
    %3916 = vmatpush1.msra.mxu0 0.0
    %3917 = vmatprep.subr.mxu0 0.0
    %3918 = vmatpush1.msra.mxu0 0.0
    %3919 = vmatprep.subr.mxu0 0.0
    %3920 = vmatpush1.msra.mxu0 0.0
    %3921 = vmatprep.subr.mxu0 0.0
    %3922 = vmatpush1.msra.mxu0 0.0
    %3923 = vmatprep.subr.mxu0 0.0
    %3924 = vmatpush1.msra.mxu0 0.0
    %3925 = vmatprep.subr.mxu0 0.0
    %3926 = vmatpush1.msra.mxu0 0.0
    %3927 = vmatprep.subr.mxu0 0.0
    %3928 = vmatpush1.msra.mxu0 0.0
    %3929 = vmatprep.mubr.f32.mxu0 0.0
    %3930 = vmatmul.mubr.f32.gmra.mrb[0].mxu0 %v3723
    %v3931 = vpop.f32.mrb[0].mxu0
    %v3932 = vadd.f32 %v2673, %v3931
    %v3933 = vpop.f32.mrb[0].mxu0
    %3934 = vdwg.mxu0
    %v3935 = vadd.f32 %v3719, %v3792
    %v3936 = vxor.u32 %v3935, 2147483648
    %v3937 = vmul.f32 %v3936, 1.442695
    %v3938 = vpow.pop %v3937
    %v3939 = vadd.f32 %v3938, 1.0
    %v3940 = vrcp.pop %v3939
    %v3941 = vmul.f32 1.0, %v3940
    %v3942 = vadd.f32 %v3720, %v3862
    %v3943 = vxor.u32 %v3942, 2147483648
    %v3944 = vmul.f32 %v3943, 1.442695
    %v3945 = vpow.pop %v3944
    %v3946 = vadd.f32 %v3945, 1.0
    %v3947 = vrcp.pop %v3946
    %v3948 = vmul.f32 1.0, %v3947
    %v3949 = vmul.f32 %v3941, %v3932
    %v3950 = vadd.f32 %v3721, %v3949
    %v3951 = vtanh.pop %v3950
    %v3952 = vsub.f32 1.0, %v3948
    %v3953 = vmul.f32 %v3952, %v3951
    %v3954 = vmul.f32 %v3948, %v3717
    %v3955 = vadd.f32 %v3953, %v3954
    %3956 = vst.msk [vmem:[#allocation6 + $0xa] sm:$0x3] %vm566, %v3955
    %v3957 = vld [vmem:[#allocation2 + $0xc] sm:$0x3]
    %v3958 = vld [vmem:[#allocation3 + $0xc] sm:$0x3]
    %v3959 = vld [vmem:[#allocation4 + $0xc] sm:$0x3]
    %v3961 = vsel %vm128, %v3955, 0
    %3963 = vmatprep.subr.mxu0 0.0
    %3964 = vmatpush1.msra.mxu0 %v2510
    %3965 = vmatprep.subr.mxu0 0.0
    %3966 = vmatpush1.msra.mxu0 %v2511
    %3967 = vmatprep.subr.mxu0 0.0
    %3968 = vmatpush1.msra.mxu0 %v2512
    %3969 = vmatprep.subr.mxu0 0.0
    %3970 = vmatpush1.msra.mxu0 %v2513
    %3971 = vmatprep.subr.mxu0 0.0
    %3972 = vmatpush1.msra.mxu0 0.0
    %3973 = vmatprep.subr.mxu0 0.0
    %3974 = vmatpush1.msra.mxu0 0.0
    %3975 = vmatprep.subr.mxu0 0.0
    %3976 = vmatpush1.msra.mxu0 0.0
    %3977 = vmatprep.subr.mxu0 0.0
    %3978 = vmatpush1.msra.mxu0 0.0
    %3979 = vmatprep.subr.mxu0 0.0
    %3980 = vmatpush1.msra.mxu0 0.0
    %3981 = vmatprep.subr.mxu0 0.0
    %3982 = vmatpush1.msra.mxu0 0.0
    %3983 = vmatprep.subr.mxu0 0.0
    %3984 = vmatpush1.msra.mxu0 0.0
    %3985 = vmatprep.subr.mxu0 0.0
    %3986 = vmatpush1.msra.mxu0 0.0
    %3987 = vmatprep.subr.mxu0 0.0
    %3988 = vmatpush1.msra.mxu0 0.0
    %3989 = vmatprep.subr.mxu0 0.0
    %3990 = vmatpush1.msra.mxu0 0.0
    %3991 = vmatprep.subr.mxu0 0.0
    %3992 = vmatpush1.msra.mxu0 0.0
    %3993 = vmatprep.subr.mxu0 0.0
    %3994 = vmatpush1.msra.mxu0 0.0
    %3995 = vmatprep.subr.mxu0 0.0
    %3996 = vmatpush1.msra.mxu0 0.0
    %3997 = vmatprep.subr.mxu0 0.0
    %3998 = vmatpush1.msra.mxu0 0.0
    %3999 = vmatprep.subr.mxu0 0.0
    %4000 = vmatpush1.msra.mxu0 0.0
    %4001 = vmatprep.subr.mxu0 0.0
    %4002 = vmatpush1.msra.mxu0 0.0
    %4003 = vmatprep.subr.mxu0 0.0
    %4004 = vmatpush1.msra.mxu0 0.0
    %4005 = vmatprep.subr.mxu0 0.0
    %4006 = vmatpush1.msra.mxu0 0.0
    %4007 = vmatprep.subr.mxu0 0.0
    %4008 = vmatpush1.msra.mxu0 0.0
    %4009 = vmatprep.subr.mxu0 0.0
    %4010 = vmatpush1.msra.mxu0 0.0
    %4011 = vmatprep.subr.mxu0 0.0
    %4012 = vmatpush1.msra.mxu0 0.0
    %4013 = vmatprep.subr.mxu0 0.0
    %4014 = vmatpush1.msra.mxu0 0.0
    %4015 = vmatprep.subr.mxu0 0.0
    %4016 = vmatpush1.msra.mxu0 0.0
    %4017 = vmatprep.subr.mxu0 0.0
    %4018 = vmatpush1.msra.mxu0 0.0
    %4019 = vmatprep.subr.mxu0 0.0
    %4020 = vmatpush1.msra.mxu0 0.0
    %4021 = vmatprep.subr.mxu0 0.0
    %4022 = vmatpush1.msra.mxu0 0.0
    %4023 = vmatprep.subr.mxu0 0.0
    %4024 = vmatpush1.msra.mxu0 0.0
    %4025 = vmatprep.subr.mxu0 0.0
    %4026 = vmatpush1.msra.mxu0 0.0
    %4027 = vmatprep.mubr.f32.mxu0 0.0
    %4028 = vmatmul.mubr.f32.gmra.mrb[0].mxu0 %v3961
    %v4029 = vpop.f32.mrb[0].mxu0
    %v4030 = vadd.f32 0.0, %v4029
    %v4031 = vpop.f32.mrb[0].mxu0
    %4032 = vdwg.mxu0
    %4033 = vmatprep.subr.mxu0 0.0
    %4034 = vmatpush1.msra.mxu0 %v2515
    %4035 = vmatprep.subr.mxu0 0.0
    %4036 = vmatpush1.msra.mxu0 %v2516
    %4037 = vmatprep.subr.mxu0 0.0
    %4038 = vmatpush1.msra.mxu0 %v2517
    %4039 = vmatprep.subr.mxu0 0.0
    %4040 = vmatpush1.msra.mxu0 %v2518
    %4041 = vmatprep.subr.mxu0 0.0
    %4042 = vmatpush1.msra.mxu0 0.0
    %4043 = vmatprep.subr.mxu0 0.0
    %4044 = vmatpush1.msra.mxu0 0.0
    %4045 = vmatprep.subr.mxu0 0.0
    %4046 = vmatpush1.msra.mxu0 0.0
    %4047 = vmatprep.subr.mxu0 0.0
    %4048 = vmatpush1.msra.mxu0 0.0
    %4049 = vmatprep.subr.mxu0 0.0
    %4050 = vmatpush1.msra.mxu0 0.0
    %4051 = vmatprep.subr.mxu0 0.0
    %4052 = vmatpush1.msra.mxu0 0.0
    %4053 = vmatprep.subr.mxu0 0.0
    %4054 = vmatpush1.msra.mxu0 0.0
    %4055 = vmatprep.subr.mxu0 0.0
    %4056 = vmatpush1.msra.mxu0 0.0
    %4057 = vmatprep.subr.mxu0 0.0
    %4058 = vmatpush1.msra.mxu0 0.0
    %4059 = vmatprep.subr.mxu0 0.0
    %4060 = vmatpush1.msra.mxu0 0.0
    %4061 = vmatprep.subr.mxu0 0.0
    %4062 = vmatpush1.msra.mxu0 0.0
    %4063 = vmatprep.subr.mxu0 0.0
    %4064 = vmatpush1.msra.mxu0 0.0
    %4065 = vmatprep.subr.mxu0 0.0
    %4066 = vmatpush1.msra.mxu0 0.0
    %4067 = vmatprep.subr.mxu0 0.0
    %4068 = vmatpush1.msra.mxu0 0.0
    %4069 = vmatprep.subr.mxu0 0.0
    %4070 = vmatpush1.msra.mxu0 0.0
    %4071 = vmatprep.subr.mxu0 0.0
    %4072 = vmatpush1.msra.mxu0 0.0
    %4073 = vmatprep.subr.mxu0 0.0
    %4074 = vmatpush1.msra.mxu0 0.0
    %4075 = vmatprep.subr.mxu0 0.0
    %4076 = vmatpush1.msra.mxu0 0.0
    %4077 = vmatprep.subr.mxu0 0.0
    %4078 = vmatpush1.msra.mxu0 0.0
    %4079 = vmatprep.subr.mxu0 0.0
    %4080 = vmatpush1.msra.mxu0 0.0
    %4081 = vmatprep.subr.mxu0 0.0
    %4082 = vmatpush1.msra.mxu0 0.0
    %4083 = vmatprep.subr.mxu0 0.0
    %4084 = vmatpush1.msra.mxu0 0.0
    %4085 = vmatprep.subr.mxu0 0.0
    %4086 = vmatpush1.msra.mxu0 0.0
    %4087 = vmatprep.subr.mxu0 0.0
    %4088 = vmatpush1.msra.mxu0 0.0
    %4089 = vmatprep.subr.mxu0 0.0
    %4090 = vmatpush1.msra.mxu0 0.0
    %4091 = vmatprep.subr.mxu0 0.0
    %4092 = vmatpush1.msra.mxu0 0.0
    %4093 = vmatprep.subr.mxu0 0.0
    %4094 = vmatpush1.msra.mxu0 0.0
    %4095 = vmatprep.subr.mxu0 0.0
    %4096 = vmatpush1.msra.mxu0 0.0
    %4097 = vmatprep.mubr.f32.mxu0 0.0
    %4098 = vmatmul.mubr.f32.gmra.mrb[0].mxu0 %v3961
    %v4099 = vpop.f32.mrb[0].mxu0
    %v4100 = vadd.f32 0.0, %v4099
    %v4101 = vpop.f32.mrb[0].mxu0
    %4102 = vdwg.mxu0
    %4103 = vmatprep.subr.mxu0 0.0
    %4104 = vmatpush1.msra.mxu0 %v2520
    %4105 = vmatprep.subr.mxu0 0.0
    %4106 = vmatpush1.msra.mxu0 %v2521
    %4107 = vmatprep.subr.mxu0 0.0
    %4108 = vmatpush1.msra.mxu0 %v2522
    %4109 = vmatprep.subr.mxu0 0.0
    %4110 = vmatpush1.msra.mxu0 %v2523
    %4111 = vmatprep.subr.mxu0 0.0
    %4112 = vmatpush1.msra.mxu0 0.0
    %4113 = vmatprep.subr.mxu0 0.0
    %4114 = vmatpush1.msra.mxu0 0.0
    %4115 = vmatprep.subr.mxu0 0.0
    %4116 = vmatpush1.msra.mxu0 0.0
    %4117 = vmatprep.subr.mxu0 0.0
    %4118 = vmatpush1.msra.mxu0 0.0
    %4119 = vmatprep.subr.mxu0 0.0
    %4120 = vmatpush1.msra.mxu0 0.0
    %4121 = vmatprep.subr.mxu0 0.0
    %4122 = vmatpush1.msra.mxu0 0.0
    %4123 = vmatprep.subr.mxu0 0.0
    %4124 = vmatpush1.msra.mxu0 0.0
    %4125 = vmatprep.subr.mxu0 0.0
    %4126 = vmatpush1.msra.mxu0 0.0
    %4127 = vmatprep.subr.mxu0 0.0
    %4128 = vmatpush1.msra.mxu0 0.0
    %4129 = vmatprep.subr.mxu0 0.0
    %4130 = vmatpush1.msra.mxu0 0.0
    %4131 = vmatprep.subr.mxu0 0.0
    %4132 = vmatpush1.msra.mxu0 0.0
    %4133 = vmatprep.subr.mxu0 0.0
    %4134 = vmatpush1.msra.mxu0 0.0
    %4135 = vmatprep.subr.mxu0 0.0
    %4136 = vmatpush1.msra.mxu0 0.0
    %4137 = vmatprep.subr.mxu0 0.0
    %4138 = vmatpush1.msra.mxu0 0.0
    %4139 = vmatprep.subr.mxu0 0.0
    %4140 = vmatpush1.msra.mxu0 0.0
    %4141 = vmatprep.subr.mxu0 0.0
    %4142 = vmatpush1.msra.mxu0 0.0
    %4143 = vmatprep.subr.mxu0 0.0
    %4144 = vmatpush1.msra.mxu0 0.0
    %4145 = vmatprep.subr.mxu0 0.0
    %4146 = vmatpush1.msra.mxu0 0.0
    %4147 = vmatprep.subr.mxu0 0.0
    %4148 = vmatpush1.msra.mxu0 0.0
    %4149 = vmatprep.subr.mxu0 0.0
    %4150 = vmatpush1.msra.mxu0 0.0
    %4151 = vmatprep.subr.mxu0 0.0
    %4152 = vmatpush1.msra.mxu0 0.0
    %4153 = vmatprep.subr.mxu0 0.0
    %4154 = vmatpush1.msra.mxu0 0.0
    %4155 = vmatprep.subr.mxu0 0.0
    %4156 = vmatpush1.msra.mxu0 0.0
    %4157 = vmatprep.subr.mxu0 0.0
    %4158 = vmatpush1.msra.mxu0 0.0
    %4159 = vmatprep.subr.mxu0 0.0
    %4160 = vmatpush1.msra.mxu0 0.0
    %4161 = vmatprep.subr.mxu0 0.0
    %4162 = vmatpush1.msra.mxu0 0.0
    %4163 = vmatprep.subr.mxu0 0.0
    %4164 = vmatpush1.msra.mxu0 0.0
    %4165 = vmatprep.subr.mxu0 0.0
    %4166 = vmatpush1.msra.mxu0 0.0
    %4167 = vmatprep.mubr.f32.mxu0 0.0
    %4168 = vmatmul.mubr.f32.gmra.mrb[0].mxu0 %v3961
    %v4169 = vpop.f32.mrb[0].mxu0
    %v4170 = vadd.f32 %v2673, %v4169
    %v4171 = vpop.f32.mrb[0].mxu0
    %4172 = vdwg.mxu0
    %v4173 = vadd.f32 %v3957, %v4030
    %v4174 = vxor.u32 %v4173, 2147483648
    %v4175 = vmul.f32 %v4174, 1.442695
    %v4176 = vpow.pop %v4175
    %v4177 = vadd.f32 %v4176, 1.0
    %v4178 = vrcp.pop %v4177
    %v4179 = vmul.f32 1.0, %v4178
    %v4180 = vadd.f32 %v3958, %v4100
    %v4181 = vxor.u32 %v4180, 2147483648
    %v4182 = vmul.f32 %v4181, 1.442695
    %v4183 = vpow.pop %v4182
    %v4184 = vadd.f32 %v4183, 1.0
    %v4185 = vrcp.pop %v4184
    %v4186 = vmul.f32 1.0, %v4185
    %v4187 = vmul.f32 %v4179, %v4170
    %v4188 = vadd.f32 %v3959, %v4187
    %v4189 = vtanh.pop %v4188
    %v4190 = vsub.f32 1.0, %v4186
    %v4191 = vmul.f32 %v4190, %v4189
    %v4192 = vmul.f32 %v4186, %v3955
    %v4193 = vadd.f32 %v4191, %v4192
    %4194 = vst.msk [vmem:[#allocation6 + $0xc] sm:$0x3] %vm566, %v4193
    %v4195 = vld [vmem:[#allocation2 + $0xe] sm:$0x3]
    %v4196 = vld [vmem:[#allocation3 + $0xe] sm:$0x3]
    %v4197 = vld [vmem:[#allocation4 + $0xe] sm:$0x3]
    %v4199 = vsel %vm128, %v4193, 0
    %4201 = vmatprep.subr.mxu0 0.0
    %4202 = vmatpush1.msra.mxu0 %v2510
    %4203 = vmatprep.subr.mxu0 0.0
    %4204 = vmatpush1.msra.mxu0 %v2511
    %4205 = vmatprep.subr.mxu0 0.0
    %4206 = vmatpush1.msra.mxu0 %v2512
    %4207 = vmatprep.subr.mxu0 0.0
    %4208 = vmatpush1.msra.mxu0 %v2513
    %4209 = vmatprep.subr.mxu0 0.0
    %4210 = vmatpush1.msra.mxu0 0.0
    %4211 = vmatprep.subr.mxu0 0.0
    %4212 = vmatpush1.msra.mxu0 0.0
    %4213 = vmatprep.subr.mxu0 0.0
    %4214 = vmatpush1.msra.mxu0 0.0
    %4215 = vmatprep.subr.mxu0 0.0
    %4216 = vmatpush1.msra.mxu0 0.0
    %4217 = vmatprep.subr.mxu0 0.0
    %4218 = vmatpush1.msra.mxu0 0.0
    %4219 = vmatprep.subr.mxu0 0.0
    %4220 = vmatpush1.msra.mxu0 0.0
    %4221 = vmatprep.subr.mxu0 0.0
    %4222 = vmatpush1.msra.mxu0 0.0
    %4223 = vmatprep.subr.mxu0 0.0
    %4224 = vmatpush1.msra.mxu0 0.0
    %4225 = vmatprep.subr.mxu0 0.0
    %4226 = vmatpush1.msra.mxu0 0.0
    %4227 = vmatprep.subr.mxu0 0.0
    %4228 = vmatpush1.msra.mxu0 0.0
    %4229 = vmatprep.subr.mxu0 0.0
    %4230 = vmatpush1.msra.mxu0 0.0
    %4231 = vmatprep.subr.mxu0 0.0
    %4232 = vmatpush1.msra.mxu0 0.0
    %4233 = vmatprep.subr.mxu0 0.0
    %4234 = vmatpush1.msra.mxu0 0.0
    %4235 = vmatprep.subr.mxu0 0.0
    %4236 = vmatpush1.msra.mxu0 0.0
    %4237 = vmatprep.subr.mxu0 0.0
    %4238 = vmatpush1.msra.mxu0 0.0
    %4239 = vmatprep.subr.mxu0 0.0
    %4240 = vmatpush1.msra.mxu0 0.0
    %4241 = vmatprep.subr.mxu0 0.0
    %4242 = vmatpush1.msra.mxu0 0.0
    %4243 = vmatprep.subr.mxu0 0.0
    %4244 = vmatpush1.msra.mxu0 0.0
    %4245 = vmatprep.subr.mxu0 0.0
    %4246 = vmatpush1.msra.mxu0 0.0
    %4247 = vmatprep.subr.mxu0 0.0
    %4248 = vmatpush1.msra.mxu0 0.0
    %4249 = vmatprep.subr.mxu0 0.0
    %4250 = vmatpush1.msra.mxu0 0.0
    %4251 = vmatprep.subr.mxu0 0.0
    %4252 = vmatpush1.msra.mxu0 0.0
    %4253 = vmatprep.subr.mxu0 0.0
    %4254 = vmatpush1.msra.mxu0 0.0
    %4255 = vmatprep.subr.mxu0 0.0
    %4256 = vmatpush1.msra.mxu0 0.0
    %4257 = vmatprep.subr.mxu0 0.0
    %4258 = vmatpush1.msra.mxu0 0.0
    %4259 = vmatprep.subr.mxu0 0.0
    %4260 = vmatpush1.msra.mxu0 0.0
    %4261 = vmatprep.subr.mxu0 0.0
    %4262 = vmatpush1.msra.mxu0 0.0
    %4263 = vmatprep.subr.mxu0 0.0
    %4264 = vmatpush1.msra.mxu0 0.0
    %4265 = vmatprep.mubr.f32.mxu0 0.0
    %4266 = vmatmul.mubr.f32.gmra.mrb[0].mxu0 %v4199
    %v4267 = vpop.f32.mrb[0].mxu0
    %v4268 = vadd.f32 0.0, %v4267
    %v4269 = vpop.f32.mrb[0].mxu0
    %4270 = vdwg.mxu0
    %4271 = vmatprep.subr.mxu0 0.0
    %4272 = vmatpush1.msra.mxu0 %v2515
    %4273 = vmatprep.subr.mxu0 0.0
    %4274 = vmatpush1.msra.mxu0 %v2516
    %4275 = vmatprep.subr.mxu0 0.0
    %4276 = vmatpush1.msra.mxu0 %v2517
    %4277 = vmatprep.subr.mxu0 0.0
    %4278 = vmatpush1.msra.mxu0 %v2518
    %4279 = vmatprep.subr.mxu0 0.0
    %4280 = vmatpush1.msra.mxu0 0.0
    %4281 = vmatprep.subr.mxu0 0.0
    %4282 = vmatpush1.msra.mxu0 0.0
    %4283 = vmatprep.subr.mxu0 0.0
    %4284 = vmatpush1.msra.mxu0 0.0
    %4285 = vmatprep.subr.mxu0 0.0
    %4286 = vmatpush1.msra.mxu0 0.0
    %4287 = vmatprep.subr.mxu0 0.0
    %4288 = vmatpush1.msra.mxu0 0.0
    %4289 = vmatprep.subr.mxu0 0.0
    %4290 = vmatpush1.msra.mxu0 0.0
    %4291 = vmatprep.subr.mxu0 0.0
    %4292 = vmatpush1.msra.mxu0 0.0
    %4293 = vmatprep.subr.mxu0 0.0
    %4294 = vmatpush1.msra.mxu0 0.0
    %4295 = vmatprep.subr.mxu0 0.0
    %4296 = vmatpush1.msra.mxu0 0.0
    %4297 = vmatprep.subr.mxu0 0.0
    %4298 = vmatpush1.msra.mxu0 0.0
    %4299 = vmatprep.subr.mxu0 0.0
    %4300 = vmatpush1.msra.mxu0 0.0
    %4301 = vmatprep.subr.mxu0 0.0
    %4302 = vmatpush1.msra.mxu0 0.0
    %4303 = vmatprep.subr.mxu0 0.0
    %4304 = vmatpush1.msra.mxu0 0.0
    %4305 = vmatprep.subr.mxu0 0.0
    %4306 = vmatpush1.msra.mxu0 0.0
    %4307 = vmatprep.subr.mxu0 0.0
    %4308 = vmatpush1.msra.mxu0 0.0
    %4309 = vmatprep.subr.mxu0 0.0
    %4310 = vmatpush1.msra.mxu0 0.0
    %4311 = vmatprep.subr.mxu0 0.0
    %4312 = vmatpush1.msra.mxu0 0.0
    %4313 = vmatprep.subr.mxu0 0.0
    %4314 = vmatpush1.msra.mxu0 0.0
    %4315 = vmatprep.subr.mxu0 0.0
    %4316 = vmatpush1.msra.mxu0 0.0
    %4317 = vmatprep.subr.mxu0 0.0
    %4318 = vmatpush1.msra.mxu0 0.0
    %4319 = vmatprep.subr.mxu0 0.0
    %4320 = vmatpush1.msra.mxu0 0.0
    %4321 = vmatprep.subr.mxu0 0.0
    %4322 = vmatpush1.msra.mxu0 0.0
    %4323 = vmatprep.subr.mxu0 0.0
    %4324 = vmatpush1.msra.mxu0 0.0
    %4325 = vmatprep.subr.mxu0 0.0
    %4326 = vmatpush1.msra.mxu0 0.0
    %4327 = vmatprep.subr.mxu0 0.0
    %4328 = vmatpush1.msra.mxu0 0.0
    %4329 = vmatprep.subr.mxu0 0.0
    %4330 = vmatpush1.msra.mxu0 0.0
    %4331 = vmatprep.subr.mxu0 0.0
    %4332 = vmatpush1.msra.mxu0 0.0
    %4333 = vmatprep.subr.mxu0 0.0
    %4334 = vmatpush1.msra.mxu0 0.0
    %4335 = vmatprep.mubr.f32.mxu0 0.0
    %4336 = vmatmul.mubr.f32.gmra.mrb[0].mxu0 %v4199
    %v4337 = vpop.f32.mrb[0].mxu0
    %v4338 = vadd.f32 0.0, %v4337
    %v4339 = vpop.f32.mrb[0].mxu0
    %4340 = vdwg.mxu0
    %4341 = vmatprep.subr.mxu0 0.0
    %4342 = vmatpush1.msra.mxu0 %v2520
    %4343 = vmatprep.subr.mxu0 0.0
    %4344 = vmatpush1.msra.mxu0 %v2521
    %4345 = vmatprep.subr.mxu0 0.0
    %4346 = vmatpush1.msra.mxu0 %v2522
    %4347 = vmatprep.subr.mxu0 0.0
    %4348 = vmatpush1.msra.mxu0 %v2523
    %4349 = vmatprep.subr.mxu0 0.0
    %4350 = vmatpush1.msra.mxu0 0.0
    %4351 = vmatprep.subr.mxu0 0.0
    %4352 = vmatpush1.msra.mxu0 0.0
    %4353 = vmatprep.subr.mxu0 0.0
    %4354 = vmatpush1.msra.mxu0 0.0
    %4355 = vmatprep.subr.mxu0 0.0
    %4356 = vmatpush1.msra.mxu0 0.0
    %4357 = vmatprep.subr.mxu0 0.0
    %4358 = vmatpush1.msra.mxu0 0.0
    %4359 = vmatprep.subr.mxu0 0.0
    %4360 = vmatpush1.msra.mxu0 0.0
    %4361 = vmatprep.subr.mxu0 0.0
    %4362 = vmatpush1.msra.mxu0 0.0
    %4363 = vmatprep.subr.mxu0 0.0
    %4364 = vmatpush1.msra.mxu0 0.0
    %4365 = vmatprep.subr.mxu0 0.0
    %4366 = vmatpush1.msra.mxu0 0.0
    %4367 = vmatprep.subr.mxu0 0.0
    %4368 = vmatpush1.msra.mxu0 0.0
    %4369 = vmatprep.subr.mxu0 0.0
    %4370 = vmatpush1.msra.mxu0 0.0
    %4371 = vmatprep.subr.mxu0 0.0
    %4372 = vmatpush1.msra.mxu0 0.0
    %4373 = vmatprep.subr.mxu0 0.0
    %4374 = vmatpush1.msra.mxu0 0.0
    %4375 = vmatprep.subr.mxu0 0.0
    %4376 = vmatpush1.msra.mxu0 0.0
    %4377 = vmatprep.subr.mxu0 0.0
    %4378 = vmatpush1.msra.mxu0 0.0
    %4379 = vmatprep.subr.mxu0 0.0
    %4380 = vmatpush1.msra.mxu0 0.0
    %4381 = vmatprep.subr.mxu0 0.0
    %4382 = vmatpush1.msra.mxu0 0.0
    %4383 = vmatprep.subr.mxu0 0.0
    %4384 = vmatpush1.msra.mxu0 0.0
    %4385 = vmatprep.subr.mxu0 0.0
    %4386 = vmatpush1.msra.mxu0 0.0
    %4387 = vmatprep.subr.mxu0 0.0
    %4388 = vmatpush1.msra.mxu0 0.0
    %4389 = vmatprep.subr.mxu0 0.0
    %4390 = vmatpush1.msra.mxu0 0.0
    %4391 = vmatprep.subr.mxu0 0.0
    %4392 = vmatpush1.msra.mxu0 0.0
    %4393 = vmatprep.subr.mxu0 0.0
    %4394 = vmatpush1.msra.mxu0 0.0
    %4395 = vmatprep.subr.mxu0 0.0
    %4396 = vmatpush1.msra.mxu0 0.0
    %4397 = vmatprep.subr.mxu0 0.0
    %4398 = vmatpush1.msra.mxu0 0.0
    %4399 = vmatprep.subr.mxu0 0.0
    %4400 = vmatpush1.msra.mxu0 0.0
    %4401 = vmatprep.subr.mxu0 0.0
    %4402 = vmatpush1.msra.mxu0 0.0
    %4403 = vmatprep.subr.mxu0 0.0
    %4404 = vmatpush1.msra.mxu0 0.0
    %4405 = vmatprep.mubr.f32.mxu0 0.0
    %4406 = vmatmul.mubr.f32.gmra.mrb[0].mxu0 %v4199
    %v4407 = vpop.f32.mrb[0].mxu0
    %v4408 = vadd.f32 %v2673, %v4407
    %v4409 = vpop.f32.mrb[0].mxu0
    %4410 = vdwg.mxu0
    %v4411 = vadd.f32 %v4195, %v4268
    %v4412 = vxor.u32 %v4411, 2147483648
    %v4413 = vmul.f32 %v4412, 1.442695
    %v4414 = vpow.pop %v4413
    %v4415 = vadd.f32 %v4414, 1.0
    %v4416 = vrcp.pop %v4415
    %v4417 = vmul.f32 1.0, %v4416
    %v4418 = vadd.f32 %v4196, %v4338
    %v4419 = vxor.u32 %v4418, 2147483648
    %v4420 = vmul.f32 %v4419, 1.442695
    %v4421 = vpow.pop %v4420
    %v4422 = vadd.f32 %v4421, 1.0
    %v4423 = vrcp.pop %v4422
    %v4424 = vmul.f32 1.0, %v4423
    %v4425 = vmul.f32 %v4417, %v4408
    %v4426 = vadd.f32 %v4197, %v4425
    %v4427 = vtanh.pop %v4426
    %v4428 = vsub.f32 1.0, %v4424
    %v4429 = vmul.f32 %v4428, %v4427
    %v4430 = vmul.f32 %v4424, %v4193
    %v4431 = vadd.f32 %v4429, %v4430
    %4432 = vst.msk [vmem:[#allocation6 + $0xe] sm:$0x3] %vm566, %v4431
    %4433 = vst.msk [vmem:[#allocation7] sm:$0x3] %vm566, %v2232
    %s4434 = scalar_lea.vmem [#allocation7], 2
    %4435 = vst.msk [vmem:[%s4434] sm:$0x3] %vm566, %v4431
    %v4436 = vld [vmem:[#allocation6] sm:$0xff]
    %v4437 = vld [vmem:[#allocation6 + $0x8] sm:$0xff]
    %v4438 = vld [vmem:[%s7] sm:$0xff]
    %v4439 = vld [vmem:[%s7 + $0x8] sm:$0xff]
    %v4440 = vld [vmem:[%s7 + $0x10] sm:$0xff]
    %v4441 = vld [vmem:[%s7 + $0x18] sm:$0xff]
    %v4442 = vld [vmem:[%s8] sm:$0x1]
    %v4444 = vlaneseq
    %v4445 = vshrl.u32 %v4444, 7
    %v4446 = vsub.s32 0, %v4445
    %v4447 = vrot.slane %v4442, %v4446
    %v4450 = vsel %vm128, %v4436, 0
    %v4453 = vsel %vm128, %v4437, 0
    %4455 = vmatprep.subr.mxu0 0.0
    %4456 = vmatpush1.msra.mxu0 %v4438
    %4457 = vmatprep.subr.mxu0 0.0
    %4458 = vmatpush1.msra.mxu0 %v4439
    %4459 = vmatprep.subr.mxu0 0.0
    %4460 = vmatpush1.msra.mxu0 %v4440
    %4461 = vmatprep.subr.mxu0 0.0
    %4462 = vmatpush1.msra.mxu0 %v4441
    %4463 = vmatprep.subr.mxu0 0.0
    %4464 = vmatpush1.msra.mxu0 0.0
    %4465 = vmatprep.subr.mxu0 0.0
    %4466 = vmatpush1.msra.mxu0 0.0
    %4467 = vmatprep.subr.mxu0 0.0
    %4468 = vmatpush1.msra.mxu0 0.0
    %4469 = vmatprep.subr.mxu0 0.0
    %4470 = vmatpush1.msra.mxu0 0.0
    %4471 = vmatprep.subr.mxu0 0.0
    %4472 = vmatpush1.msra.mxu0 0.0
    %4473 = vmatprep.subr.mxu0 0.0
    %4474 = vmatpush1.msra.mxu0 0.0
    %4475 = vmatprep.subr.mxu0 0.0
    %4476 = vmatpush1.msra.mxu0 0.0
    %4477 = vmatprep.subr.mxu0 0.0
    %4478 = vmatpush1.msra.mxu0 0.0
    %4479 = vmatprep.subr.mxu0 0.0
    %4480 = vmatpush1.msra.mxu0 0.0
    %4481 = vmatprep.subr.mxu0 0.0
    %4482 = vmatpush1.msra.mxu0 0.0
    %4483 = vmatprep.subr.mxu0 0.0
    %4484 = vmatpush1.msra.mxu0 0.0
    %4485 = vmatprep.subr.mxu0 0.0
    %4486 = vmatpush1.msra.mxu0 0.0
    %4487 = vmatprep.subr.mxu0 0.0
    %4488 = vmatpush1.msra.mxu0 0.0
    %4489 = vmatprep.subr.mxu0 0.0
    %4490 = vmatpush1.msra.mxu0 0.0
    %4491 = vmatprep.subr.mxu0 0.0
    %4492 = vmatpush1.msra.mxu0 0.0
    %4493 = vmatprep.subr.mxu0 0.0
    %4494 = vmatpush1.msra.mxu0 0.0
    %4495 = vmatprep.subr.mxu0 0.0
    %4496 = vmatpush1.msra.mxu0 0.0
    %4497 = vmatprep.subr.mxu0 0.0
    %4498 = vmatpush1.msra.mxu0 0.0
    %4499 = vmatprep.subr.mxu0 0.0
    %4500 = vmatpush1.msra.mxu0 0.0
    %4501 = vmatprep.subr.mxu0 0.0
    %4502 = vmatpush1.msra.mxu0 0.0
    %4503 = vmatprep.subr.mxu0 0.0
    %4504 = vmatpush1.msra.mxu0 0.0
    %4505 = vmatprep.subr.mxu0 0.0
    %4506 = vmatpush1.msra.mxu0 0.0
    %4507 = vmatprep.subr.mxu0 0.0
    %4508 = vmatpush1.msra.mxu0 0.0
    %4509 = vmatprep.subr.mxu0 0.0
    %4510 = vmatpush1.msra.mxu0 0.0
    %4511 = vmatprep.subr.mxu0 0.0
    %4512 = vmatpush1.msra.mxu0 0.0
    %4513 = vmatprep.subr.mxu0 0.0
    %4514 = vmatpush1.msra.mxu0 0.0
    %4515 = vmatprep.subr.mxu0 0.0
    %4516 = vmatpush1.msra.mxu0 0.0
    %4517 = vmatprep.subr.mxu0 0.0
    %4518 = vmatpush1.msra.mxu0 0.0
    %4519 = vmatprep.mubr.f32.mxu0 0.0
    %4520 = vmatmul.mubr.f32.gmra.mrb[0].mxu0 %v4450
    %v4521 = vpop.f32.mrb[0].mxu0
    %v4522 = vadd.f32 %v4447, %v4521
    %v4523 = vpop.f32.mrb[0].mxu0
    %4524 = vmatprep.mubr.f32.mxu0 0.0
    %4525 = vmatmul.mubr.f32.gmra.mrb[0].mxu0 %v4453
    %v4526 = vpop.f32.mrb[0].mxu0
    %v4527 = vadd.f32 %v4447, %v4526
    %v4528 = vpop.f32.mrb[0].mxu0
    %4529 = vdwg.mxu0
    %4530 = vst [vmem:[%s9] sm:$0xff] %v4522
    %4531 = vst [vmem:[%s9 + $0x8] sm:$0xff] %v4527
    // Predicated region
    $region38: #{gru_model_forward.1} parent=1 // pred_check
      _
    $region39: #{gru_model_forward.1} parent=1 // pred_check_branch
      %4533 = sbr.rel (0) target = $region41
    $region40: #{gru_model_forward.1} parent=1 // pred_region
      _
    $region41: #{gru_model_forward.1} parent=1 // pred_fallthru
      _
    // Predicated region
    $region42: #{gru_model_forward.1} parent=1 // pred_check
      _
    $region43: #{gru_model_forward.1} parent=1 // pred_check_branch
      %4535 = sbr.rel (0) target = $region45
    $region44: #{gru_model_forward.1} parent=1 // pred_region
      %s4537 = ssub.s32 64, 64
      %4538 = vsyncadd [#allocation8], %s4537
      %s4539 = sshll.u32 [#allocation7], 4
      %s4540 = int_to_ptr.vmem [resolvable:$true] %s4539
      %4545 = dma.vmem_to_hbm [thread:$0]  %s4540, 64, %s10, [#allocation8], 32, 32, 2
    $region45: #{gru_model_forward.1} parent=1 // pred_fallthru
      _
    // Predicated region
    $region46: #{gru_model_forward.1} parent=1 // pred_check
      _
    $region47: #{gru_model_forward.1} parent=1 // pred_check_branch
      %4547 = sbr.rel (0) target = $region49
    $region48: #{gru_model_forward.1} parent=1 // pred_region
      _
    $region49: #{gru_model_forward.1} parent=1 // pred_fallthru
      _
    // Predicated region
    $region50: #{gru_model_forward.1} parent=1 // pred_check
      _
    $region51: #{gru_model_forward.1} parent=1 // pred_check_branch
      %4549 = sbr.rel (0) target = $region53
    $region52: #{gru_model_forward.1} parent=1 // pred_region
      %4550 = dma.done [#allocation8], 64
    $region53: #{gru_model_forward.1} parent=1 // pred_fallthru
      _
    %4551 = vsyncpa [#allocation8], 1

</llo_original>
